<compile_context>
chip_gen: v6e
topology: v6e:2x2x1
jax: 0.10.0
libtpu: 0.0.40
codegen_flags: <defaults>
</compile_context>

<pallas_src>
import functools

import jax
import jax.numpy as jnp
from jax import lax
from jax.experimental import pallas as pl
from jax.experimental.pallas import tpu as pltpu


def _silu(x):
    return x * jax.nn.sigmoid(x)


# ----------------------------- fused kernel ---------------------------------

def _egnn_kernel(h_in_ref, coord_ref, grow_ref, gcol_ref, eattr_ref, emask_ref,
                 nmask_ref, deg_ref,
                 we_ref, be_ref,
                 w1_ref, b1_ref, w2_ref, b2_ref, w3_ref, b3_ref, w4_ref, b4_ref,
                 wc1_ref, bc1_ref, wc2_ref,
                 wn1_ref, bn1_ref, wn2_ref, bn2_ref,
                 wg1_ref, bg1_ref, wg2_ref, bg2_ref,
                 pred_ref, coord_out_ref,
                 *, n_layers, hidden, graphs_per_step):
    """One grid step processes `graphs_per_step` whole graphs end to end."""
    H = hidden
    f32 = jnp.float32
    bf16 = jnp.bfloat16

    for g in range(graphs_per_step):          # static unroll over grouped graphs
        grow = grow_ref[g]                    # [e, n]  bf16 one-hot of `row`
        gcol = gcol_ref[g]                    # [e, n]  bf16 one-hot of `col`
        coord = coord_ref[g]                  # [n, 3]  f32
        eattr = eattr_ref[g]                  # [e, Ea]
        emask = emask_ref[g]                  # [e, 1]
        # segment-mean denominator -> EUP reciprocal (degree precomputed host-side)
        rdeg = pl.reciprocal(deg_ref[g], approx=True)   # [n, 1]

        # embedding_in
        h = (jnp.dot(h_in_ref[g], we_ref[...], preferred_element_type=f32)
             + be_ref[...])                   # [n, H]

        coord_new = coord
        for li in range(n_layers):            # layers fused; weights sliced statically
            last = li == n_layers - 1

            # fused gather of [h | coord] for both edge endpoints (bf16 MXU, f32 acc)
            hx = jnp.concatenate([h, coord], axis=1).astype(bf16)       # [n, H+3]
            src = jnp.dot(grow, hx, preferred_element_type=f32)         # h[row] | coord[row]
            dst = jnp.dot(gcol, hx, preferred_element_type=f32)         # h[col] | coord[col]

            cdiff = src[:, H:] - dst[:, H:]                             # [e, 3]
            radial = jnp.sum(cdiff * cdiff, axis=1, keepdims=True)      # [e, 1]

            # edge_mlp as a single wide-K matmul (W1 zero-row padded for coord lanes)
            e_in = jnp.concatenate([src, dst, radial, eattr], axis=1)   # [e, 2(H+3)+1+Ea]
            eh = _silu(jnp.dot(e_in, w1_ref[li], preferred_element_type=f32)
                       + b1_ref[li])
            edge_feat = _silu(jnp.dot(eh, w2_ref[li], preferred_element_type=f32)
                              + b2_ref[li])
            edge_feat = edge_feat * emask                               # edge mask

            # unsorted_segment_sum(edge_feat, row) == grow^T @ edge_feat (no srow input)
            ef_b = edge_feat.astype(bf16)
            agg = lax.dot_general(grow, ef_b, (((0,), (0,)), ((), ())),
                                  preferred_element_type=f32)           # [n, H]

            if last:
                # coord_model (only the last layer updates coordinates)
                ch = _silu(jnp.dot(edge_feat, wc1_ref[...],
                                   preferred_element_type=f32) + bc1_ref[...])
                mij = jnp.dot(ch, wc2_ref[...], preferred_element_type=f32)  # [e, 1]
                trans = (cdiff * mij).astype(bf16)                      # [e, 3]
                summed = lax.dot_general(grow, trans, (((0,), (0,)), ((), ())),
                                         preferred_element_type=f32)   # [n, 3]
                coord_new = coord + summed * rdeg                       # segment mean

            # node_mlp as one wide-K matmul + residual
            n_in = jnp.concatenate([h, agg], axis=1)                    # [n, 2H]
            nh = _silu(jnp.dot(n_in, w3_ref[li], preferred_element_type=f32)
                       + b3_ref[li])
            h = h + jnp.dot(nh, w4_ref[li], preferred_element_type=f32) + b4_ref[li]

        # node_dec -> node mask -> per-graph sum -> graph_dec
        hd = _silu(jnp.dot(h, wn1_ref[...], preferred_element_type=f32)
                   + bn1_ref[...])
        hd = jnp.dot(hd, wn2_ref[...], preferred_element_type=f32) + bn2_ref[...]
        hd = hd * nmask_ref[g]
        hs = jnp.sum(hd, axis=0, keepdims=True)                         # [1, H]
        gv = _silu(jnp.dot(hs, wg1_ref[...], preferred_element_type=f32)
                   + bg1_ref[...])
        pred = jnp.dot(gv, wg2_ref[...], preferred_element_type=f32) + bg2_ref[...]
        pred_ref[g] = pred                                              # [1, 1]
        coord_out_ref[g] = coord_new                                    # [n, 3]


# ----------------------------- wrapper ---------------------------------------

def egnn_finetune_last_forward(params, h_in, x, row, col, edge_attr, n_nodes,
                               edge_mask=None, node_mask=None,
                               graphs_per_step=1):
    """EGNN_finetune_last.forward.

    Edges must be grouped per graph (edges of graph b occupy the contiguous
    range [b*e_g, (b+1)*e_g)), which is how the batched EGNN data is laid out.
    Returns (pred [B], coord [N, 3]).
    """
    N, F_in = h_in.shape
    E = row.shape[0]
    B = N // n_nodes
    e_g = E // B
    H = params["We"].shape[1]
    L = len(params["layers"])
    G = graphs_per_step
    assert B % G == 0, "graphs_per_step must divide the number of graphs"

    f32 = jnp.float32
    # per-graph local edge indices and bf16 one-hot gather matrices (0/1 exact)
    node_off = (jnp.arange(B, dtype=row.dtype) * n_nodes)[:, None]
    row_l = row.reshape(B, e_g) - node_off
    col_l = col.reshape(B, e_g) - node_off
    grow = jax.nn.one_hot(row_l, n_nodes, dtype=jnp.bfloat16)   # [B, e_g, n]
    gcol = jax.nn.one_hot(col_l, n_nodes, dtype=jnp.bfloat16)   # [B, e_g, n]
    # segment-mean denominator: per-node edge count, clamp(min=1)
    deg = jnp.maximum(
        jnp.sum(jax.nn.one_hot(row_l, n_nodes, dtype=f32), axis=1), 1.0)
    deg = deg[:, :, None]                                       # [B, n, 1]

    h3 = h_in.reshape(B, n_nodes, F_in).astype(f32)
    x3 = x.reshape(B, n_nodes, 3).astype(f32)
    ea3 = edge_attr.reshape(B, e_g, -1).astype(f32)
    em3 = (jnp.ones((B, e_g, 1), f32) if edge_mask is None
           else edge_mask.reshape(B, e_g, 1).astype(f32))
    nm3 = (jnp.ones((B, n_nodes, 1), f32) if node_mask is None
           else node_mask.reshape(B, n_nodes, 1).astype(f32))

    # Zero-row-pad W1 so the raw [h|coord] gathered slabs feed it directly, and
    # stack per-layer weights so the single fused kernel indexes them statically.
    z3 = jnp.zeros((3, H), f32)

    def pad_w1(w1):
        return jnp.concatenate([w1[:H], z3, w1[H:2 * H], z3, w1[2 * H:]], axis=0)

    layers = params["layers"]
    W1s = jnp.stack([pad_w1(p["W1"]) for p in layers])          # [L, 2(H+3)+1+Ea, H]
    b1s = jnp.stack([p["b1"] for p in layers])                  # [L, 1, H]
    W2s = jnp.stack([p["W2"] for p in layers])
    b2s = jnp.stack([p["b2"] for p in layers])
    W3s = jnp.stack([p["W3"] for p in layers])
    b3s = jnp.stack([p["b3"] for p in layers])
    W4s = jnp.stack([p["W4"] for p in layers])
    b4s = jnp.stack([p["b4"] for p in layers])
    Wc1, bc1, Wc2 = layers[-1]["Wc1"], layers[-1]["bc1"], layers[-1]["Wc2"]

    inputs = (h3, x3, grow, gcol, ea3, em3, nm3, deg,
              params["We"], params["be"],
              W1s, b1s, W2s, b2s, W3s, b3s, W4s, b4s,
              Wc1, bc1, Wc2,
              params["Wn1"], params["bn1"], params["Wn2"], params["bn2"],
              params["Wg1"], params["bg1"], params["Wg2"], params["bg2"])

    def graph_spec(shape):        # per-graph tile, indexed by the graph grid axis
        return pl.BlockSpec((G,) + tuple(shape[1:]), lambda i: (i, 0, 0))

    def const_spec(shape):        # weights: same block every step -> VMEM resident
        nd = len(shape)
        return pl.BlockSpec(tuple(shape), lambda i, _nd=nd: (0,) * _nd)

    in_specs = ([graph_spec(a.shape) for a in inputs[:8]]
                + [const_spec(a.shape) for a in inputs[8:]])
    out_specs = (graph_spec((B, 1, 1)), graph_spec((B, n_nodes, 3)))
    out_shape = (jax.ShapeDtypeStruct((B, 1, 1), f32),
                 jax.ShapeDtypeStruct((B, n_nodes, 3), f32))

    kernel = functools.partial(_egnn_kernel, n_layers=L, hidden=H,
                               graphs_per_step=G)
    pred3, coord3 = pl.pallas_call(
        kernel,
        grid=(B // G,),
        in_specs=in_specs,
        out_specs=out_specs,
        out_shape=out_shape,
        compiler_params=pltpu.CompilerParams(
            dimension_semantics=("parallel",),          # shards over v7x's 2 TCs
            vmem_limit_bytes=48 * 1024 * 1024),         # explicit budget < v7x 64 MiB
    )(*inputs)
    return pred3.reshape(B), coord3.reshape(N, 3)


# ----------------------------- parameter init --------------------------------

def init_params(key, in_node_nf, hidden_nf, in_edge_nf, n_layers):
    H, Ea = hidden_nf, in_edge_nf

    def lin(k, fan_in, fan_out, scale=None):
        s = scale if scale is not None else 1.0 / (fan_in ** 0.5)
        kw, kb = jax.random.split(k)
        w = jax.random.uniform(kw, (fan_in, fan_out), jnp.float32, -s, s)
        b = jax.random.uniform(kb, (1, fan_out), jnp.float32, -s, s)
        return w, b

    keys = jax.random.split(key, 8 + 8 * n_layers)
    ki = iter(range(len(keys)))

    params = {}
    params["We"], params["be"] = lin(keys[next(ki)], in_node_nf, H)

    layers = []
    for _ in range(n_layers):
        p = {}
        p["W1"], p["b1"] = lin(keys[next(ki)], 2 * H + 1 + Ea, H)
        p["W2"], p["b2"] = lin(keys[next(ki)], H, H)
        p["W3"], p["b3"] = lin(keys[next(ki)], 2 * H, H)
        p["W4"], p["b4"] = lin(keys[next(ki)], H, H)
        p["Wc1"], p["bc1"] = lin(keys[next(ki)], H, H)
        # coord_mlp output layer: Linear(H, 1, bias=False), xavier gain=0.001
        p["Wc2"] = jax.random.uniform(keys[next(ki)], (H, 1), jnp.float32,
                                      -0.001, 0.001)
        layers.append(p)
    params["layers"] = layers

    params["Wn1"], params["bn1"] = lin(keys[next(ki)], H, H)
    params["Wn2"], params["bn2"] = lin(keys[next(ki)], H, H)
    params["Wg1"], params["bg1"] = lin(keys[next(ki)], H, H)
    params["Wg2"], params["bg2"] = lin(keys[next(ki)], H, 1)
    return params


# ----------------------------- pure-JAX f32 reference ------------------------

def reference_forward(params, h_in, x, row, col, edge_attr, n_nodes):
    N = h_in.shape[0]
    H = params["We"].shape[1]
    B = N // n_nodes
    h = h_in @ params["We"] + params["be"]
    coord = x
    n_layers = len(params["layers"])
    for li in range(n_layers):
        p = params["layers"][li]
        c_diff = coord[row] - coord[col]
        radial = jnp.sum(c_diff ** 2, axis=1, keepdims=True)
        e_in = jnp.concatenate([h[row], h[col], radial, edge_attr], axis=1)
        efeat = jax.nn.silu(jax.nn.silu(e_in @ p["W1"] + p["b1"]) @ p["W2"]
                            + p["b2"])
        if li == n_layers - 1:
            mij = jax.nn.silu(efeat @ p["Wc1"] + p["bc1"]) @ p["Wc2"]
            trans = c_diff * mij
            summed = jax.ops.segment_sum(trans, row, num_segments=N)
            count = jax.ops.segment_sum(jnp.ones_like(trans), row,
                                        num_segments=N)
            coord = coord + summed / jnp.maximum(count, 1.0)
        agg = jax.ops.segment_sum(efeat, row, num_segments=N)
        nh = jax.nn.silu(jnp.concatenate([h, agg], axis=1) @ p["W3"] + p["b3"])
        h = h + (nh @ p["W4"] + p["b4"])
    hd = (jax.nn.silu(h @ params["Wn1"] + params["bn1"]) @ params["Wn2"]
          + params["bn2"])
    hs = hd.reshape(B, n_nodes, H).sum(axis=1)
    g = jax.nn.silu(hs @ params["Wg1"] + params["bg1"])
    pred = g @ params["Wg2"] + params["bg2"]
    return pred[:, 0], coord


# ----------------------------- main -------------------------------------------

if __name__ == "__main__":
    in_node_nf, hidden_nf, in_edge_nf, n_layers = 4, 32, 2, 4
    B, n_nodes = 2, 8
    N = B * n_nodes

    # fully-connected edges within each graph (no self loops), grouped per graph
    rows, cols = [], []
    for b in range(B):
        off = b * n_nodes
        for i in range(n_nodes):
            for j in range(n_nodes):
                if i != j:
                    rows.append(off + i)
                    cols.append(off + j)
    row = jnp.asarray(rows, dtype=jnp.int32)
    col = jnp.asarray(cols, dtype=jnp.int32)
    E = row.shape[0]

    key = jax.random.PRNGKey(0)
    k_p, k_h, k_x, k_e = jax.random.split(key, 4)
    params = init_params(k_p, in_node_nf, hidden_nf, in_edge_nf, n_layers)
    h_in = jax.random.normal(k_h, (N, in_node_nf), jnp.float32)
    x = jax.random.normal(k_x, (N, 3), jnp.float32)
    edge_attr = jax.random.normal(k_e, (E, in_edge_nf), jnp.float32)

    pred, coord = egnn_finetune_last_forward(params, h_in, x, row, col,
                                             edge_attr, n_nodes,
                                             graphs_per_step=1)
    pred = jax.block_until_ready(pred)
    coord = jax.block_until_ready(coord)

    ref_pred, ref_coord = reference_forward(params, h_in, x, row, col,
                                            edge_attr, n_nodes)
    ref_pred = jax.block_until_ready(ref_pred)

    assert pred.shape == (B,)
    assert bool(jnp.all(jnp.isfinite(pred)))
    # tolerance accounts for bf16 gather/scatter operands (f32 accumulation)
    assert jnp.allclose(pred, ref_pred, rtol=5e-2, atol=5e-2), (pred, ref_pred)
    assert jnp.allclose(coord, ref_coord, rtol=5e-2, atol=5e-2)

    print("KERNEL_OK")
</pallas_src>

<mosaic_0001>
module attributes {stable_mosaic.version = 11 : i64} {
  func.func @_egnn_kernel(%arg0: i32, %arg1: memref<1x8x4xf32, #tpu.memory_space<vmem>>, %arg2: memref<1x8x3xf32, #tpu.memory_space<vmem>>, %arg3: memref<1x56x8xbf16, #tpu.memory_space<vmem>>, %arg4: memref<1x56x8xbf16, #tpu.memory_space<vmem>>, %arg5: memref<1x56x2xf32, #tpu.memory_space<vmem>>, %arg6: memref<1x56x1xf32, #tpu.memory_space<vmem>>, %arg7: memref<1x8x1xf32, #tpu.memory_space<vmem>>, %arg8: memref<1x8x1xf32, #tpu.memory_space<vmem>>, %arg9: memref<4x32xf32, #tpu.memory_space<vmem>>, %arg10: memref<1x32xf32, #tpu.memory_space<vmem>>, %arg11: memref<4x73x32xf32, #tpu.memory_space<vmem>>, %arg12: memref<4x1x32xf32, #tpu.memory_space<vmem>>, %arg13: memref<4x32x32xf32, #tpu.memory_space<vmem>>, %arg14: memref<4x1x32xf32, #tpu.memory_space<vmem>>, %arg15: memref<4x64x32xf32, #tpu.memory_space<vmem>>, %arg16: memref<4x1x32xf32, #tpu.memory_space<vmem>>, %arg17: memref<4x32x32xf32, #tpu.memory_space<vmem>>, %arg18: memref<4x1x32xf32, #tpu.memory_space<vmem>>, %arg19: memref<32x32xf32, #tpu.memory_space<vmem>>, %arg20: memref<1x32xf32, #tpu.memory_space<vmem>>, %arg21: memref<32x1xf32, #tpu.memory_space<vmem>>, %arg22: memref<32x32xf32, #tpu.memory_space<vmem>>, %arg23: memref<1x32xf32, #tpu.memory_space<vmem>>, %arg24: memref<32x32xf32, #tpu.memory_space<vmem>>, %arg25: memref<1x32xf32, #tpu.memory_space<vmem>>, %arg26: memref<32x32xf32, #tpu.memory_space<vmem>>, %arg27: memref<1x32xf32, #tpu.memory_space<vmem>>, %arg28: memref<32x1xf32, #tpu.memory_space<vmem>>, %arg29: memref<1x1xf32, #tpu.memory_space<vmem>>, %arg30: memref<1x1x1xf32, #tpu.memory_space<vmem>>, %arg31: memref<1x8x3xf32, #tpu.memory_space<vmem>>) attributes {dimension_semantics = [#tpu.dimension_semantics<parallel>], iteration_bounds = array<i64: 2>, scalar_prefetch = 0 : i64, scratch_operands = 0 : i64, tpu.core_type = #tpu.core_type<tc>, window_params = [{transform_indices = @transform_0, window_bounds = array<i64: 1, 8, 4>}, {transform_indices = @transform_1, window_bounds = array<i64: 1, 8, 3>}, {transform_indices = @transform_2, window_bounds = array<i64: 1, 56, 8>}, {transform_indices = @transform_3, window_bounds = array<i64: 1, 56, 8>}, {transform_indices = @transform_4, window_bounds = array<i64: 1, 56, 2>}, {transform_indices = @transform_5, window_bounds = array<i64: 1, 56, 1>}, {transform_indices = @transform_6, window_bounds = array<i64: 1, 8, 1>}, {transform_indices = @transform_7, window_bounds = array<i64: 1, 8, 1>}, {pipeline_mode = #tpu.pipeline_mode<synchronous>, transform_indices = @transform_8, window_bounds = array<i64: 4, 32>}, {pipeline_mode = #tpu.pipeline_mode<synchronous>, transform_indices = @transform_9, window_bounds = array<i64: 1, 32>}, {pipeline_mode = #tpu.pipeline_mode<synchronous>, transform_indices = @transform_10, window_bounds = array<i64: 4, 73, 32>}, {pipeline_mode = #tpu.pipeline_mode<synchronous>, transform_indices = @transform_11, window_bounds = array<i64: 4, 1, 32>}, {pipeline_mode = #tpu.pipeline_mode<synchronous>, transform_indices = @transform_12, window_bounds = array<i64: 4, 32, 32>}, {pipeline_mode = #tpu.pipeline_mode<synchronous>, transform_indices = @transform_13, window_bounds = array<i64: 4, 1, 32>}, {pipeline_mode = #tpu.pipeline_mode<synchronous>, transform_indices = @transform_14, window_bounds = array<i64: 4, 64, 32>}, {pipeline_mode = #tpu.pipeline_mode<synchronous>, transform_indices = @transform_15, window_bounds = array<i64: 4, 1, 32>}, {pipeline_mode = #tpu.pipeline_mode<synchronous>, transform_indices = @transform_16, window_bounds = array<i64: 4, 32, 32>}, {pipeline_mode = #tpu.pipeline_mode<synchronous>, transform_indices = @transform_17, window_bounds = array<i64: 4, 1, 32>}, {pipeline_mode = #tpu.pipeline_mode<synchronous>, transform_indices = @transform_18, window_bounds = array<i64: 32, 32>}, {pipeline_mode = #tpu.pipeline_mode<synchronous>, transform_indices = @transform_19, window_bounds = array<i64: 1, 32>}, {pipeline_mode = #tpu.pipeline_mode<synchronous>, transform_indices = @transform_20, window_bounds = array<i64: 32, 1>}, {pipeline_mode = #tpu.pipeline_mode<synchronous>, transform_indices = @transform_21, window_bounds = array<i64: 32, 32>}, {pipeline_mode = #tpu.pipeline_mode<synchronous>, transform_indices = @transform_22, window_bounds = array<i64: 1, 32>}, {pipeline_mode = #tpu.pipeline_mode<synchronous>, transform_indices = @transform_23, window_bounds = array<i64: 32, 32>}, {pipeline_mode = #tpu.pipeline_mode<synchronous>, transform_indices = @transform_24, window_bounds = array<i64: 1, 32>}, {pipeline_mode = #tpu.pipeline_mode<synchronous>, transform_indices = @transform_25, window_bounds = array<i64: 32, 32>}, {pipeline_mode = #tpu.pipeline_mode<synchronous>, transform_indices = @transform_26, window_bounds = array<i64: 1, 32>}, {pipeline_mode = #tpu.pipeline_mode<synchronous>, transform_indices = @transform_27, window_bounds = array<i64: 32, 1>}, {pipeline_mode = #tpu.pipeline_mode<synchronous>, transform_indices = @transform_28, window_bounds = array<i64: 1, 1>}, {transform_indices = @transform_29, window_bounds = array<i64: 1, 1, 1>}, {transform_indices = @transform_30, window_bounds = array<i64: 1, 8, 3>}]} {
    %c0 = arith.constant 0 : index
    %c0_0 = arith.constant 0 : index
    %c0_1 = arith.constant 0 : index
    %0 = vector.load %arg3[%c0, %c0_0, %c0_1] : memref<1x56x8xbf16, #tpu.memory_space<vmem>>, vector<1x56x8xbf16>
    %1 = vector.shape_cast %0 : vector<1x56x8xbf16> to vector<56x8xbf16>
    %c0_2 = arith.constant 0 : index
    %c0_3 = arith.constant 0 : index
    %c0_4 = arith.constant 0 : index
    %2 = vector.load %arg4[%c0_2, %c0_3, %c0_4] : memref<1x56x8xbf16, #tpu.memory_space<vmem>>, vector<1x56x8xbf16>
    %3 = vector.shape_cast %2 : vector<1x56x8xbf16> to vector<56x8xbf16>
    %c0_5 = arith.constant 0 : index
    %c0_6 = arith.constant 0 : index
    %c0_7 = arith.constant 0 : index
    %4 = vector.load %arg2[%c0_5, %c0_6, %c0_7] : memref<1x8x3xf32, #tpu.memory_space<vmem>>, vector<1x8x3xf32>
    %5 = vector.shape_cast %4 : vector<1x8x3xf32> to vector<8x3xf32>
    %c0_8 = arith.constant 0 : index
    %c0_9 = arith.constant 0 : index
    %c0_10 = arith.constant 0 : index
    %6 = vector.load %arg5[%c0_8, %c0_9, %c0_10] : memref<1x56x2xf32, #tpu.memory_space<vmem>>, vector<1x56x2xf32>
    %7 = vector.shape_cast %6 : vector<1x56x2xf32> to vector<56x2xf32>
    %c0_11 = arith.constant 0 : index
    %c0_12 = arith.constant 0 : index
    %c0_13 = arith.constant 0 : index
    %8 = vector.load %arg6[%c0_11, %c0_12, %c0_13] : memref<1x56x1xf32, #tpu.memory_space<vmem>>, vector<1x56x1xf32>
    %9 = vector.shape_cast %8 : vector<1x56x1xf32> to vector<56x1xf32>
    %c0_14 = arith.constant 0 : index
    %c0_15 = arith.constant 0 : index
    %c0_16 = arith.constant 0 : index
    %10 = vector.load %arg8[%c0_14, %c0_15, %c0_16] : memref<1x8x1xf32, #tpu.memory_space<vmem>>, vector<1x8x1xf32>
    %11 = vector.shape_cast %10 : vector<1x8x1xf32> to vector<8x1xf32>
    %12 = tpu.reciprocal %11 {approx = true} : vector<8x1xf32> -> vector<8x1xf32>
    %c0_17 = arith.constant 0 : index
    %c0_18 = arith.constant 0 : index
    %c0_19 = arith.constant 0 : index
    %13 = vector.load %arg1[%c0_17, %c0_18, %c0_19] : memref<1x8x4xf32, #tpu.memory_space<vmem>>, vector<1x8x4xf32>
    %14 = vector.shape_cast %13 : vector<1x8x4xf32> to vector<8x4xf32>
    %c0_20 = arith.constant 0 : index
    %c0_21 = arith.constant 0 : index
    %15 = vector.load %arg9[%c0_20, %c0_21] : memref<4x32xf32, #tpu.memory_space<vmem>>, vector<4x32xf32>
    %cst = arith.constant dense<0.000000e+00> : vector<8x32xf32>
    %16 = tpu.matmul %14, %15, %cst {dimension_numbers = #tpu.dot_dimension_numbers<[1], [0], [0], [1], [0, 0, 1, 1], [], []>} : vector<8x4xf32>, vector<4x32xf32>, vector<8x32xf32> -> vector<8x32xf32>
    %c0_22 = arith.constant 0 : index
    %c0_23 = arith.constant 0 : index
    %17 = vector.load %arg10[%c0_22, %c0_23] : memref<1x32xf32, #tpu.memory_space<vmem>>, vector<1x32xf32>
    %18 = vector.broadcast %17 : vector<1x32xf32> to vector<8x32xf32>
    %19 = arith.addf %16, %18 : vector<8x32xf32>
    %20 = tpu.concatenate %19, %5 in 1 : vector<8x32xf32>, vector<8x3xf32> -> vector<8x35xf32>
    %21 = arith.truncf %20 : vector<8x35xf32> to vector<8x35xbf16>
    %cst_24 = arith.constant dense<0.000000e+00> : vector<56x35xf32>
    %22 = tpu.matmul %1, %21, %cst_24 {dimension_numbers = #tpu.dot_dimension_numbers<[1], [0], [0], [1], [0, 0, 1, 1], [], []>} : vector<56x8xbf16>, vector<8x35xbf16>, vector<56x35xf32> -> vector<56x35xf32>
    %cst_25 = arith.constant dense<0.000000e+00> : vector<56x35xf32>
    %23 = tpu.matmul %3, %21, %cst_25 {dimension_numbers = #tpu.dot_dimension_numbers<[1], [0], [0], [1], [0, 0, 1, 1], [], []>} : vector<56x8xbf16>, vector<8x35xbf16>, vector<56x35xf32> -> vector<56x35xf32>
    %24 = vector.extract_strided_slice %22 {offsets = [0, 32], sizes = [56, 3], strides = [1, 1]} : vector<56x35xf32> to vector<56x3xf32>
    %25 = vector.extract_strided_slice %23 {offsets = [0, 32], sizes = [56, 3], strides = [1, 1]} : vector<56x35xf32> to vector<56x3xf32>
    %26 = arith.subf %24, %25 : vector<56x3xf32>
    %27 = arith.mulf %26, %26 : vector<56x3xf32>
    %cst_26 = arith.constant dense<0.000000e+00> : vector<56xf32>
    %28 = vector.multi_reduction <add>, %27, %cst_26 [1] : vector<56x3xf32> to vector<56xf32>
    %29 = vector.shape_cast %28 : vector<56xf32> to vector<56x1xf32>
    %30 = tpu.concatenate %22, %23, %29, %7 in 1 : vector<56x35xf32>, vector<56x35xf32>, vector<56x1xf32>, vector<56x2xf32> -> vector<56x73xf32>
    %c0_27 = arith.constant 0 : index
    %c0_28 = arith.constant 0 : index
    %c0_29 = arith.constant 0 : index
    %31 = vector.load %arg11[%c0_27, %c0_28, %c0_29] : memref<4x73x32xf32, #tpu.memory_space<vmem>>, vector<1x73x32xf32>
    %32 = vector.shape_cast %31 : vector<1x73x32xf32> to vector<73x32xf32>
    %cst_30 = arith.constant dense<0.000000e+00> : vector<56x32xf32>
    %33 = tpu.matmul %30, %32, %cst_30 {dimension_numbers = #tpu.dot_dimension_numbers<[1], [0], [0], [1], [0, 0, 1, 1], [], []>} : vector<56x73xf32>, vector<73x32xf32>, vector<56x32xf32> -> vector<56x32xf32>
    %c0_31 = arith.constant 0 : index
    %c0_32 = arith.constant 0 : index
    %c0_33 = arith.constant 0 : index
    %34 = vector.load %arg12[%c0_31, %c0_32, %c0_33] : memref<4x1x32xf32, #tpu.memory_space<vmem>>, vector<1x1x32xf32>
    %35 = vector.shape_cast %34 : vector<1x1x32xf32> to vector<1x32xf32>
    %36 = vector.broadcast %35 : vector<1x32xf32> to vector<56x32xf32>
    %37 = arith.addf %33, %36 : vector<56x32xf32>
    %38 = arith.negf %37 : vector<56x32xf32>
    %39 = math.exp %38 : vector<56x32xf32>
    %cst_34 = arith.constant 1.000000e+00 : f32
    %40 = vector.broadcast %cst_34 : f32 to vector<56x32xf32>
    %41 = arith.addf %40, %39 : vector<56x32xf32>
    %42 = arith.divf %40, %41 : vector<56x32xf32>
    %43 = arith.mulf %37, %42 : vector<56x32xf32>
    %c0_35 = arith.constant 0 : index
    %c0_36 = arith.constant 0 : index
    %c0_37 = arith.constant 0 : index
    %44 = vector.load %arg13[%c0_35, %c0_36, %c0_37] : memref<4x32x32xf32, #tpu.memory_space<vmem>>, vector<1x32x32xf32>
    %45 = vector.shape_cast %44 : vector<1x32x32xf32> to vector<32x32xf32>
    %cst_38 = arith.constant dense<0.000000e+00> : vector<56x32xf32>
    %46 = tpu.matmul %43, %45, %cst_38 {dimension_numbers = #tpu.dot_dimension_numbers<[1], [0], [0], [1], [0, 0, 1, 1], [], []>} : vector<56x32xf32>, vector<32x32xf32>, vector<56x32xf32> -> vector<56x32xf32>
    %c0_39 = arith.constant 0 : index
    %c0_40 = arith.constant 0 : index
    %c0_41 = arith.constant 0 : index
    %47 = vector.load %arg14[%c0_39, %c0_40, %c0_41] : memref<4x1x32xf32, #tpu.memory_space<vmem>>, vector<1x1x32xf32>
    %48 = vector.shape_cast %47 : vector<1x1x32xf32> to vector<1x32xf32>
    %49 = vector.broadcast %48 : vector<1x32xf32> to vector<56x32xf32>
    %50 = arith.addf %46, %49 : vector<56x32xf32>
    %51 = arith.negf %50 : vector<56x32xf32>
    %52 = math.exp %51 : vector<56x32xf32>
    %cst_42 = arith.constant 1.000000e+00 : f32
    %53 = vector.broadcast %cst_42 : f32 to vector<56x32xf32>
    %54 = arith.addf %53, %52 : vector<56x32xf32>
    %55 = arith.divf %53, %54 : vector<56x32xf32>
    %56 = arith.mulf %50, %55 : vector<56x32xf32>
    %57 = vector.broadcast %9 : vector<56x1xf32> to vector<56x32xf32>
    %58 = arith.mulf %56, %57 : vector<56x32xf32>
    %59 = arith.truncf %58 : vector<56x32xf32> to vector<56x32xbf16>
    %cst_43 = arith.constant dense<0.000000e+00> : vector<8x32xf32>
    %60 = tpu.matmul %1, %59, %cst_43 {dimension_numbers = #tpu.dot_dimension_numbers<[0], [0], [1], [1], [0, 1, 1, 1], [], []>} : vector<56x8xbf16>, vector<56x32xbf16>, vector<8x32xf32> -> vector<8x32xf32>
    %61 = tpu.concatenate %19, %60 in 1 : vector<8x32xf32>, vector<8x32xf32> -> vector<8x64xf32>
    %c0_44 = arith.constant 0 : index
    %c0_45 = arith.constant 0 : index
    %c0_46 = arith.constant 0 : index
    %62 = vector.load %arg15[%c0_44, %c0_45, %c0_46] : memref<4x64x32xf32, #tpu.memory_space<vmem>>, vector<1x64x32xf32>
    %63 = vector.shape_cast %62 : vector<1x64x32xf32> to vector<64x32xf32>
    %cst_47 = arith.constant dense<0.000000e+00> : vector<8x32xf32>
    %64 = tpu.matmul %61, %63, %cst_47 {dimension_numbers = #tpu.dot_dimension_numbers<[1], [0], [0], [1], [0, 0, 1, 1], [], []>} : vector<8x64xf32>, vector<64x32xf32>, vector<8x32xf32> -> vector<8x32xf32>
    %c0_48 = arith.constant 0 : index
    %c0_49 = arith.constant 0 : index
    %c0_50 = arith.constant 0 : index
    %65 = vector.load %arg16[%c0_48, %c0_49, %c0_50] : memref<4x1x32xf32, #tpu.memory_space<vmem>>, vector<1x1x32xf32>
    %66 = vector.shape_cast %65 : vector<1x1x32xf32> to vector<1x32xf32>
    %67 = vector.broadcast %66 : vector<1x32xf32> to vector<8x32xf32>
    %68 = arith.addf %64, %67 : vector<8x32xf32>
    %69 = arith.negf %68 : vector<8x32xf32>
    %70 = math.exp %69 : vector<8x32xf32>
    %cst_51 = arith.constant 1.000000e+00 : f32
    %71 = vector.broadcast %cst_51 : f32 to vector<8x32xf32>
    %72 = arith.addf %71, %70 : vector<8x32xf32>
    %73 = arith.divf %71, %72 : vector<8x32xf32>
    %74 = arith.mulf %68, %73 : vector<8x32xf32>
    %c0_52 = arith.constant 0 : index
    %c0_53 = arith.constant 0 : index
    %c0_54 = arith.constant 0 : index
    %75 = vector.load %arg17[%c0_52, %c0_53, %c0_54] : memref<4x32x32xf32, #tpu.memory_space<vmem>>, vector<1x32x32xf32>
    %76 = vector.shape_cast %75 : vector<1x32x32xf32> to vector<32x32xf32>
    %cst_55 = arith.constant dense<0.000000e+00> : vector<8x32xf32>
    %77 = tpu.matmul %74, %76, %cst_55 {dimension_numbers = #tpu.dot_dimension_numbers<[1], [0], [0], [1], [0, 0, 1, 1], [], []>} : vector<8x32xf32>, vector<32x32xf32>, vector<8x32xf32> -> vector<8x32xf32>
    %78 = arith.addf %19, %77 : vector<8x32xf32>
    %c0_56 = arith.constant 0 : index
    %c0_57 = arith.constant 0 : index
    %c0_58 = arith.constant 0 : index
    %79 = vector.load %arg18[%c0_56, %c0_57, %c0_58] : memref<4x1x32xf32, #tpu.memory_space<vmem>>, vector<1x1x32xf32>
    %80 = vector.shape_cast %79 : vector<1x1x32xf32> to vector<1x32xf32>
    %81 = vector.broadcast %80 : vector<1x32xf32> to vector<8x32xf32>
    %82 = arith.addf %78, %81 : vector<8x32xf32>
    %83 = tpu.concatenate %82, %5 in 1 : vector<8x32xf32>, vector<8x3xf32> -> vector<8x35xf32>
    %84 = arith.truncf %83 : vector<8x35xf32> to vector<8x35xbf16>
    %cst_59 = arith.constant dense<0.000000e+00> : vector<56x35xf32>
    %85 = tpu.matmul %1, %84, %cst_59 {dimension_numbers = #tpu.dot_dimension_numbers<[1], [0], [0], [1], [0, 0, 1, 1], [], []>} : vector<56x8xbf16>, vector<8x35xbf16>, vector<56x35xf32> -> vector<56x35xf32>
    %cst_60 = arith.constant dense<0.000000e+00> : vector<56x35xf32>
    %86 = tpu.matmul %3, %84, %cst_60 {dimension_numbers = #tpu.dot_dimension_numbers<[1], [0], [0], [1], [0, 0, 1, 1], [], []>} : vector<56x8xbf16>, vector<8x35xbf16>, vector<56x35xf32> -> vector<56x35xf32>
    %87 = vector.extract_strided_slice %85 {offsets = [0, 32], sizes = [56, 3], strides = [1, 1]} : vector<56x35xf32> to vector<56x3xf32>
    %88 = vector.extract_strided_slice %86 {offsets = [0, 32], sizes = [56, 3], strides = [1, 1]} : vector<56x35xf32> to vector<56x3xf32>
    %89 = arith.subf %87, %88 : vector<56x3xf32>
    %90 = arith.mulf %89, %89 : vector<56x3xf32>
    %cst_61 = arith.constant dense<0.000000e+00> : vector<56xf32>
    %91 = vector.multi_reduction <add>, %90, %cst_61 [1] : vector<56x3xf32> to vector<56xf32>
    %92 = vector.shape_cast %91 : vector<56xf32> to vector<56x1xf32>
    %93 = tpu.concatenate %85, %86, %92, %7 in 1 : vector<56x35xf32>, vector<56x35xf32>, vector<56x1xf32>, vector<56x2xf32> -> vector<56x73xf32>
    %c1 = arith.constant 1 : index
    %c0_62 = arith.constant 0 : index
    %c0_63 = arith.constant 0 : index
    %94 = vector.load %arg11[%c1, %c0_62, %c0_63] : memref<4x73x32xf32, #tpu.memory_space<vmem>>, vector<1x73x32xf32>
    %95 = vector.shape_cast %94 : vector<1x73x32xf32> to vector<73x32xf32>
    %cst_64 = arith.constant dense<0.000000e+00> : vector<56x32xf32>
    %96 = tpu.matmul %93, %95, %cst_64 {dimension_numbers = #tpu.dot_dimension_numbers<[1], [0], [0], [1], [0, 0, 1, 1], [], []>} : vector<56x73xf32>, vector<73x32xf32>, vector<56x32xf32> -> vector<56x32xf32>
    %c1_65 = arith.constant 1 : index
    %c0_66 = arith.constant 0 : index
    %c0_67 = arith.constant 0 : index
    %97 = vector.load %arg12[%c1_65, %c0_66, %c0_67] : memref<4x1x32xf32, #tpu.memory_space<vmem>>, vector<1x1x32xf32>
    %98 = vector.shape_cast %97 : vector<1x1x32xf32> to vector<1x32xf32>
    %99 = vector.broadcast %98 : vector<1x32xf32> to vector<56x32xf32>
    %100 = arith.addf %96, %99 : vector<56x32xf32>
    %101 = arith.negf %100 : vector<56x32xf32>
    %102 = math.exp %101 : vector<56x32xf32>
    %cst_68 = arith.constant 1.000000e+00 : f32
    %103 = vector.broadcast %cst_68 : f32 to vector<56x32xf32>
    %104 = arith.addf %103, %102 : vector<56x32xf32>
    %105 = arith.divf %103, %104 : vector<56x32xf32>
    %106 = arith.mulf %100, %105 : vector<56x32xf32>
    %c1_69 = arith.constant 1 : index
    %c0_70 = arith.constant 0 : index
    %c0_71 = arith.constant 0 : index
    %107 = vector.load %arg13[%c1_69, %c0_70, %c0_71] : memref<4x32x32xf32, #tpu.memory_space<vmem>>, vector<1x32x32xf32>
    %108 = vector.shape_cast %107 : vector<1x32x32xf32> to vector<32x32xf32>
    %cst_72 = arith.constant dense<0.000000e+00> : vector<56x32xf32>
    %109 = tpu.matmul %106, %108, %cst_72 {dimension_numbers = #tpu.dot_dimension_numbers<[1], [0], [0], [1], [0, 0, 1, 1], [], []>} : vector<56x32xf32>, vector<32x32xf32>, vector<56x32xf32> -> vector<56x32xf32>
    %c1_73 = arith.constant 1 : index
    %c0_74 = arith.constant 0 : index
    %c0_75 = arith.constant 0 : index
    %110 = vector.load %arg14[%c1_73, %c0_74, %c0_75] : memref<4x1x32xf32, #tpu.memory_space<vmem>>, vector<1x1x32xf32>
    %111 = vector.shape_cast %110 : vector<1x1x32xf32> to vector<1x32xf32>
    %112 = vector.broadcast %111 : vector<1x32xf32> to vector<56x32xf32>
    %113 = arith.addf %109, %112 : vector<56x32xf32>
    %114 = arith.negf %113 : vector<56x32xf32>
    %115 = math.exp %114 : vector<56x32xf32>
    %cst_76 = arith.constant 1.000000e+00 : f32
    %116 = vector.broadcast %cst_76 : f32 to vector<56x32xf32>
    %117 = arith.addf %116, %115 : vector<56x32xf32>
    %118 = arith.divf %116, %117 : vector<56x32xf32>
    %119 = arith.mulf %113, %118 : vector<56x32xf32>
    %120 = vector.broadcast %9 : vector<56x1xf32> to vector<56x32xf32>
    %121 = arith.mulf %119, %120 : vector<56x32xf32>
    %122 = arith.truncf %121 : vector<56x32xf32> to vector<56x32xbf16>
    %cst_77 = arith.constant dense<0.000000e+00> : vector<8x32xf32>
    %123 = tpu.matmul %1, %122, %cst_77 {dimension_numbers = #tpu.dot_dimension_numbers<[0], [0], [1], [1], [0, 1, 1, 1], [], []>} : vector<56x8xbf16>, vector<56x32xbf16>, vector<8x32xf32> -> vector<8x32xf32>
    %124 = tpu.concatenate %82, %123 in 1 : vector<8x32xf32>, vector<8x32xf32> -> vector<8x64xf32>
    %c1_78 = arith.constant 1 : index
    %c0_79 = arith.constant 0 : index
    %c0_80 = arith.constant 0 : index
    %125 = vector.load %arg15[%c1_78, %c0_79, %c0_80] : memref<4x64x32xf32, #tpu.memory_space<vmem>>, vector<1x64x32xf32>
    %126 = vector.shape_cast %125 : vector<1x64x32xf32> to vector<64x32xf32>
    %cst_81 = arith.constant dense<0.000000e+00> : vector<8x32xf32>
    %127 = tpu.matmul %124, %126, %cst_81 {dimension_numbers = #tpu.dot_dimension_numbers<[1], [0], [0], [1], [0, 0, 1, 1], [], []>} : vector<8x64xf32>, vector<64x32xf32>, vector<8x32xf32> -> vector<8x32xf32>
    %c1_82 = arith.constant 1 : index
    %c0_83 = arith.constant 0 : index
    %c0_84 = arith.constant 0 : index
    %128 = vector.load %arg16[%c1_82, %c0_83, %c0_84] : memref<4x1x32xf32, #tpu.memory_space<vmem>>, vector<1x1x32xf32>
    %129 = vector.shape_cast %128 : vector<1x1x32xf32> to vector<1x32xf32>
    %130 = vector.broadcast %129 : vector<1x32xf32> to vector<8x32xf32>
    %131 = arith.addf %127, %130 : vector<8x32xf32>
    %132 = arith.negf %131 : vector<8x32xf32>
    %133 = math.exp %132 : vector<8x32xf32>
    %cst_85 = arith.constant 1.000000e+00 : f32
    %134 = vector.broadcast %cst_85 : f32 to vector<8x32xf32>
    %135 = arith.addf %134, %133 : vector<8x32xf32>
    %136 = arith.divf %134, %135 : vector<8x32xf32>
    %137 = arith.mulf %131, %136 : vector<8x32xf32>
    %c1_86 = arith.constant 1 : index
    %c0_87 = arith.constant 0 : index
    %c0_88 = arith.constant 0 : index
    %138 = vector.load %arg17[%c1_86, %c0_87, %c0_88] : memref<4x32x32xf32, #tpu.memory_space<vmem>>, vector<1x32x32xf32>
    %139 = vector.shape_cast %138 : vector<1x32x32xf32> to vector<32x32xf32>
    %cst_89 = arith.constant dense<0.000000e+00> : vector<8x32xf32>
    %140 = tpu.matmul %137, %139, %cst_89 {dimension_numbers = #tpu.dot_dimension_numbers<[1], [0], [0], [1], [0, 0, 1, 1], [], []>} : vector<8x32xf32>, vector<32x32xf32>, vector<8x32xf32> -> vector<8x32xf32>
    %141 = arith.addf %82, %140 : vector<8x32xf32>
    %c1_90 = arith.constant 1 : index
    %c0_91 = arith.constant 0 : index
    %c0_92 = arith.constant 0 : index
    %142 = vector.load %arg18[%c1_90, %c0_91, %c0_92] : memref<4x1x32xf32, #tpu.memory_space<vmem>>, vector<1x1x32xf32>
    %143 = vector.shape_cast %142 : vector<1x1x32xf32> to vector<1x32xf32>
    %144 = vector.broadcast %143 : vector<1x32xf32> to vector<8x32xf32>
    %145 = arith.addf %141, %144 : vector<8x32xf32>
    %146 = tpu.concatenate %145, %5 in 1 : vector<8x32xf32>, vector<8x3xf32> -> vector<8x35xf32>
    %147 = arith.truncf %146 : vector<8x35xf32> to vector<8x35xbf16>
    %cst_93 = arith.constant dense<0.000000e+00> : vector<56x35xf32>
    %148 = tpu.matmul %1, %147, %cst_93 {dimension_numbers = #tpu.dot_dimension_numbers<[1], [0], [0], [1], [0, 0, 1, 1], [], []>} : vector<56x8xbf16>, vector<8x35xbf16>, vector<56x35xf32> -> vector<56x35xf32>
    %cst_94 = arith.constant dense<0.000000e+00> : vector<56x35xf32>
    %149 = tpu.matmul %3, %147, %cst_94 {dimension_numbers = #tpu.dot_dimension_numbers<[1], [0], [0], [1], [0, 0, 1, 1], [], []>} : vector<56x8xbf16>, vector<8x35xbf16>, vector<56x35xf32> -> vector<56x35xf32>
    %150 = vector.extract_strided_slice %148 {offsets = [0, 32], sizes = [56, 3], strides = [1, 1]} : vector<56x35xf32> to vector<56x3xf32>
    %151 = vector.extract_strided_slice %149 {offsets = [0, 32], sizes = [56, 3], strides = [1, 1]} : vector<56x35xf32> to vector<56x3xf32>
    %152 = arith.subf %150, %151 : vector<56x3xf32>
    %153 = arith.mulf %152, %152 : vector<56x3xf32>
    %cst_95 = arith.constant dense<0.000000e+00> : vector<56xf32>
    %154 = vector.multi_reduction <add>, %153, %cst_95 [1] : vector<56x3xf32> to vector<56xf32>
    %155 = vector.shape_cast %154 : vector<56xf32> to vector<56x1xf32>
    %156 = tpu.concatenate %148, %149, %155, %7 in 1 : vector<56x35xf32>, vector<56x35xf32>, vector<56x1xf32>, vector<56x2xf32> -> vector<56x73xf32>
    %c2 = arith.constant 2 : index
    %c0_96 = arith.constant 0 : index
    %c0_97 = arith.constant 0 : index
    %157 = vector.load %arg11[%c2, %c0_96, %c0_97] : memref<4x73x32xf32, #tpu.memory_space<vmem>>, vector<1x73x32xf32>
    %158 = vector.shape_cast %157 : vector<1x73x32xf32> to vector<73x32xf32>
    %cst_98 = arith.constant dense<0.000000e+00> : vector<56x32xf32>
    %159 = tpu.matmul %156, %158, %cst_98 {dimension_numbers = #tpu.dot_dimension_numbers<[1], [0], [0], [1], [0, 0, 1, 1], [], []>} : vector<56x73xf32>, vector<73x32xf32>, vector<56x32xf32> -> vector<56x32xf32>
    %c2_99 = arith.constant 2 : index
    %c0_100 = arith.constant 0 : index
    %c0_101 = arith.constant 0 : index
    %160 = vector.load %arg12[%c2_99, %c0_100, %c0_101] : memref<4x1x32xf32, #tpu.memory_space<vmem>>, vector<1x1x32xf32>
    %161 = vector.shape_cast %160 : vector<1x1x32xf32> to vector<1x32xf32>
    %162 = vector.broadcast %161 : vector<1x32xf32> to vector<56x32xf32>
    %163 = arith.addf %159, %162 : vector<56x32xf32>
    %164 = arith.negf %163 : vector<56x32xf32>
    %165 = math.exp %164 : vector<56x32xf32>
    %cst_102 = arith.constant 1.000000e+00 : f32
    %166 = vector.broadcast %cst_102 : f32 to vector<56x32xf32>
    %167 = arith.addf %166, %165 : vector<56x32xf32>
    %168 = arith.divf %166, %167 : vector<56x32xf32>
    %169 = arith.mulf %163, %168 : vector<56x32xf32>
    %c2_103 = arith.constant 2 : index
    %c0_104 = arith.constant 0 : index
    %c0_105 = arith.constant 0 : index
    %170 = vector.load %arg13[%c2_103, %c0_104, %c0_105] : memref<4x32x32xf32, #tpu.memory_space<vmem>>, vector<1x32x32xf32>
    %171 = vector.shape_cast %170 : vector<1x32x32xf32> to vector<32x32xf32>
    %cst_106 = arith.constant dense<0.000000e+00> : vector<56x32xf32>
    %172 = tpu.matmul %169, %171, %cst_106 {dimension_numbers = #tpu.dot_dimension_numbers<[1], [0], [0], [1], [0, 0, 1, 1], [], []>} : vector<56x32xf32>, vector<32x32xf32>, vector<56x32xf32> -> vector<56x32xf32>
    %c2_107 = arith.constant 2 : index
    %c0_108 = arith.constant 0 : index
    %c0_109 = arith.constant 0 : index
    %173 = vector.load %arg14[%c2_107, %c0_108, %c0_109] : memref<4x1x32xf32, #tpu.memory_space<vmem>>, vector<1x1x32xf32>
    %174 = vector.shape_cast %173 : vector<1x1x32xf32> to vector<1x32xf32>
    %175 = vector.broadcast %174 : vector<1x32xf32> to vector<56x32xf32>
    %176 = arith.addf %172, %175 : vector<56x32xf32>
    %177 = arith.negf %176 : vector<56x32xf32>
    %178 = math.exp %177 : vector<56x32xf32>
    %cst_110 = arith.constant 1.000000e+00 : f32
    %179 = vector.broadcast %cst_110 : f32 to vector<56x32xf32>
    %180 = arith.addf %179, %178 : vector<56x32xf32>
    %181 = arith.divf %179, %180 : vector<56x32xf32>
    %182 = arith.mulf %176, %181 : vector<56x32xf32>
    %183 = vector.broadcast %9 : vector<56x1xf32> to vector<56x32xf32>
    %184 = arith.mulf %182, %183 : vector<56x32xf32>
    %185 = arith.truncf %184 : vector<56x32xf32> to vector<56x32xbf16>
    %cst_111 = arith.constant dense<0.000000e+00> : vector<8x32xf32>
    %186 = tpu.matmul %1, %185, %cst_111 {dimension_numbers = #tpu.dot_dimension_numbers<[0], [0], [1], [1], [0, 1, 1, 1], [], []>} : vector<56x8xbf16>, vector<56x32xbf16>, vector<8x32xf32> -> vector<8x32xf32>
    %187 = tpu.concatenate %145, %186 in 1 : vector<8x32xf32>, vector<8x32xf32> -> vector<8x64xf32>
    %c2_112 = arith.constant 2 : index
    %c0_113 = arith.constant 0 : index
    %c0_114 = arith.constant 0 : index
    %188 = vector.load %arg15[%c2_112, %c0_113, %c0_114] : memref<4x64x32xf32, #tpu.memory_space<vmem>>, vector<1x64x32xf32>
    %189 = vector.shape_cast %188 : vector<1x64x32xf32> to vector<64x32xf32>
    %cst_115 = arith.constant dense<0.000000e+00> : vector<8x32xf32>
    %190 = tpu.matmul %187, %189, %cst_115 {dimension_numbers = #tpu.dot_dimension_numbers<[1], [0], [0], [1], [0, 0, 1, 1], [], []>} : vector<8x64xf32>, vector<64x32xf32>, vector<8x32xf32> -> vector<8x32xf32>
    %c2_116 = arith.constant 2 : index
    %c0_117 = arith.constant 0 : index
    %c0_118 = arith.constant 0 : index
    %191 = vector.load %arg16[%c2_116, %c0_117, %c0_118] : memref<4x1x32xf32, #tpu.memory_space<vmem>>, vector<1x1x32xf32>
    %192 = vector.shape_cast %191 : vector<1x1x32xf32> to vector<1x32xf32>
    %193 = vector.broadcast %192 : vector<1x32xf32> to vector<8x32xf32>
    %194 = arith.addf %190, %193 : vector<8x32xf32>
    %195 = arith.negf %194 : vector<8x32xf32>
    %196 = math.exp %195 : vector<8x32xf32>
    %cst_119 = arith.constant 1.000000e+00 : f32
    %197 = vector.broadcast %cst_119 : f32 to vector<8x32xf32>
    %198 = arith.addf %197, %196 : vector<8x32xf32>
    %199 = arith.divf %197, %198 : vector<8x32xf32>
    %200 = arith.mulf %194, %199 : vector<8x32xf32>
    %c2_120 = arith.constant 2 : index
    %c0_121 = arith.constant 0 : index
    %c0_122 = arith.constant 0 : index
    %201 = vector.load %arg17[%c2_120, %c0_121, %c0_122] : memref<4x32x32xf32, #tpu.memory_space<vmem>>, vector<1x32x32xf32>
    %202 = vector.shape_cast %201 : vector<1x32x32xf32> to vector<32x32xf32>
    %cst_123 = arith.constant dense<0.000000e+00> : vector<8x32xf32>
    %203 = tpu.matmul %200, %202, %cst_123 {dimension_numbers = #tpu.dot_dimension_numbers<[1], [0], [0], [1], [0, 0, 1, 1], [], []>} : vector<8x32xf32>, vector<32x32xf32>, vector<8x32xf32> -> vector<8x32xf32>
    %204 = arith.addf %145, %203 : vector<8x32xf32>
    %c2_124 = arith.constant 2 : index
    %c0_125 = arith.constant 0 : index
    %c0_126 = arith.constant 0 : index
    %205 = vector.load %arg18[%c2_124, %c0_125, %c0_126] : memref<4x1x32xf32, #tpu.memory_space<vmem>>, vector<1x1x32xf32>
    %206 = vector.shape_cast %205 : vector<1x1x32xf32> to vector<1x32xf32>
    %207 = vector.broadcast %206 : vector<1x32xf32> to vector<8x32xf32>
    %208 = arith.addf %204, %207 : vector<8x32xf32>
    %209 = tpu.concatenate %208, %5 in 1 : vector<8x32xf32>, vector<8x3xf32> -> vector<8x35xf32>
    %210 = arith.truncf %209 : vector<8x35xf32> to vector<8x35xbf16>
    %cst_127 = arith.constant dense<0.000000e+00> : vector<56x35xf32>
    %211 = tpu.matmul %1, %210, %cst_127 {dimension_numbers = #tpu.dot_dimension_numbers<[1], [0], [0], [1], [0, 0, 1, 1], [], []>} : vector<56x8xbf16>, vector<8x35xbf16>, vector<56x35xf32> -> vector<56x35xf32>
    %cst_128 = arith.constant dense<0.000000e+00> : vector<56x35xf32>
    %212 = tpu.matmul %3, %210, %cst_128 {dimension_numbers = #tpu.dot_dimension_numbers<[1], [0], [0], [1], [0, 0, 1, 1], [], []>} : vector<56x8xbf16>, vector<8x35xbf16>, vector<56x35xf32> -> vector<56x35xf32>
    %213 = vector.extract_strided_slice %211 {offsets = [0, 32], sizes = [56, 3], strides = [1, 1]} : vector<56x35xf32> to vector<56x3xf32>
    %214 = vector.extract_strided_slice %212 {offsets = [0, 32], sizes = [56, 3], strides = [1, 1]} : vector<56x35xf32> to vector<56x3xf32>
    %215 = arith.subf %213, %214 : vector<56x3xf32>
    %216 = arith.mulf %215, %215 : vector<56x3xf32>
    %cst_129 = arith.constant dense<0.000000e+00> : vector<56xf32>
    %217 = vector.multi_reduction <add>, %216, %cst_129 [1] : vector<56x3xf32> to vector<56xf32>
    %218 = vector.shape_cast %217 : vector<56xf32> to vector<56x1xf32>
    %219 = tpu.concatenate %211, %212, %218, %7 in 1 : vector<56x35xf32>, vector<56x35xf32>, vector<56x1xf32>, vector<56x2xf32> -> vector<56x73xf32>
    %c3 = arith.constant 3 : index
    %c0_130 = arith.constant 0 : index
    %c0_131 = arith.constant 0 : index
    %220 = vector.load %arg11[%c3, %c0_130, %c0_131] : memref<4x73x32xf32, #tpu.memory_space<vmem>>, vector<1x73x32xf32>
    %221 = vector.shape_cast %220 : vector<1x73x32xf32> to vector<73x32xf32>
    %cst_132 = arith.constant dense<0.000000e+00> : vector<56x32xf32>
    %222 = tpu.matmul %219, %221, %cst_132 {dimension_numbers = #tpu.dot_dimension_numbers<[1], [0], [0], [1], [0, 0, 1, 1], [], []>} : vector<56x73xf32>, vector<73x32xf32>, vector<56x32xf32> -> vector<56x32xf32>
    %c3_133 = arith.constant 3 : index
    %c0_134 = arith.constant 0 : index
    %c0_135 = arith.constant 0 : index
    %223 = vector.load %arg12[%c3_133, %c0_134, %c0_135] : memref<4x1x32xf32, #tpu.memory_space<vmem>>, vector<1x1x32xf32>
    %224 = vector.shape_cast %223 : vector<1x1x32xf32> to vector<1x32xf32>
    %225 = vector.broadcast %224 : vector<1x32xf32> to vector<56x32xf32>
    %226 = arith.addf %222, %225 : vector<56x32xf32>
    %227 = arith.negf %226 : vector<56x32xf32>
    %228 = math.exp %227 : vector<56x32xf32>
    %cst_136 = arith.constant 1.000000e+00 : f32
    %229 = vector.broadcast %cst_136 : f32 to vector<56x32xf32>
    %230 = arith.addf %229, %228 : vector<56x32xf32>
    %231 = arith.divf %229, %230 : vector<56x32xf32>
    %232 = arith.mulf %226, %231 : vector<56x32xf32>
    %c3_137 = arith.constant 3 : index
    %c0_138 = arith.constant 0 : index
    %c0_139 = arith.constant 0 : index
    %233 = vector.load %arg13[%c3_137, %c0_138, %c0_139] : memref<4x32x32xf32, #tpu.memory_space<vmem>>, vector<1x32x32xf32>
    %234 = vector.shape_cast %233 : vector<1x32x32xf32> to vector<32x32xf32>
    %cst_140 = arith.constant dense<0.000000e+00> : vector<56x32xf32>
    %235 = tpu.matmul %232, %234, %cst_140 {dimension_numbers = #tpu.dot_dimension_numbers<[1], [0], [0], [1], [0, 0, 1, 1], [], []>} : vector<56x32xf32>, vector<32x32xf32>, vector<56x32xf32> -> vector<56x32xf32>
    %c3_141 = arith.constant 3 : index
    %c0_142 = arith.constant 0 : index
    %c0_143 = arith.constant 0 : index
    %236 = vector.load %arg14[%c3_141, %c0_142, %c0_143] : memref<4x1x32xf32, #tpu.memory_space<vmem>>, vector<1x1x32xf32>
    %237 = vector.shape_cast %236 : vector<1x1x32xf32> to vector<1x32xf32>
    %238 = vector.broadcast %237 : vector<1x32xf32> to vector<56x32xf32>
    %239 = arith.addf %235, %238 : vector<56x32xf32>
    %240 = arith.negf %239 : vector<56x32xf32>
    %241 = math.exp %240 : vector<56x32xf32>
    %cst_144 = arith.constant 1.000000e+00 : f32
    %242 = vector.broadcast %cst_144 : f32 to vector<56x32xf32>
    %243 = arith.addf %242, %241 : vector<56x32xf32>
    %244 = arith.divf %242, %243 : vector<56x32xf32>
    %245 = arith.mulf %239, %244 : vector<56x32xf32>
    %246 = vector.broadcast %9 : vector<56x1xf32> to vector<56x32xf32>
    %247 = arith.mulf %245, %246 : vector<56x32xf32>
    %248 = arith.truncf %247 : vector<56x32xf32> to vector<56x32xbf16>
    %cst_145 = arith.constant dense<0.000000e+00> : vector<8x32xf32>
    %249 = tpu.matmul %1, %248, %cst_145 {dimension_numbers = #tpu.dot_dimension_numbers<[0], [0], [1], [1], [0, 1, 1, 1], [], []>} : vector<56x8xbf16>, vector<56x32xbf16>, vector<8x32xf32> -> vector<8x32xf32>
    %c0_146 = arith.constant 0 : index
    %c0_147 = arith.constant 0 : index
    %250 = vector.load %arg19[%c0_146, %c0_147] : memref<32x32xf32, #tpu.memory_space<vmem>>, vector<32x32xf32>
    %cst_148 = arith.constant dense<0.000000e+00> : vector<56x32xf32>
    %251 = tpu.matmul %247, %250, %cst_148 {dimension_numbers = #tpu.dot_dimension_numbers<[1], [0], [0], [1], [0, 0, 1, 1], [], []>} : vector<56x32xf32>, vector<32x32xf32>, vector<56x32xf32> -> vector<56x32xf32>
    %c0_149 = arith.constant 0 : index
    %c0_150 = arith.constant 0 : index
    %252 = vector.load %arg20[%c0_149, %c0_150] : memref<1x32xf32, #tpu.memory_space<vmem>>, vector<1x32xf32>
    %253 = vector.broadcast %252 : vector<1x32xf32> to vector<56x32xf32>
    %254 = arith.addf %251, %253 : vector<56x32xf32>
    %255 = arith.negf %254 : vector<56x32xf32>
    %256 = math.exp %255 : vector<56x32xf32>
    %cst_151 = arith.constant 1.000000e+00 : f32
    %257 = vector.broadcast %cst_151 : f32 to vector<56x32xf32>
    %258 = arith.addf %257, %256 : vector<56x32xf32>
    %259 = arith.divf %257, %258 : vector<56x32xf32>
    %260 = arith.mulf %254, %259 : vector<56x32xf32>
    %c0_152 = arith.constant 0 : index
    %c0_153 = arith.constant 0 : index
    %261 = vector.load %arg21[%c0_152, %c0_153] : memref<32x1xf32, #tpu.memory_space<vmem>>, vector<32x1xf32>
    %cst_154 = arith.constant dense<0.000000e+00> : vector<56x1xf32>
    %262 = tpu.matmul %260, %261, %cst_154 {dimension_numbers = #tpu.dot_dimension_numbers<[1], [0], [0], [1], [0, 0, 1, 1], [], []>} : vector<56x32xf32>, vector<32x1xf32>, vector<56x1xf32> -> vector<56x1xf32>
    %263 = vector.broadcast %262 : vector<56x1xf32> to vector<56x3xf32>
    %264 = arith.mulf %215, %263 : vector<56x3xf32>
    %265 = arith.truncf %264 : vector<56x3xf32> to vector<56x3xbf16>
    %cst_155 = arith.constant dense<0.000000e+00> : vector<8x3xf32>
    %266 = tpu.matmul %1, %265, %cst_155 {dimension_numbers = #tpu.dot_dimension_numbers<[0], [0], [1], [1], [0, 1, 1, 1], [], []>} : vector<56x8xbf16>, vector<56x3xbf16>, vector<8x3xf32> -> vector<8x3xf32>
    %267 = vector.broadcast %12 : vector<8x1xf32> to vector<8x3xf32>
    %268 = arith.mulf %266, %267 : vector<8x3xf32>
    %269 = arith.addf %5, %268 : vector<8x3xf32>
    %270 = tpu.concatenate %208, %249 in 1 : vector<8x32xf32>, vector<8x32xf32> -> vector<8x64xf32>
    %c3_156 = arith.constant 3 : index
    %c0_157 = arith.constant 0 : index
    %c0_158 = arith.constant 0 : index
    %271 = vector.load %arg15[%c3_156, %c0_157, %c0_158] : memref<4x64x32xf32, #tpu.memory_space<vmem>>, vector<1x64x32xf32>
    %272 = vector.shape_cast %271 : vector<1x64x32xf32> to vector<64x32xf32>
    %cst_159 = arith.constant dense<0.000000e+00> : vector<8x32xf32>
    %273 = tpu.matmul %270, %272, %cst_159 {dimension_numbers = #tpu.dot_dimension_numbers<[1], [0], [0], [1], [0, 0, 1, 1], [], []>} : vector<8x64xf32>, vector<64x32xf32>, vector<8x32xf32> -> vector<8x32xf32>
    %c3_160 = arith.constant 3 : index
    %c0_161 = arith.constant 0 : index
    %c0_162 = arith.constant 0 : index
    %274 = vector.load %arg16[%c3_160, %c0_161, %c0_162] : memref<4x1x32xf32, #tpu.memory_space<vmem>>, vector<1x1x32xf32>
    %275 = vector.shape_cast %274 : vector<1x1x32xf32> to vector<1x32xf32>
    %276 = vector.broadcast %275 : vector<1x32xf32> to vector<8x32xf32>
    %277 = arith.addf %273, %276 : vector<8x32xf32>
    %278 = arith.negf %277 : vector<8x32xf32>
    %279 = math.exp %278 : vector<8x32xf32>
    %cst_163 = arith.constant 1.000000e+00 : f32
    %280 = vector.broadcast %cst_163 : f32 to vector<8x32xf32>
    %281 = arith.addf %280, %279 : vector<8x32xf32>
    %282 = arith.divf %280, %281 : vector<8x32xf32>
    %283 = arith.mulf %277, %282 : vector<8x32xf32>
    %c3_164 = arith.constant 3 : index
    %c0_165 = arith.constant 0 : index
    %c0_166 = arith.constant 0 : index
    %284 = vector.load %arg17[%c3_164, %c0_165, %c0_166] : memref<4x32x32xf32, #tpu.memory_space<vmem>>, vector<1x32x32xf32>
    %285 = vector.shape_cast %284 : vector<1x32x32xf32> to vector<32x32xf32>
    %cst_167 = arith.constant dense<0.000000e+00> : vector<8x32xf32>
    %286 = tpu.matmul %283, %285, %cst_167 {dimension_numbers = #tpu.dot_dimension_numbers<[1], [0], [0], [1], [0, 0, 1, 1], [], []>} : vector<8x32xf32>, vector<32x32xf32>, vector<8x32xf32> -> vector<8x32xf32>
    %287 = arith.addf %208, %286 : vector<8x32xf32>
    %c3_168 = arith.constant 3 : index
    %c0_169 = arith.constant 0 : index
    %c0_170 = arith.constant 0 : index
    %288 = vector.load %arg18[%c3_168, %c0_169, %c0_170] : memref<4x1x32xf32, #tpu.memory_space<vmem>>, vector<1x1x32xf32>
    %289 = vector.shape_cast %288 : vector<1x1x32xf32> to vector<1x32xf32>
    %290 = vector.broadcast %289 : vector<1x32xf32> to vector<8x32xf32>
    %291 = arith.addf %287, %290 : vector<8x32xf32>
    %c0_171 = arith.constant 0 : index
    %c0_172 = arith.constant 0 : index
    %292 = vector.load %arg22[%c0_171, %c0_172] : memref<32x32xf32, #tpu.memory_space<vmem>>, vector<32x32xf32>
    %cst_173 = arith.constant dense<0.000000e+00> : vector<8x32xf32>
    %293 = tpu.matmul %291, %292, %cst_173 {dimension_numbers = #tpu.dot_dimension_numbers<[1], [0], [0], [1], [0, 0, 1, 1], [], []>} : vector<8x32xf32>, vector<32x32xf32>, vector<8x32xf32> -> vector<8x32xf32>
    %c0_174 = arith.constant 0 : index
    %c0_175 = arith.constant 0 : index
    %294 = vector.load %arg23[%c0_174, %c0_175] : memref<1x32xf32, #tpu.memory_space<vmem>>, vector<1x32xf32>
    %295 = vector.broadcast %294 : vector<1x32xf32> to vector<8x32xf32>
    %296 = arith.addf %293, %295 : vector<8x32xf32>
    %297 = arith.negf %296 : vector<8x32xf32>
    %298 = math.exp %297 : vector<8x32xf32>
    %cst_176 = arith.constant 1.000000e+00 : f32
    %299 = vector.broadcast %cst_176 : f32 to vector<8x32xf32>
    %300 = arith.addf %299, %298 : vector<8x32xf32>
    %301 = arith.divf %299, %300 : vector<8x32xf32>
    %302 = arith.mulf %296, %301 : vector<8x32xf32>
    %c0_177 = arith.constant 0 : index
    %c0_178 = arith.constant 0 : index
    %303 = vector.load %arg24[%c0_177, %c0_178] : memref<32x32xf32, #tpu.memory_space<vmem>>, vector<32x32xf32>
    %cst_179 = arith.constant dense<0.000000e+00> : vector<8x32xf32>
    %304 = tpu.matmul %302, %303, %cst_179 {dimension_numbers = #tpu.dot_dimension_numbers<[1], [0], [0], [1], [0, 0, 1, 1], [], []>} : vector<8x32xf32>, vector<32x32xf32>, vector<8x32xf32> -> vector<8x32xf32>
    %c0_180 = arith.constant 0 : index
    %c0_181 = arith.constant 0 : index
    %305 = vector.load %arg25[%c0_180, %c0_181] : memref<1x32xf32, #tpu.memory_space<vmem>>, vector<1x32xf32>
    %306 = vector.broadcast %305 : vector<1x32xf32> to vector<8x32xf32>
    %307 = arith.addf %304, %306 : vector<8x32xf32>
    %c0_182 = arith.constant 0 : index
    %c0_183 = arith.constant 0 : index
    %c0_184 = arith.constant 0 : index
    %308 = vector.load %arg7[%c0_182, %c0_183, %c0_184] : memref<1x8x1xf32, #tpu.memory_space<vmem>>, vector<1x8x1xf32>
    %309 = vector.shape_cast %308 : vector<1x8x1xf32> to vector<8x1xf32>
    %310 = vector.broadcast %309 : vector<8x1xf32> to vector<8x32xf32>
    %311 = arith.mulf %307, %310 : vector<8x32xf32>
    %cst_185 = arith.constant dense<0.000000e+00> : vector<32xf32>
    %312 = vector.multi_reduction <add>, %311, %cst_185 [0] : vector<8x32xf32> to vector<32xf32>
    %313 = vector.shape_cast %312 : vector<32xf32> to vector<1x32xf32>
    %c0_186 = arith.constant 0 : index
    %c0_187 = arith.constant 0 : index
    %314 = vector.load %arg26[%c0_186, %c0_187] : memref<32x32xf32, #tpu.memory_space<vmem>>, vector<32x32xf32>
    %cst_188 = arith.constant dense<0.000000e+00> : vector<1x32xf32>
    %315 = tpu.matmul %313, %314, %cst_188 {dimension_numbers = #tpu.dot_dimension_numbers<[1], [0], [0], [1], [0, 0, 1, 1], [], []>} : vector<1x32xf32>, vector<32x32xf32>, vector<1x32xf32> -> vector<1x32xf32>
    %c0_189 = arith.constant 0 : index
    %c0_190 = arith.constant 0 : index
    %316 = vector.load %arg27[%c0_189, %c0_190] : memref<1x32xf32, #tpu.memory_space<vmem>>, vector<1x32xf32>
    %317 = arith.addf %315, %316 : vector<1x32xf32>
    %318 = arith.negf %317 : vector<1x32xf32>
    %319 = math.exp %318 : vector<1x32xf32>
    %cst_191 = arith.constant 1.000000e+00 : f32
    %320 = vector.broadcast %cst_191 : f32 to vector<1x32xf32>
    %321 = arith.addf %320, %319 : vector<1x32xf32>
    %322 = arith.divf %320, %321 : vector<1x32xf32>
    %323 = arith.mulf %317, %322 : vector<1x32xf32>
    %c0_192 = arith.constant 0 : index
    %c0_193 = arith.constant 0 : index
    %324 = vector.load %arg28[%c0_192, %c0_193] : memref<32x1xf32, #tpu.memory_space<vmem>>, vector<32x1xf32>
    %cst_194 = arith.constant dense<0.000000e+00> : vector<1x1xf32>
    %325 = tpu.matmul %323, %324, %cst_194 {dimension_numbers = #tpu.dot_dimension_numbers<[1], [0], [0], [1], [0, 0, 1, 1], [], []>} : vector<1x32xf32>, vector<32x1xf32>, vector<1x1xf32> -> vector<1x1xf32>
    %c0_195 = arith.constant 0 : index
    %c0_196 = arith.constant 0 : index
    %326 = vector.load %arg29[%c0_195, %c0_196] : memref<1x1xf32, #tpu.memory_space<vmem>>, vector<1x1xf32>
    %327 = arith.addf %325, %326 : vector<1x1xf32>
    %c0_197 = arith.constant 0 : index
    %c0_198 = arith.constant 0 : index
    %c0_199 = arith.constant 0 : index
    %328 = vector.load %arg30[%c0_197, %c0_198, %c0_199] : memref<1x1x1xf32, #tpu.memory_space<vmem>>, vector<1x1x1xf32>
    %329 = vector.shape_cast %328 : vector<1x1x1xf32> to vector<1x1xf32>
    %330 = vector.shape_cast %327 : vector<1x1xf32> to vector<1x1x1xf32>
    tpu.vector_store %arg30[%c0_197, %c0_198, %c0_199], %330 {strides = array<i32>} : memref<1x1x1xf32, #tpu.memory_space<vmem>>, vector<1x1x1xf32>,
    %c0_200 = arith.constant 0 : index
    %c0_201 = arith.constant 0 : index
    %c0_202 = arith.constant 0 : index
    %331 = vector.load %arg31[%c0_200, %c0_201, %c0_202] : memref<1x8x3xf32, #tpu.memory_space<vmem>>, vector<1x8x3xf32>
    %332 = vector.shape_cast %331 : vector<1x8x3xf32> to vector<8x3xf32>
    %333 = vector.shape_cast %269 : vector<8x3xf32> to vector<1x8x3xf32>
    tpu.vector_store %arg31[%c0_200, %c0_201, %c0_202], %333 {strides = array<i32>} : memref<1x8x3xf32, #tpu.memory_space<vmem>>, vector<1x8x3xf32>,
    return
  }
  func.func @transform_0(%arg0: i32) -> (i32, i32, i32) {
    %c0_i32 = arith.constant 0 : i32
    %c0_i32_0 = arith.constant 0 : i32
    %c0_i32_1 = arith.constant 0 : i32
    return %arg0, %c0_i32, %c0_i32_0 : i32, i32, i32
  }
  func.func @transform_1(%arg0: i32) -> (i32, i32, i32) {
    %c0_i32 = arith.constant 0 : i32
    %c0_i32_0 = arith.constant 0 : i32
    %c0_i32_1 = arith.constant 0 : i32
    return %arg0, %c0_i32, %c0_i32_0 : i32, i32, i32
  }
  func.func @transform_2(%arg0: i32) -> (i32, i32, i32) {
    %c0_i32 = arith.constant 0 : i32
    %c0_i32_0 = arith.constant 0 : i32
    %c0_i32_1 = arith.constant 0 : i32
    return %arg0, %c0_i32, %c0_i32_0 : i32, i32, i32
  }
  func.func @transform_3(%arg0: i32) -> (i32, i32, i32) {
    %c0_i32 = arith.constant 0 : i32
    %c0_i32_0 = arith.constant 0 : i32
    %c0_i32_1 = arith.constant 0 : i32
    return %arg0, %c0_i32, %c0_i32_0 : i32, i32, i32
  }
  func.func @transform_4(%arg0: i32) -> (i32, i32, i32) {
    %c0_i32 = arith.constant 0 : i32
    %c0_i32_0 = arith.constant 0 : i32
    %c0_i32_1 = arith.constant 0 : i32
    return %arg0, %c0_i32, %c0_i32_0 : i32, i32, i32
  }
  func.func @transform_5(%arg0: i32) -> (i32, i32, i32) {
    %c0_i32 = arith.constant 0 : i32
    %c0_i32_0 = arith.constant 0 : i32
    %c0_i32_1 = arith.constant 0 : i32
    return %arg0, %c0_i32, %c0_i32_0 : i32, i32, i32
  }
  func.func @transform_6(%arg0: i32) -> (i32, i32, i32) {
    %c0_i32 = arith.constant 0 : i32
    %c0_i32_0 = arith.constant 0 : i32
    %c0_i32_1 = arith.constant 0 : i32
    return %arg0, %c0_i32, %c0_i32_0 : i32, i32, i32
  }
  func.func @transform_7(%arg0: i32) -> (i32, i32, i32) {
    %c0_i32 = arith.constant 0 : i32
    %c0_i32_0 = arith.constant 0 : i32
    %c0_i32_1 = arith.constant 0 : i32
    return %arg0, %c0_i32, %c0_i32_0 : i32, i32, i32
  }
  func.func @transform_8(%arg0: i32) -> (i32, i32) {
    %c0_i32 = arith.constant 0 : i32
    %c0_i32_0 = arith.constant 0 : i32
    %c0_i32_1 = arith.constant 0 : i32
    return %c0_i32, %c0_i32_0 : i32, i32
  }
  func.func @transform_9(%arg0: i32) -> (i32, i32) {
    %c0_i32 = arith.constant 0 : i32
    %c0_i32_0 = arith.constant 0 : i32
    %c0_i32_1 = arith.constant 0 : i32
    return %c0_i32, %c0_i32_0 : i32, i32
  }
  func.func @transform_10(%arg0: i32) -> (i32, i32, i32) {
    %c0_i32 = arith.constant 0 : i32
    %c0_i32_0 = arith.constant 0 : i32
    %c0_i32_1 = arith.constant 0 : i32
    %c0_i32_2 = arith.constant 0 : i32
    return %c0_i32, %c0_i32_0, %c0_i32_1 : i32, i32, i32
  }
  func.func @transform_11(%arg0: i32) -> (i32, i32, i32) {
    %c0_i32 = arith.constant 0 : i32
    %c0_i32_0 = arith.constant 0 : i32
    %c0_i32_1 = arith.constant 0 : i32
    %c0_i32_2 = arith.constant 0 : i32
    return %c0_i32, %c0_i32_0, %c0_i32_1 : i32, i32, i32
  }
  func.func @transform_12(%arg0: i32) -> (i32, i32, i32) {
    %c0_i32 = arith.constant 0 : i32
    %c0_i32_0 = arith.constant 0 : i32
    %c0_i32_1 = arith.constant 0 : i32
    %c0_i32_2 = arith.constant 0 : i32
    return %c0_i32, %c0_i32_0, %c0_i32_1 : i32, i32, i32
  }
  func.func @transform_13(%arg0: i32) -> (i32, i32, i32) {
    %c0_i32 = arith.constant 0 : i32
    %c0_i32_0 = arith.constant 0 : i32
    %c0_i32_1 = arith.constant 0 : i32
    %c0_i32_2 = arith.constant 0 : i32
    return %c0_i32, %c0_i32_0, %c0_i32_1 : i32, i32, i32
  }
  func.func @transform_14(%arg0: i32) -> (i32, i32, i32) {
    %c0_i32 = arith.constant 0 : i32
    %c0_i32_0 = arith.constant 0 : i32
    %c0_i32_1 = arith.constant 0 : i32
    %c0_i32_2 = arith.constant 0 : i32
    return %c0_i32, %c0_i32_0, %c0_i32_1 : i32, i32, i32
  }
  func.func @transform_15(%arg0: i32) -> (i32, i32, i32) {
    %c0_i32 = arith.constant 0 : i32
    %c0_i32_0 = arith.constant 0 : i32
    %c0_i32_1 = arith.constant 0 : i32
    %c0_i32_2 = arith.constant 0 : i32
    return %c0_i32, %c0_i32_0, %c0_i32_1 : i32, i32, i32
  }
  func.func @transform_16(%arg0: i32) -> (i32, i32, i32) {
    %c0_i32 = arith.constant 0 : i32
    %c0_i32_0 = arith.constant 0 : i32
    %c0_i32_1 = arith.constant 0 : i32
    %c0_i32_2 = arith.constant 0 : i32
    return %c0_i32, %c0_i32_0, %c0_i32_1 : i32, i32, i32
  }
  func.func @transform_17(%arg0: i32) -> (i32, i32, i32) {
    %c0_i32 = arith.constant 0 : i32
    %c0_i32_0 = arith.constant 0 : i32
    %c0_i32_1 = arith.constant 0 : i32
    %c0_i32_2 = arith.constant 0 : i32
    return %c0_i32, %c0_i32_0, %c0_i32_1 : i32, i32, i32
  }
  func.func @transform_18(%arg0: i32) -> (i32, i32) {
    %c0_i32 = arith.constant 0 : i32
    %c0_i32_0 = arith.constant 0 : i32
    %c0_i32_1 = arith.constant 0 : i32
    return %c0_i32, %c0_i32_0 : i32, i32
  }
  func.func @transform_19(%arg0: i32) -> (i32, i32) {
    %c0_i32 = arith.constant 0 : i32
    %c0_i32_0 = arith.constant 0 : i32
    %c0_i32_1 = arith.constant 0 : i32
    return %c0_i32, %c0_i32_0 : i32, i32
  }
  func.func @transform_20(%arg0: i32) -> (i32, i32) {
    %c0_i32 = arith.constant 0 : i32
    %c0_i32_0 = arith.constant 0 : i32
    %c0_i32_1 = arith.constant 0 : i32
    return %c0_i32, %c0_i32_0 : i32, i32
  }
  func.func @transform_21(%arg0: i32) -> (i32, i32) {
    %c0_i32 = arith.constant 0 : i32
    %c0_i32_0 = arith.constant 0 : i32
    %c0_i32_1 = arith.constant 0 : i32
    return %c0_i32, %c0_i32_0 : i32, i32
  }
  func.func @transform_22(%arg0: i32) -> (i32, i32) {
    %c0_i32 = arith.constant 0 : i32
    %c0_i32_0 = arith.constant 0 : i32
    %c0_i32_1 = arith.constant 0 : i32
    return %c0_i32, %c0_i32_0 : i32, i32
  }
  func.func @transform_23(%arg0: i32) -> (i32, i32) {
    %c0_i32 = arith.constant 0 : i32
    %c0_i32_0 = arith.constant 0 : i32
    %c0_i32_1 = arith.constant 0 : i32
    return %c0_i32, %c0_i32_0 : i32, i32
  }
  func.func @transform_24(%arg0: i32) -> (i32, i32) {
    %c0_i32 = arith.constant 0 : i32
    %c0_i32_0 = arith.constant 0 : i32
    %c0_i32_1 = arith.constant 0 : i32
    return %c0_i32, %c0_i32_0 : i32, i32
  }
  func.func @transform_25(%arg0: i32) -> (i32, i32) {
    %c0_i32 = arith.constant 0 : i32
    %c0_i32_0 = arith.constant 0 : i32
    %c0_i32_1 = arith.constant 0 : i32
    return %c0_i32, %c0_i32_0 : i32, i32
  }
  func.func @transform_26(%arg0: i32) -> (i32, i32) {
    %c0_i32 = arith.constant 0 : i32
    %c0_i32_0 = arith.constant 0 : i32
    %c0_i32_1 = arith.constant 0 : i32
    return %c0_i32, %c0_i32_0 : i32, i32
  }
  func.func @transform_27(%arg0: i32) -> (i32, i32) {
    %c0_i32 = arith.constant 0 : i32
    %c0_i32_0 = arith.constant 0 : i32
    %c0_i32_1 = arith.constant 0 : i32
    return %c0_i32, %c0_i32_0 : i32, i32
  }
  func.func @transform_28(%arg0: i32) -> (i32, i32) {
    %c0_i32 = arith.constant 0 : i32
    %c0_i32_0 = arith.constant 0 : i32
    %c0_i32_1 = arith.constant 0 : i32
    return %c0_i32, %c0_i32_0 : i32, i32
  }
  func.func @transform_29(%arg0: i32) -> (i32, i32, i32) {
    %c0_i32 = arith.constant 0 : i32
    %c0_i32_0 = arith.constant 0 : i32
    %c0_i32_1 = arith.constant 0 : i32
    return %arg0, %c0_i32, %c0_i32_0 : i32, i32, i32
  }
  func.func @transform_30(%arg0: i32) -> (i32, i32, i32) {
    %c0_i32 = arith.constant 0 : i32
    %c0_i32_0 = arith.constant 0 : i32
    %c0_i32_1 = arith.constant 0 : i32
    return %arg0, %c0_i32, %c0_i32_0 : i32, i32, i32
  }
}

</mosaic_0001>

<llo_original>
// kernel: tpu_custom_call.1
$region0: #{tpu_custom_call.1}
  #allocation0 [shape = 'u32[]', space=smem, size = 0x4, offset = 0x4, fixed_abs, tag = 'smem constant byte address 0x4 - core index']
  #allocation1 [shape = 'u32[144,128]{1,0:T(1,128)}', space=vmem, size = 0x12000, scoped, tag = 'internal scratch']
  #allocation2 [shape = 'f32[1,1]{1,0:T(1,128)S(1)}', space=vmem, size = 0x200, scoped, tag = 'scoped memory for tpu_custom_call.1']
  %s0 = inlined_call_operand.smem [shape: u32[31], index: -1, kind: input, shape index: {}]
  %s1 = sld [smem:[%s0]]
  %s2 = scalar_lea.smem %s0, 1
  %s3 = sld [smem:[%s2]]
  %s4 = scalar_lea.smem %s0, 2
  %s5 = sld [smem:[%s4]]
  %s6 = scalar_lea.smem %s0, 3
  %s7 = sld [smem:[%s6]]
  %s8 = scalar_lea.smem %s0, 4
  %s9 = sld [smem:[%s8]]
  %s10 = scalar_lea.smem %s0, 5
  %s11 = sld [smem:[%s10]]
  %s12 = scalar_lea.smem %s0, 6
  %s13 = sld [smem:[%s12]]
  %s14 = scalar_lea.smem %s0, 7
  %s15 = sld [smem:[%s14]]
  %s16 = scalar_lea.smem %s0, 8
  %s17 = sld [smem:[%s16]]
  %s18 = scalar_lea.smem %s0, 9
  %s19 = sld [smem:[%s18]]
  %s20 = scalar_lea.smem %s0, 10
  %s21 = sld [smem:[%s20]]
  %s22 = scalar_lea.smem %s0, 11
  %s23 = sld [smem:[%s22]]
  %s24 = scalar_lea.smem %s0, 12
  %s25 = sld [smem:[%s24]]
  %s26 = scalar_lea.smem %s0, 13
  %s27 = sld [smem:[%s26]]
  %s28 = scalar_lea.smem %s0, 14
  %s29 = sld [smem:[%s28]]
  %s30 = scalar_lea.smem %s0, 15
  %s31 = sld [smem:[%s30]]
  %s32 = scalar_lea.smem %s0, 16
  %s33 = sld [smem:[%s32]]
  %s34 = scalar_lea.smem %s0, 17
  %s35 = sld [smem:[%s34]]
  %s36 = scalar_lea.smem %s0, 18
  %s37 = sld [smem:[%s36]]
  %s38 = scalar_lea.smem %s0, 19
  %s39 = sld [smem:[%s38]]
  %s40 = scalar_lea.smem %s0, 20
  %s41 = sld [smem:[%s40]]
  %s42 = scalar_lea.smem %s0, 21
  %s43 = sld [smem:[%s42]]
  %s44 = scalar_lea.smem %s0, 22
  %s45 = sld [smem:[%s44]]
  %s46 = scalar_lea.smem %s0, 23
  %s47 = sld [smem:[%s46]]
  %s48 = scalar_lea.smem %s0, 24
  %s49 = sld [smem:[%s48]]
  %s50 = scalar_lea.smem %s0, 25
  %s51 = sld [smem:[%s50]]
  %s52 = scalar_lea.smem %s0, 26
  %s53 = sld [smem:[%s52]]
  %s54 = scalar_lea.smem %s0, 27
  %s55 = sld [smem:[%s54]]
  %s56 = scalar_lea.smem %s0, 28
  %s57 = sld [smem:[%s56]]
  %s58 = scalar_lea.smem %s0, 29
  %s59 = sld [smem:[%s58]]
  %s60 = scalar_lea.smem %s0, 30
  %s61 = sld [smem:[%s60]]
  %62 = xla_tuple %s59, %s61
  %s63 = sld [smem:[#allocation0]]
  $region157: #{tpu_custom_call.1} parent=0
    _
  %s65 = ssub.s32 1, %s63
  %s66 = scalar_select 0, %s65, %s63
  %v67 = vstv %s57
  %68 = vst [vmem:[#allocation2] sm:$0x1] %v67
  loop: start=0, step=1, limit=4
  $region2: #{tpu_custom_call.1} parent=0 // loop_pre_header
    _
  $region3: #{tpu_custom_call.1} parent=0 // loop_header
    %s70 = sphi 0, %s74
    %p71 = scmp.ge.s32.totalorder %s70, 4
    %s80 = sphi 0, %s82
    %s83 = sphi 0, %s80
    %s84 = sphi 0, %s83
    %s100 = sphi 0, %s84
    %s106 = sphi 0, %s108
    %s109 = sphi 0, %s106
    %s110 = sphi 0, %s109
    %s126 = sphi 0, %s110
    %s132 = sphi 0, %s134
    %s135 = sphi 0, %s132
    %s136 = sphi 0, %s135
    %s152 = sphi 0, %s136
    %s158 = sphi 0, %s160
    %s161 = sphi 0, %s158
    %s162 = sphi 0, %s161
    %s178 = sphi 0, %s162
    %s184 = sphi 0, %s186
    %s187 = sphi 0, %s184
    %s188 = sphi 0, %s187
    %s204 = sphi 0, %s188
    %s210 = sphi 0, %s212
    %s213 = sphi 0, %s210
    %s214 = sphi 0, %s213
    %s230 = sphi 0, %s214
    %s236 = sphi 0, %s238
    %s239 = sphi 0, %s236
    %s240 = sphi 0, %s239
    %s256 = sphi 0, %s240
    %s262 = sphi 0, %s264
    %s265 = sphi 0, %s262
    %s266 = sphi 0, %s265
    %s282 = sphi 0, %s266
    %s286 = sphi 0, %s286
    %s288 = sphi 0, %s286
    %s289 = sphi 0, %s288
    %s303 = sphi 0, %s289
    %s307 = sphi 0, %s307
    %s309 = sphi 0, %s307
    %s310 = sphi 0, %s309
    %s324 = sphi 0, %s310
    %s328 = sphi 0, %s328
    %s330 = sphi 0, %s328
    %s331 = sphi 0, %s330
    %s345 = sphi 0, %s331
    %s349 = sphi 0, %s349
    %s351 = sphi 0, %s349
    %s352 = sphi 0, %s351
    %s366 = sphi 0, %s352
    %s370 = sphi 0, %s370
    %s372 = sphi 0, %s370
    %s373 = sphi 0, %s372
    %s387 = sphi 0, %s373
    %s391 = sphi 0, %s391
    %s393 = sphi 0, %s391
    %s394 = sphi 0, %s393
    %s408 = sphi 0, %s394
    %s412 = sphi 0, %s412
    %s414 = sphi 0, %s412
    %s415 = sphi 0, %s414
    %s429 = sphi 0, %s415
    %s433 = sphi 0, %s433
    %s435 = sphi 0, %s433
    %s436 = sphi 0, %s435
    %s450 = sphi 0, %s436
    %s454 = sphi 0, %s454
    %s456 = sphi 0, %s454
    %s457 = sphi 0, %s456
    %s471 = sphi 0, %s457
    %s475 = sphi 0, %s475
    %s477 = sphi 0, %s475
    %s478 = sphi 0, %s477
    %s492 = sphi 0, %s478
    %s496 = sphi 0, %s496
    %s498 = sphi 0, %s496
    %s499 = sphi 0, %s498
    %s513 = sphi 0, %s499
    %s517 = sphi 0, %s517
    %s519 = sphi 0, %s517
    %s520 = sphi 0, %s519
    %s534 = sphi 0, %s520
    %s538 = sphi 0, %s538
    %s540 = sphi 0, %s538
    %s541 = sphi 0, %s540
    %s555 = sphi 0, %s541
    %s559 = sphi 0, %s559
    %s561 = sphi 0, %s559
    %s562 = sphi 0, %s561
    %s576 = sphi 0, %s562
    %s580 = sphi 0, %s580
    %s582 = sphi 0, %s580
    %s583 = sphi 0, %s582
    %s597 = sphi 0, %s583
    %s601 = sphi 0, %s601
    %s603 = sphi 0, %s601
    %s604 = sphi 0, %s603
    %s618 = sphi 0, %s604
    %s622 = sphi 0, %s622
    %s624 = sphi 0, %s622
    %s625 = sphi 0, %s624
    %s639 = sphi 0, %s625
    %s643 = sphi 0, %s643
    %s645 = sphi 0, %s643
    %s646 = sphi 0, %s645
    %s660 = sphi 0, %s646
    %s664 = sphi 0, %s664
    %s666 = sphi 0, %s664
    %s667 = sphi 0, %s666
    %s681 = sphi 0, %s667
    %s685 = sphi 0, %s685
    %s687 = sphi 0, %s685
    %s688 = sphi 0, %s687
    %s702 = sphi 0, %s688
    %s706 = sphi 0, %s706
    %s708 = sphi 0, %s706
    %s709 = sphi 0, %s708
    %s723 = sphi 0, %s709
    %s729 = sphi 0, %s731
    %s732 = sphi 0, %s729
    %s733 = sphi 0, %s732
    %s749 = sphi 0, %s733
    %s755 = sphi 0, %s757
    %s758 = sphi 0, %s755
    %s759 = sphi 0, %s758
    %s775 = sphi 0, %s759
  $region4: #{tpu_custom_call.1} parent=0 // loop_header_branch
    %73 = sbr.rel (%p71) target = $region8
  $region5: #{tpu_custom_call.1} parent=0 // loop_body
    %s75 = ssub.s32 %s70, 1
    %s76 = ssub.s32 %s70, 2
    %s77 = sadd.s32 %s70, 1
    %s78 = ssub.s32 %s70, %s77
    %p79 = scmp.eq.s32.totalorder %s78, 0
    %s81 = sadd.s32 %s80, 1
    %s82 = scalar_select %p79, %s80, %s81
    %p85 = pneg %p79
    %p86 = scmp.eq.s32.totalorder %s70, 1
    %p87 = por %p85, %p86
    %p88 = scmp.ne.s32.totalorder %s80, %s83
    %p89 = scmp.eq.s32.totalorder %s70, 0
    %p90 = por %p88, %p89
    %p91 = scmp.ne.s32.totalorder %s80, %s83
    %p92 = scmp.eq.s32.totalorder %s75, 1
    %p93 = por %p91, %p92
    %p94 = scmp.ne.s32.totalorder %s83, %s84
    %p95 = scmp.eq.s32.totalorder %s75, 0
    %p96 = por %p94, %p95
    %p97 = scmp.ne.s32.totalorder %s83, %s84
    %p98 = scmp.eq.s32.totalorder %s76, 1
    %p99 = por %p97, %p98
    %p101 = scmp.ne.s32.totalorder %s84, %s100
    %p102 = scmp.eq.s32.totalorder %s76, 0
    %p103 = por %p101, %p102
    %s104 = ssub.s32 %s70, %s77
    %p105 = scmp.eq.s32.totalorder %s104, 0
    %s107 = sadd.s32 %s106, 1
    %s108 = scalar_select %p105, %s106, %s107
    %p111 = pneg %p105
    %p112 = scmp.eq.s32.totalorder %s70, 1
    %p113 = por %p111, %p112
    %p114 = scmp.ne.s32.totalorder %s106, %s109
    %p115 = scmp.eq.s32.totalorder %s70, 0
    %p116 = por %p114, %p115
    %p117 = scmp.ne.s32.totalorder %s106, %s109
    %p118 = scmp.eq.s32.totalorder %s75, 1
    %p119 = por %p117, %p118
    %p120 = scmp.ne.s32.totalorder %s109, %s110
    %p121 = scmp.eq.s32.totalorder %s75, 0
    %p122 = por %p120, %p121
    %p123 = scmp.ne.s32.totalorder %s109, %s110
    %p124 = scmp.eq.s32.totalorder %s76, 1
    %p125 = por %p123, %p124
    %p127 = scmp.ne.s32.totalorder %s110, %s126
    %p128 = scmp.eq.s32.totalorder %s76, 0
    %p129 = por %p127, %p128
    %s130 = ssub.s32 %s70, %s77
    %p131 = scmp.eq.s32.totalorder %s130, 0
    %s133 = sadd.s32 %s132, 1
    %s134 = scalar_select %p131, %s132, %s133
    %p137 = pneg %p131
    %p138 = scmp.eq.s32.totalorder %s70, 1
    %p139 = por %p137, %p138
    %p140 = scmp.ne.s32.totalorder %s132, %s135
    %p141 = scmp.eq.s32.totalorder %s70, 0
    %p142 = por %p140, %p141
    %p143 = scmp.ne.s32.totalorder %s132, %s135
    %p144 = scmp.eq.s32.totalorder %s75, 1
    %p145 = por %p143, %p144
    %p146 = scmp.ne.s32.totalorder %s135, %s136
    %p147 = scmp.eq.s32.totalorder %s75, 0
    %p148 = por %p146, %p147
    %p149 = scmp.ne.s32.totalorder %s135, %s136
    %p150 = scmp.eq.s32.totalorder %s76, 1
    %p151 = por %p149, %p150
    %p153 = scmp.ne.s32.totalorder %s136, %s152
    %p154 = scmp.eq.s32.totalorder %s76, 0
    %p155 = por %p153, %p154
    %s156 = ssub.s32 %s70, %s77
    %p157 = scmp.eq.s32.totalorder %s156, 0
    %s159 = sadd.s32 %s158, 1
    %s160 = scalar_select %p157, %s158, %s159
    %p163 = pneg %p157
    %p164 = scmp.eq.s32.totalorder %s70, 1
    %p165 = por %p163, %p164
    %p166 = scmp.ne.s32.totalorder %s158, %s161
    %p167 = scmp.eq.s32.totalorder %s70, 0
    %p168 = por %p166, %p167
    %p169 = scmp.ne.s32.totalorder %s158, %s161
    %p170 = scmp.eq.s32.totalorder %s75, 1
    %p171 = por %p169, %p170
    %p172 = scmp.ne.s32.totalorder %s161, %s162
    %p173 = scmp.eq.s32.totalorder %s75, 0
    %p174 = por %p172, %p173
    %p175 = scmp.ne.s32.totalorder %s161, %s162
    %p176 = scmp.eq.s32.totalorder %s76, 1
    %p177 = por %p175, %p176
    %p179 = scmp.ne.s32.totalorder %s162, %s178
    %p180 = scmp.eq.s32.totalorder %s76, 0
    %p181 = por %p179, %p180
    %s182 = ssub.s32 %s70, %s77
    %p183 = scmp.eq.s32.totalorder %s182, 0
    %s185 = sadd.s32 %s184, 1
    %s186 = scalar_select %p183, %s184, %s185
    %p189 = pneg %p183
    %p190 = scmp.eq.s32.totalorder %s70, 1
    %p191 = por %p189, %p190
    %p192 = scmp.ne.s32.totalorder %s184, %s187
    %p193 = scmp.eq.s32.totalorder %s70, 0
    %p194 = por %p192, %p193
    %p195 = scmp.ne.s32.totalorder %s184, %s187
    %p196 = scmp.eq.s32.totalorder %s75, 1
    %p197 = por %p195, %p196
    %p198 = scmp.ne.s32.totalorder %s187, %s188
    %p199 = scmp.eq.s32.totalorder %s75, 0
    %p200 = por %p198, %p199
    %p201 = scmp.ne.s32.totalorder %s187, %s188
    %p202 = scmp.eq.s32.totalorder %s76, 1
    %p203 = por %p201, %p202
    %p205 = scmp.ne.s32.totalorder %s188, %s204
    %p206 = scmp.eq.s32.totalorder %s76, 0
    %p207 = por %p205, %p206
    %s208 = ssub.s32 %s70, %s77
    %p209 = scmp.eq.s32.totalorder %s208, 0
    %s211 = sadd.s32 %s210, 1
    %s212 = scalar_select %p209, %s210, %s211
    %p215 = pneg %p209
    %p216 = scmp.eq.s32.totalorder %s70, 1
    %p217 = por %p215, %p216
    %p218 = scmp.ne.s32.totalorder %s210, %s213
    %p219 = scmp.eq.s32.totalorder %s70, 0
    %p220 = por %p218, %p219
    %p221 = scmp.ne.s32.totalorder %s210, %s213
    %p222 = scmp.eq.s32.totalorder %s75, 1
    %p223 = por %p221, %p222
    %p224 = scmp.ne.s32.totalorder %s213, %s214
    %p225 = scmp.eq.s32.totalorder %s75, 0
    %p226 = por %p224, %p225
    %p227 = scmp.ne.s32.totalorder %s213, %s214
    %p228 = scmp.eq.s32.totalorder %s76, 1
    %p229 = por %p227, %p228
    %p231 = scmp.ne.s32.totalorder %s214, %s230
    %p232 = scmp.eq.s32.totalorder %s76, 0
    %p233 = por %p231, %p232
    %s234 = ssub.s32 %s70, %s77
    %p235 = scmp.eq.s32.totalorder %s234, 0
    %s237 = sadd.s32 %s236, 1
    %s238 = scalar_select %p235, %s236, %s237
    %p241 = pneg %p235
    %p242 = scmp.eq.s32.totalorder %s70, 1
    %p243 = por %p241, %p242
    %p244 = scmp.ne.s32.totalorder %s236, %s239
    %p245 = scmp.eq.s32.totalorder %s70, 0
    %p246 = por %p244, %p245
    %p247 = scmp.ne.s32.totalorder %s236, %s239
    %p248 = scmp.eq.s32.totalorder %s75, 1
    %p249 = por %p247, %p248
    %p250 = scmp.ne.s32.totalorder %s239, %s240
    %p251 = scmp.eq.s32.totalorder %s75, 0
    %p252 = por %p250, %p251
    %p253 = scmp.ne.s32.totalorder %s239, %s240
    %p254 = scmp.eq.s32.totalorder %s76, 1
    %p255 = por %p253, %p254
    %p257 = scmp.ne.s32.totalorder %s240, %s256
    %p258 = scmp.eq.s32.totalorder %s76, 0
    %p259 = por %p257, %p258
    %s260 = ssub.s32 %s70, %s77
    %p261 = scmp.eq.s32.totalorder %s260, 0
    %s263 = sadd.s32 %s262, 1
    %s264 = scalar_select %p261, %s262, %s263
    %p267 = pneg %p261
    %p268 = scmp.eq.s32.totalorder %s70, 1
    %p269 = por %p267, %p268
    %p270 = scmp.ne.s32.totalorder %s262, %s265
    %p271 = scmp.eq.s32.totalorder %s70, 0
    %p272 = por %p270, %p271
    %p273 = scmp.ne.s32.totalorder %s262, %s265
    %p274 = scmp.eq.s32.totalorder %s75, 1
    %p275 = por %p273, %p274
    %p276 = scmp.ne.s32.totalorder %s265, %s266
    %p277 = scmp.eq.s32.totalorder %s75, 0
    %p278 = por %p276, %p277
    %p279 = scmp.ne.s32.totalorder %s265, %s266
    %p280 = scmp.eq.s32.totalorder %s76, 1
    %p281 = por %p279, %p280
    %p283 = scmp.ne.s32.totalorder %s266, %s282
    %p284 = scmp.eq.s32.totalorder %s76, 0
    %p285 = por %p283, %p284
    %s287 = sadd.s32 %s286, 1
    %p290 = scmp.eq.s32.totalorder %s70, 1
    %p291 = scmp.ne.s32.totalorder %s286, %s288
    %p292 = scmp.eq.s32.totalorder %s70, 0
    %p293 = por %p291, %p292
    %p294 = scmp.ne.s32.totalorder %s286, %s288
    %p295 = scmp.eq.s32.totalorder %s75, 1
    %p296 = por %p294, %p295
    %p297 = scmp.ne.s32.totalorder %s288, %s289
    %p298 = scmp.eq.s32.totalorder %s75, 0
    %p299 = por %p297, %p298
    %p300 = scmp.ne.s32.totalorder %s288, %s289
    %p301 = scmp.eq.s32.totalorder %s76, 1
    %p302 = por %p300, %p301
    %p304 = scmp.ne.s32.totalorder %s289, %s303
    %p305 = scmp.eq.s32.totalorder %s76, 0
    %p306 = por %p304, %p305
    %s308 = sadd.s32 %s307, 1
    %p311 = scmp.eq.s32.totalorder %s70, 1
    %p312 = scmp.ne.s32.totalorder %s307, %s309
    %p313 = scmp.eq.s32.totalorder %s70, 0
    %p314 = por %p312, %p313
    %p315 = scmp.ne.s32.totalorder %s307, %s309
    %p316 = scmp.eq.s32.totalorder %s75, 1
    %p317 = por %p315, %p316
    %p318 = scmp.ne.s32.totalorder %s309, %s310
    %p319 = scmp.eq.s32.totalorder %s75, 0
    %p320 = por %p318, %p319
    %p321 = scmp.ne.s32.totalorder %s309, %s310
    %p322 = scmp.eq.s32.totalorder %s76, 1
    %p323 = por %p321, %p322
    %p325 = scmp.ne.s32.totalorder %s310, %s324
    %p326 = scmp.eq.s32.totalorder %s76, 0
    %p327 = por %p325, %p326
    %s329 = sadd.s32 %s328, 1
    %p332 = scmp.eq.s32.totalorder %s70, 1
    %p333 = scmp.ne.s32.totalorder %s328, %s330
    %p334 = scmp.eq.s32.totalorder %s70, 0
    %p335 = por %p333, %p334
    %p336 = scmp.ne.s32.totalorder %s328, %s330
    %p337 = scmp.eq.s32.totalorder %s75, 1
    %p338 = por %p336, %p337
    %p339 = scmp.ne.s32.totalorder %s330, %s331
    %p340 = scmp.eq.s32.totalorder %s75, 0
    %p341 = por %p339, %p340
    %p342 = scmp.ne.s32.totalorder %s330, %s331
    %p343 = scmp.eq.s32.totalorder %s76, 1
    %p344 = por %p342, %p343
    %p346 = scmp.ne.s32.totalorder %s331, %s345
    %p347 = scmp.eq.s32.totalorder %s76, 0
    %p348 = por %p346, %p347
    %s350 = sadd.s32 %s349, 1
    %p353 = scmp.eq.s32.totalorder %s70, 1
    %p354 = scmp.ne.s32.totalorder %s349, %s351
    %p355 = scmp.eq.s32.totalorder %s70, 0
    %p356 = por %p354, %p355
    %p357 = scmp.ne.s32.totalorder %s349, %s351
    %p358 = scmp.eq.s32.totalorder %s75, 1
    %p359 = por %p357, %p358
    %p360 = scmp.ne.s32.totalorder %s351, %s352
    %p361 = scmp.eq.s32.totalorder %s75, 0
    %p362 = por %p360, %p361
    %p363 = scmp.ne.s32.totalorder %s351, %s352
    %p364 = scmp.eq.s32.totalorder %s76, 1
    %p365 = por %p363, %p364
    %p367 = scmp.ne.s32.totalorder %s352, %s366
    %p368 = scmp.eq.s32.totalorder %s76, 0
    %p369 = por %p367, %p368
    %s371 = sadd.s32 %s370, 1
    %p374 = scmp.eq.s32.totalorder %s70, 1
    %p375 = scmp.ne.s32.totalorder %s370, %s372
    %p376 = scmp.eq.s32.totalorder %s70, 0
    %p377 = por %p375, %p376
    %p378 = scmp.ne.s32.totalorder %s370, %s372
    %p379 = scmp.eq.s32.totalorder %s75, 1
    %p380 = por %p378, %p379
    %p381 = scmp.ne.s32.totalorder %s372, %s373
    %p382 = scmp.eq.s32.totalorder %s75, 0
    %p383 = por %p381, %p382
    %p384 = scmp.ne.s32.totalorder %s372, %s373
    %p385 = scmp.eq.s32.totalorder %s76, 1
    %p386 = por %p384, %p385
    %p388 = scmp.ne.s32.totalorder %s373, %s387
    %p389 = scmp.eq.s32.totalorder %s76, 0
    %p390 = por %p388, %p389
    %s392 = sadd.s32 %s391, 1
    %p395 = scmp.eq.s32.totalorder %s70, 1
    %p396 = scmp.ne.s32.totalorder %s391, %s393
    %p397 = scmp.eq.s32.totalorder %s70, 0
    %p398 = por %p396, %p397
    %p399 = scmp.ne.s32.totalorder %s391, %s393
    %p400 = scmp.eq.s32.totalorder %s75, 1
    %p401 = por %p399, %p400
    %p402 = scmp.ne.s32.totalorder %s393, %s394
    %p403 = scmp.eq.s32.totalorder %s75, 0
    %p404 = por %p402, %p403
    %p405 = scmp.ne.s32.totalorder %s393, %s394
    %p406 = scmp.eq.s32.totalorder %s76, 1
    %p407 = por %p405, %p406
    %p409 = scmp.ne.s32.totalorder %s394, %s408
    %p410 = scmp.eq.s32.totalorder %s76, 0
    %p411 = por %p409, %p410
    %s413 = sadd.s32 %s412, 1
    %p416 = scmp.eq.s32.totalorder %s70, 1
    %p417 = scmp.ne.s32.totalorder %s412, %s414
    %p418 = scmp.eq.s32.totalorder %s70, 0
    %p419 = por %p417, %p418
    %p420 = scmp.ne.s32.totalorder %s412, %s414
    %p421 = scmp.eq.s32.totalorder %s75, 1
    %p422 = por %p420, %p421
    %p423 = scmp.ne.s32.totalorder %s414, %s415
    %p424 = scmp.eq.s32.totalorder %s75, 0
    %p425 = por %p423, %p424
    %p426 = scmp.ne.s32.totalorder %s414, %s415
    %p427 = scmp.eq.s32.totalorder %s76, 1
    %p428 = por %p426, %p427
    %p430 = scmp.ne.s32.totalorder %s415, %s429
    %p431 = scmp.eq.s32.totalorder %s76, 0
    %p432 = por %p430, %p431
    %s434 = sadd.s32 %s433, 1
    %p437 = scmp.eq.s32.totalorder %s70, 1
    %p438 = scmp.ne.s32.totalorder %s433, %s435
    %p439 = scmp.eq.s32.totalorder %s70, 0
    %p440 = por %p438, %p439
    %p441 = scmp.ne.s32.totalorder %s433, %s435
    %p442 = scmp.eq.s32.totalorder %s75, 1
    %p443 = por %p441, %p442
    %p444 = scmp.ne.s32.totalorder %s435, %s436
    %p445 = scmp.eq.s32.totalorder %s75, 0
    %p446 = por %p444, %p445
    %p447 = scmp.ne.s32.totalorder %s435, %s436
    %p448 = scmp.eq.s32.totalorder %s76, 1
    %p449 = por %p447, %p448
    %p451 = scmp.ne.s32.totalorder %s436, %s450
    %p452 = scmp.eq.s32.totalorder %s76, 0
    %p453 = por %p451, %p452
    %s455 = sadd.s32 %s454, 1
    %p458 = scmp.eq.s32.totalorder %s70, 1
    %p459 = scmp.ne.s32.totalorder %s454, %s456
    %p460 = scmp.eq.s32.totalorder %s70, 0
    %p461 = por %p459, %p460
    %p462 = scmp.ne.s32.totalorder %s454, %s456
    %p463 = scmp.eq.s32.totalorder %s75, 1
    %p464 = por %p462, %p463
    %p465 = scmp.ne.s32.totalorder %s456, %s457
    %p466 = scmp.eq.s32.totalorder %s75, 0
    %p467 = por %p465, %p466
    %p468 = scmp.ne.s32.totalorder %s456, %s457
    %p469 = scmp.eq.s32.totalorder %s76, 1
    %p470 = por %p468, %p469
    %p472 = scmp.ne.s32.totalorder %s457, %s471
    %p473 = scmp.eq.s32.totalorder %s76, 0
    %p474 = por %p472, %p473
    %s476 = sadd.s32 %s475, 1
    %p479 = scmp.eq.s32.totalorder %s70, 1
    %p480 = scmp.ne.s32.totalorder %s475, %s477
    %p481 = scmp.eq.s32.totalorder %s70, 0
    %p482 = por %p480, %p481
    %p483 = scmp.ne.s32.totalorder %s475, %s477
    %p484 = scmp.eq.s32.totalorder %s75, 1
    %p485 = por %p483, %p484
    %p486 = scmp.ne.s32.totalorder %s477, %s478
    %p487 = scmp.eq.s32.totalorder %s75, 0
    %p488 = por %p486, %p487
    %p489 = scmp.ne.s32.totalorder %s477, %s478
    %p490 = scmp.eq.s32.totalorder %s76, 1
    %p491 = por %p489, %p490
    %p493 = scmp.ne.s32.totalorder %s478, %s492
    %p494 = scmp.eq.s32.totalorder %s76, 0
    %p495 = por %p493, %p494
    %s497 = sadd.s32 %s496, 1
    %p500 = scmp.eq.s32.totalorder %s70, 1
    %p501 = scmp.ne.s32.totalorder %s496, %s498
    %p502 = scmp.eq.s32.totalorder %s70, 0
    %p503 = por %p501, %p502
    %p504 = scmp.ne.s32.totalorder %s496, %s498
    %p505 = scmp.eq.s32.totalorder %s75, 1
    %p506 = por %p504, %p505
    %p507 = scmp.ne.s32.totalorder %s498, %s499
    %p508 = scmp.eq.s32.totalorder %s75, 0
    %p509 = por %p507, %p508
    %p510 = scmp.ne.s32.totalorder %s498, %s499
    %p511 = scmp.eq.s32.totalorder %s76, 1
    %p512 = por %p510, %p511
    %p514 = scmp.ne.s32.totalorder %s499, %s513
    %p515 = scmp.eq.s32.totalorder %s76, 0
    %p516 = por %p514, %p515
    %s518 = sadd.s32 %s517, 1
    %p521 = scmp.eq.s32.totalorder %s70, 1
    %p522 = scmp.ne.s32.totalorder %s517, %s519
    %p523 = scmp.eq.s32.totalorder %s70, 0
    %p524 = por %p522, %p523
    %p525 = scmp.ne.s32.totalorder %s517, %s519
    %p526 = scmp.eq.s32.totalorder %s75, 1
    %p527 = por %p525, %p526
    %p528 = scmp.ne.s32.totalorder %s519, %s520
    %p529 = scmp.eq.s32.totalorder %s75, 0
    %p530 = por %p528, %p529
    %p531 = scmp.ne.s32.totalorder %s519, %s520
    %p532 = scmp.eq.s32.totalorder %s76, 1
    %p533 = por %p531, %p532
    %p535 = scmp.ne.s32.totalorder %s520, %s534
    %p536 = scmp.eq.s32.totalorder %s76, 0
    %p537 = por %p535, %p536
    %s539 = sadd.s32 %s538, 1
    %p542 = scmp.eq.s32.totalorder %s70, 1
    %p543 = scmp.ne.s32.totalorder %s538, %s540
    %p544 = scmp.eq.s32.totalorder %s70, 0
    %p545 = por %p543, %p544
    %p546 = scmp.ne.s32.totalorder %s538, %s540
    %p547 = scmp.eq.s32.totalorder %s75, 1
    %p548 = por %p546, %p547
    %p549 = scmp.ne.s32.totalorder %s540, %s541
    %p550 = scmp.eq.s32.totalorder %s75, 0
    %p551 = por %p549, %p550
    %p552 = scmp.ne.s32.totalorder %s540, %s541
    %p553 = scmp.eq.s32.totalorder %s76, 1
    %p554 = por %p552, %p553
    %p556 = scmp.ne.s32.totalorder %s541, %s555
    %p557 = scmp.eq.s32.totalorder %s76, 0
    %p558 = por %p556, %p557
    %s560 = sadd.s32 %s559, 1
    %p563 = scmp.eq.s32.totalorder %s70, 1
    %p564 = scmp.ne.s32.totalorder %s559, %s561
    %p565 = scmp.eq.s32.totalorder %s70, 0
    %p566 = por %p564, %p565
    %p567 = scmp.ne.s32.totalorder %s559, %s561
    %p568 = scmp.eq.s32.totalorder %s75, 1
    %p569 = por %p567, %p568
    %p570 = scmp.ne.s32.totalorder %s561, %s562
    %p571 = scmp.eq.s32.totalorder %s75, 0
    %p572 = por %p570, %p571
    %p573 = scmp.ne.s32.totalorder %s561, %s562
    %p574 = scmp.eq.s32.totalorder %s76, 1
    %p575 = por %p573, %p574
    %p577 = scmp.ne.s32.totalorder %s562, %s576
    %p578 = scmp.eq.s32.totalorder %s76, 0
    %p579 = por %p577, %p578
    %s581 = sadd.s32 %s580, 1
    %p584 = scmp.eq.s32.totalorder %s70, 1
    %p585 = scmp.ne.s32.totalorder %s580, %s582
    %p586 = scmp.eq.s32.totalorder %s70, 0
    %p587 = por %p585, %p586
    %p588 = scmp.ne.s32.totalorder %s580, %s582
    %p589 = scmp.eq.s32.totalorder %s75, 1
    %p590 = por %p588, %p589
    %p591 = scmp.ne.s32.totalorder %s582, %s583
    %p592 = scmp.eq.s32.totalorder %s75, 0
    %p593 = por %p591, %p592
    %p594 = scmp.ne.s32.totalorder %s582, %s583
    %p595 = scmp.eq.s32.totalorder %s76, 1
    %p596 = por %p594, %p595
    %p598 = scmp.ne.s32.totalorder %s583, %s597
    %p599 = scmp.eq.s32.totalorder %s76, 0
    %p600 = por %p598, %p599
    %s602 = sadd.s32 %s601, 1
    %p605 = scmp.eq.s32.totalorder %s70, 1
    %p606 = scmp.ne.s32.totalorder %s601, %s603
    %p607 = scmp.eq.s32.totalorder %s70, 0
    %p608 = por %p606, %p607
    %p609 = scmp.ne.s32.totalorder %s601, %s603
    %p610 = scmp.eq.s32.totalorder %s75, 1
    %p611 = por %p609, %p610
    %p612 = scmp.ne.s32.totalorder %s603, %s604
    %p613 = scmp.eq.s32.totalorder %s75, 0
    %p614 = por %p612, %p613
    %p615 = scmp.ne.s32.totalorder %s603, %s604
    %p616 = scmp.eq.s32.totalorder %s76, 1
    %p617 = por %p615, %p616
    %p619 = scmp.ne.s32.totalorder %s604, %s618
    %p620 = scmp.eq.s32.totalorder %s76, 0
    %p621 = por %p619, %p620
    %s623 = sadd.s32 %s622, 1
    %p626 = scmp.eq.s32.totalorder %s70, 1
    %p627 = scmp.ne.s32.totalorder %s622, %s624
    %p628 = scmp.eq.s32.totalorder %s70, 0
    %p629 = por %p627, %p628
    %p630 = scmp.ne.s32.totalorder %s622, %s624
    %p631 = scmp.eq.s32.totalorder %s75, 1
    %p632 = por %p630, %p631
    %p633 = scmp.ne.s32.totalorder %s624, %s625
    %p634 = scmp.eq.s32.totalorder %s75, 0
    %p635 = por %p633, %p634
    %p636 = scmp.ne.s32.totalorder %s624, %s625
    %p637 = scmp.eq.s32.totalorder %s76, 1
    %p638 = por %p636, %p637
    %p640 = scmp.ne.s32.totalorder %s625, %s639
    %p641 = scmp.eq.s32.totalorder %s76, 0
    %p642 = por %p640, %p641
    %s644 = sadd.s32 %s643, 1
    %p647 = scmp.eq.s32.totalorder %s70, 1
    %p648 = scmp.ne.s32.totalorder %s643, %s645
    %p649 = scmp.eq.s32.totalorder %s70, 0
    %p650 = por %p648, %p649
    %p651 = scmp.ne.s32.totalorder %s643, %s645
    %p652 = scmp.eq.s32.totalorder %s75, 1
    %p653 = por %p651, %p652
    %p654 = scmp.ne.s32.totalorder %s645, %s646
    %p655 = scmp.eq.s32.totalorder %s75, 0
    %p656 = por %p654, %p655
    %p657 = scmp.ne.s32.totalorder %s645, %s646
    %p658 = scmp.eq.s32.totalorder %s76, 1
    %p659 = por %p657, %p658
    %p661 = scmp.ne.s32.totalorder %s646, %s660
    %p662 = scmp.eq.s32.totalorder %s76, 0
    %p663 = por %p661, %p662
    %s665 = sadd.s32 %s664, 1
    %p668 = scmp.eq.s32.totalorder %s70, 1
    %p669 = scmp.ne.s32.totalorder %s664, %s666
    %p670 = scmp.eq.s32.totalorder %s70, 0
    %p671 = por %p669, %p670
    %p672 = scmp.ne.s32.totalorder %s664, %s666
    %p673 = scmp.eq.s32.totalorder %s75, 1
    %p674 = por %p672, %p673
    %p675 = scmp.ne.s32.totalorder %s666, %s667
    %p676 = scmp.eq.s32.totalorder %s75, 0
    %p677 = por %p675, %p676
    %p678 = scmp.ne.s32.totalorder %s666, %s667
    %p679 = scmp.eq.s32.totalorder %s76, 1
    %p680 = por %p678, %p679
    %p682 = scmp.ne.s32.totalorder %s667, %s681
    %p683 = scmp.eq.s32.totalorder %s76, 0
    %p684 = por %p682, %p683
    %s686 = sadd.s32 %s685, 1
    %p689 = scmp.eq.s32.totalorder %s70, 1
    %p690 = scmp.ne.s32.totalorder %s685, %s687
    %p691 = scmp.eq.s32.totalorder %s70, 0
    %p692 = por %p690, %p691
    %p693 = scmp.ne.s32.totalorder %s685, %s687
    %p694 = scmp.eq.s32.totalorder %s75, 1
    %p695 = por %p693, %p694
    %p696 = scmp.ne.s32.totalorder %s687, %s688
    %p697 = scmp.eq.s32.totalorder %s75, 0
    %p698 = por %p696, %p697
    %p699 = scmp.ne.s32.totalorder %s687, %s688
    %p700 = scmp.eq.s32.totalorder %s76, 1
    %p701 = por %p699, %p700
    %p703 = scmp.ne.s32.totalorder %s688, %s702
    %p704 = scmp.eq.s32.totalorder %s76, 0
    %p705 = por %p703, %p704
    %s707 = sadd.s32 %s706, 1
    %p710 = scmp.eq.s32.totalorder %s70, 1
    %p711 = scmp.ne.s32.totalorder %s706, %s708
    %p712 = scmp.eq.s32.totalorder %s70, 0
    %p713 = por %p711, %p712
    %p714 = scmp.ne.s32.totalorder %s706, %s708
    %p715 = scmp.eq.s32.totalorder %s75, 1
    %p716 = por %p714, %p715
    %p717 = scmp.ne.s32.totalorder %s708, %s709
    %p718 = scmp.eq.s32.totalorder %s75, 0
    %p719 = por %p717, %p718
    %p720 = scmp.ne.s32.totalorder %s708, %s709
    %p721 = scmp.eq.s32.totalorder %s76, 1
    %p722 = por %p720, %p721
    %p724 = scmp.ne.s32.totalorder %s709, %s723
    %p725 = scmp.eq.s32.totalorder %s76, 0
    %p726 = por %p724, %p725
    %s727 = ssub.s32 %s70, %s77
    %p728 = scmp.eq.s32.totalorder %s727, 0
    %s730 = sadd.s32 %s729, 1
    %s731 = scalar_select %p728, %s729, %s730
    %p734 = pneg %p728
    %p735 = scmp.eq.s32.totalorder %s70, 1
    %p736 = por %p734, %p735
    %p737 = scmp.ne.s32.totalorder %s729, %s732
    %p738 = scmp.eq.s32.totalorder %s70, 0
    %p739 = por %p737, %p738
    %p740 = scmp.ne.s32.totalorder %s729, %s732
    %p741 = scmp.eq.s32.totalorder %s75, 1
    %p742 = por %p740, %p741
    %p743 = scmp.ne.s32.totalorder %s732, %s733
    %p744 = scmp.eq.s32.totalorder %s75, 0
    %p745 = por %p743, %p744
    %p746 = scmp.ne.s32.totalorder %s732, %s733
    %p747 = scmp.eq.s32.totalorder %s76, 1
    %p748 = por %p746, %p747
    %p750 = scmp.ne.s32.totalorder %s733, %s749
    %p751 = scmp.eq.s32.totalorder %s76, 0
    %p752 = por %p750, %p751
    %s753 = ssub.s32 %s70, %s77
    %p754 = scmp.eq.s32.totalorder %s753, 0
    %s756 = sadd.s32 %s755, 1
    %s757 = scalar_select %p754, %s755, %s756
    %p760 = pneg %p754
    %p761 = scmp.eq.s32.totalorder %s70, 1
    %p762 = por %p760, %p761
    %p763 = scmp.ne.s32.totalorder %s755, %s758
    %p764 = scmp.eq.s32.totalorder %s70, 0
    %p765 = por %p763, %p764
    %p766 = scmp.ne.s32.totalorder %s755, %s758
    %p767 = scmp.eq.s32.totalorder %s75, 1
    %p768 = por %p766, %p767
    %p769 = scmp.ne.s32.totalorder %s758, %s759
    %p770 = scmp.eq.s32.totalorder %s75, 0
    %p771 = por %p769, %p770
    %p772 = scmp.ne.s32.totalorder %s758, %s759
    %p773 = scmp.eq.s32.totalorder %s76, 1
    %p774 = por %p772, %p773
    %p776 = scmp.ne.s32.totalorder %s759, %s775
    %p777 = scmp.eq.s32.totalorder %s76, 0
    %p778 = por %p776, %p777
    %p779 = scmp.le.s32.totalorder 1, %s70
    %p780 = scmp.lt.s32.totalorder %s70, 3
    %p781 = pnand %p779, %p780
    %p782 = pneg %p781
    // Predicated region
    $region9: #{tpu_custom_call.1} parent=5 // pred_check
      _
    $region10: #{tpu_custom_call.1} parent=5 // pred_check_branch
      %784 = sbr.rel (%p781) target = $region12
    $region11: #{tpu_custom_call.1} parent=5 // pred_region
      %s785 = ssub.s32 %s70, 1
      // Predicated region
      $region13: #{tpu_custom_call.1} parent=11 // pred_check
        %p786 = pneg %p299
      $region14: #{tpu_custom_call.1} parent=11 // pred_check_branch
        %788 = sbr.rel (%p786) target = $region16
      $region15: #{tpu_custom_call.1} parent=11 // pred_region
        _
      $region16: #{tpu_custom_call.1} parent=11 // pred_fallthru
        _
      // Predicated region
      $region17: #{tpu_custom_call.1} parent=11 // pred_check
        %p789 = pneg %p320
      $region18: #{tpu_custom_call.1} parent=11 // pred_check_branch
        %791 = sbr.rel (%p789) target = $region20
      $region19: #{tpu_custom_call.1} parent=11 // pred_region
        _
      $region20: #{tpu_custom_call.1} parent=11 // pred_fallthru
        _
      // Predicated region
      $region21: #{tpu_custom_call.1} parent=11 // pred_check
        %p792 = pneg %p341
      $region22: #{tpu_custom_call.1} parent=11 // pred_check_branch
        %794 = sbr.rel (%p792) target = $region24
      $region23: #{tpu_custom_call.1} parent=11 // pred_region
        _
      $region24: #{tpu_custom_call.1} parent=11 // pred_fallthru
        _
      // Predicated region
      $region25: #{tpu_custom_call.1} parent=11 // pred_check
        %p795 = pneg %p362
      $region26: #{tpu_custom_call.1} parent=11 // pred_check_branch
        %797 = sbr.rel (%p795) target = $region28
      $region27: #{tpu_custom_call.1} parent=11 // pred_region
        _
      $region28: #{tpu_custom_call.1} parent=11 // pred_fallthru
        _
      // Predicated region
      $region29: #{tpu_custom_call.1} parent=11 // pred_check
        %p798 = pneg %p383
      $region30: #{tpu_custom_call.1} parent=11 // pred_check_branch
        %800 = sbr.rel (%p798) target = $region32
      $region31: #{tpu_custom_call.1} parent=11 // pred_region
        _
      $region32: #{tpu_custom_call.1} parent=11 // pred_fallthru
        _
      // Predicated region
      $region33: #{tpu_custom_call.1} parent=11 // pred_check
        %p801 = pneg %p404
      $region34: #{tpu_custom_call.1} parent=11 // pred_check_branch
        %803 = sbr.rel (%p801) target = $region36
      $region35: #{tpu_custom_call.1} parent=11 // pred_region
        _
      $region36: #{tpu_custom_call.1} parent=11 // pred_fallthru
        _
      // Predicated region
      $region37: #{tpu_custom_call.1} parent=11 // pred_check
        %p804 = pneg %p425
      $region38: #{tpu_custom_call.1} parent=11 // pred_check_branch
        %806 = sbr.rel (%p804) target = $region40
      $region39: #{tpu_custom_call.1} parent=11 // pred_region
        _
      $region40: #{tpu_custom_call.1} parent=11 // pred_fallthru
        _
      // Predicated region
      $region41: #{tpu_custom_call.1} parent=11 // pred_check
        %p807 = pneg %p446
      $region42: #{tpu_custom_call.1} parent=11 // pred_check_branch
        %809 = sbr.rel (%p807) target = $region44
      $region43: #{tpu_custom_call.1} parent=11 // pred_region
        _
      $region44: #{tpu_custom_call.1} parent=11 // pred_fallthru
        _
      // Predicated region
      $region45: #{tpu_custom_call.1} parent=11 // pred_check
        %p810 = pneg %p467
      $region46: #{tpu_custom_call.1} parent=11 // pred_check_branch
        %812 = sbr.rel (%p810) target = $region48
      $region47: #{tpu_custom_call.1} parent=11 // pred_region
        _
      $region48: #{tpu_custom_call.1} parent=11 // pred_fallthru
        _
      // Predicated region
      $region49: #{tpu_custom_call.1} parent=11 // pred_check
        %p813 = pneg %p488
      $region50: #{tpu_custom_call.1} parent=11 // pred_check_branch
        %815 = sbr.rel (%p813) target = $region52
      $region51: #{tpu_custom_call.1} parent=11 // pred_region
        _
      $region52: #{tpu_custom_call.1} parent=11 // pred_fallthru
        _
      // Predicated region
      $region53: #{tpu_custom_call.1} parent=11 // pred_check
        %p816 = pneg %p509
      $region54: #{tpu_custom_call.1} parent=11 // pred_check_branch
        %818 = sbr.rel (%p816) target = $region56
      $region55: #{tpu_custom_call.1} parent=11 // pred_region
        _
      $region56: #{tpu_custom_call.1} parent=11 // pred_fallthru
        _
      // Predicated region
      $region57: #{tpu_custom_call.1} parent=11 // pred_check
        %p819 = pneg %p530
      $region58: #{tpu_custom_call.1} parent=11 // pred_check_branch
        %821 = sbr.rel (%p819) target = $region60
      $region59: #{tpu_custom_call.1} parent=11 // pred_region
        _
      $region60: #{tpu_custom_call.1} parent=11 // pred_fallthru
        _
      // Predicated region
      $region61: #{tpu_custom_call.1} parent=11 // pred_check
        %p822 = pneg %p551
      $region62: #{tpu_custom_call.1} parent=11 // pred_check_branch
        %824 = sbr.rel (%p822) target = $region64
      $region63: #{tpu_custom_call.1} parent=11 // pred_region
        _
      $region64: #{tpu_custom_call.1} parent=11 // pred_fallthru
        _
      // Predicated region
      $region65: #{tpu_custom_call.1} parent=11 // pred_check
        %p825 = pneg %p572
      $region66: #{tpu_custom_call.1} parent=11 // pred_check_branch
        %827 = sbr.rel (%p825) target = $region68
      $region67: #{tpu_custom_call.1} parent=11 // pred_region
        _
      $region68: #{tpu_custom_call.1} parent=11 // pred_fallthru
        _
      // Predicated region
      $region69: #{tpu_custom_call.1} parent=11 // pred_check
        %p828 = pneg %p593
      $region70: #{tpu_custom_call.1} parent=11 // pred_check_branch
        %830 = sbr.rel (%p828) target = $region72
      $region71: #{tpu_custom_call.1} parent=11 // pred_region
        _
      $region72: #{tpu_custom_call.1} parent=11 // pred_fallthru
        _
      // Predicated region
      $region73: #{tpu_custom_call.1} parent=11 // pred_check
        %p831 = pneg %p614
      $region74: #{tpu_custom_call.1} parent=11 // pred_check_branch
        %833 = sbr.rel (%p831) target = $region76
      $region75: #{tpu_custom_call.1} parent=11 // pred_region
        _
      $region76: #{tpu_custom_call.1} parent=11 // pred_fallthru
        _
      // Predicated region
      $region77: #{tpu_custom_call.1} parent=11 // pred_check
        %p834 = pneg %p635
      $region78: #{tpu_custom_call.1} parent=11 // pred_check_branch
        %836 = sbr.rel (%p834) target = $region80
      $region79: #{tpu_custom_call.1} parent=11 // pred_region
        _
      $region80: #{tpu_custom_call.1} parent=11 // pred_fallthru
        _
      // Predicated region
      $region81: #{tpu_custom_call.1} parent=11 // pred_check
        %p837 = pneg %p656
      $region82: #{tpu_custom_call.1} parent=11 // pred_check_branch
        %839 = sbr.rel (%p837) target = $region84
      $region83: #{tpu_custom_call.1} parent=11 // pred_region
        _
      $region84: #{tpu_custom_call.1} parent=11 // pred_fallthru
        _
      // Predicated region
      $region85: #{tpu_custom_call.1} parent=11 // pred_check
        %p840 = pneg %p677
      $region86: #{tpu_custom_call.1} parent=11 // pred_check_branch
        %842 = sbr.rel (%p840) target = $region88
      $region87: #{tpu_custom_call.1} parent=11 // pred_region
        _
      $region88: #{tpu_custom_call.1} parent=11 // pred_fallthru
        _
      // Predicated region
      $region89: #{tpu_custom_call.1} parent=11 // pred_check
        %p843 = pneg %p698
      $region90: #{tpu_custom_call.1} parent=11 // pred_check_branch
        %845 = sbr.rel (%p843) target = $region92
      $region91: #{tpu_custom_call.1} parent=11 // pred_region
        _
      $region92: #{tpu_custom_call.1} parent=11 // pred_fallthru
        _
      // Predicated region
      $region93: #{tpu_custom_call.1} parent=11 // pred_check
        %p846 = pneg %p719
      $region94: #{tpu_custom_call.1} parent=11 // pred_check_branch
        %848 = sbr.rel (%p846) target = $region96
      $region95: #{tpu_custom_call.1} parent=11 // pred_region
        _
      $region96: #{tpu_custom_call.1} parent=11 // pred_fallthru
        _
    $region12: #{tpu_custom_call.1} parent=5 // pred_fallthru
      _
    %p849 = scmp.lt.s32.totalorder %s70, 2
    // Predicated region
    $region97: #{tpu_custom_call.1} parent=5 // pred_check
      %p850 = pneg %p849
    $region98: #{tpu_custom_call.1} parent=5 // pred_check_branch
      %852 = sbr.rel (%p850) target = $region100
    $region99: #{tpu_custom_call.1} parent=5 // pred_region
      // Predicated region
      $region101: #{tpu_custom_call.1} parent=99 // pred_check
        %p853 = pneg %p90
      $region102: #{tpu_custom_call.1} parent=99 // pred_check_branch
        %855 = sbr.rel (%p853) target = $region104
      $region103: #{tpu_custom_call.1} parent=99 // pred_region
        %p856 = scmp.lt.s32.totalorder %s70, 1
        %s857 = scalar_select %p856, %s70, 1
        %s858 = smul.addr %s857, 8
        %s859 = scalar_lea.vmem %s1, %s858
      $region104: #{tpu_custom_call.1} parent=99 // pred_fallthru
        _
      // Predicated region
      $region105: #{tpu_custom_call.1} parent=99 // pred_check
        %p860 = pneg %p116
      $region106: #{tpu_custom_call.1} parent=99 // pred_check_branch
        %862 = sbr.rel (%p860) target = $region108
      $region107: #{tpu_custom_call.1} parent=99 // pred_region
        %p863 = scmp.lt.s32.totalorder %s70, 1
        %s864 = scalar_select %p863, %s70, 1
        %s865 = smul.addr %s864, 8
        %s866 = scalar_lea.vmem %s3, %s865
      $region108: #{tpu_custom_call.1} parent=99 // pred_fallthru
        _
      // Predicated region
      $region109: #{tpu_custom_call.1} parent=99 // pred_check
        %p867 = pneg %p142
      $region110: #{tpu_custom_call.1} parent=99 // pred_check_branch
        %869 = sbr.rel (%p867) target = $region112
      $region111: #{tpu_custom_call.1} parent=99 // pred_region
        %p870 = scmp.lt.s32.totalorder %s70, 1
        %s871 = scalar_select %p870, %s70, 1
        %s872 = smul.addr %s871, 7
        %s873 = smul.addr %s872, 4
        %s874 = scalar_lea.vmem %s5, %s873
      $region112: #{tpu_custom_call.1} parent=99 // pred_fallthru
        _
      // Predicated region
      $region113: #{tpu_custom_call.1} parent=99 // pred_check
        %p875 = pneg %p168
      $region114: #{tpu_custom_call.1} parent=99 // pred_check_branch
        %877 = sbr.rel (%p875) target = $region116
      $region115: #{tpu_custom_call.1} parent=99 // pred_region
        %p878 = scmp.lt.s32.totalorder %s70, 1
        %s879 = scalar_select %p878, %s70, 1
        %s880 = smul.addr %s879, 7
        %s881 = smul.addr %s880, 4
        %s882 = scalar_lea.vmem %s7, %s881
      $region116: #{tpu_custom_call.1} parent=99 // pred_fallthru
        _
      // Predicated region
      $region117: #{tpu_custom_call.1} parent=99 // pred_check
        %p883 = pneg %p194
      $region118: #{tpu_custom_call.1} parent=99 // pred_check_branch
        %885 = sbr.rel (%p883) target = $region120
      $region119: #{tpu_custom_call.1} parent=99 // pred_region
        %p886 = scmp.lt.s32.totalorder %s70, 1
        %s887 = scalar_select %p886, %s70, 1
        %s888 = smul.addr %s887, 7
        %s889 = smul.addr %s888, 8
        %s890 = scalar_lea.vmem %s9, %s889
      $region120: #{tpu_custom_call.1} parent=99 // pred_fallthru
        _
      // Predicated region
      $region121: #{tpu_custom_call.1} parent=99 // pred_check
        %p891 = pneg %p220
      $region122: #{tpu_custom_call.1} parent=99 // pred_check_branch
        %893 = sbr.rel (%p891) target = $region124
      $region123: #{tpu_custom_call.1} parent=99 // pred_region
        %p894 = scmp.lt.s32.totalorder %s70, 1
        %s895 = scalar_select %p894, %s70, 1
        %s896 = smul.addr %s895, 7
        %s897 = smul.addr %s896, 8
        %s898 = scalar_lea.vmem %s11, %s897
      $region124: #{tpu_custom_call.1} parent=99 // pred_fallthru
        _
      // Predicated region
      $region125: #{tpu_custom_call.1} parent=99 // pred_check
        %p899 = pneg %p246
      $region126: #{tpu_custom_call.1} parent=99 // pred_check_branch
        %901 = sbr.rel (%p899) target = $region128
      $region127: #{tpu_custom_call.1} parent=99 // pred_region
        %p902 = scmp.lt.s32.totalorder %s70, 1
        %s903 = scalar_select %p902, %s70, 1
        %s904 = smul.addr %s903, 8
        %s905 = scalar_lea.vmem %s13, %s904
      $region128: #{tpu_custom_call.1} parent=99 // pred_fallthru
        _
      // Predicated region
      $region129: #{tpu_custom_call.1} parent=99 // pred_check
        %p906 = pneg %p272
      $region130: #{tpu_custom_call.1} parent=99 // pred_check_branch
        %908 = sbr.rel (%p906) target = $region132
      $region131: #{tpu_custom_call.1} parent=99 // pred_region
        %p909 = scmp.lt.s32.totalorder %s70, 1
        %s910 = scalar_select %p909, %s70, 1
        %s911 = smul.addr %s910, 8
        %s912 = scalar_lea.vmem %s15, %s911
      $region132: #{tpu_custom_call.1} parent=99 // pred_fallthru
        _
    $region100: #{tpu_custom_call.1} parent=5 // pred_fallthru
      _
    %p913 = scmp.le.s32.totalorder 1, %s70
    %p914 = scmp.lt.s32.totalorder %s70, 3
    %p915 = pnand %p913, %p914
    %p916 = pneg %p915
    // Predicated region
    $region133: #{tpu_custom_call.1} parent=5 // pred_check
      _
    $region134: #{tpu_custom_call.1} parent=5 // pred_check_branch
      %918 = sbr.rel (%p915) target = $region136
    $region135: #{tpu_custom_call.1} parent=5 // pred_region
      %s919 = ssub.s32 %s70, 1
      %p920 = scmp.lt.s32.totalorder %s75, 1
      %s921 = scalar_select %p920, %s75, 1
      %s922 = smul.addr %s921, 8
      %s923 = scalar_lea.vmem %s1, %s922
      %p924 = pneg %p96
      %p925 = pneg %p93
      %p926 = scmp.lt.s32.totalorder %s75, 1
      %s927 = scalar_select %p926, %s75, 1
      %s928 = smul.addr %s927, 8
      %s929 = scalar_lea.vmem %s3, %s928
      %p930 = pneg %p122
      %p931 = pneg %p119
      %p932 = scmp.lt.s32.totalorder %s75, 1
      %s933 = scalar_select %p932, %s75, 1
      %s934 = smul.addr %s933, 7
      %s935 = smul.addr %s934, 4
      %s936 = scalar_lea.vmem %s5, %s935
      %p937 = pneg %p148
      %p938 = pneg %p145
      %p939 = scmp.lt.s32.totalorder %s75, 1
      %s940 = scalar_select %p939, %s75, 1
      %s941 = smul.addr %s940, 7
      %s942 = smul.addr %s941, 4
      %s943 = scalar_lea.vmem %s7, %s942
      %p944 = pneg %p174
      %p945 = pneg %p171
      %p946 = scmp.lt.s32.totalorder %s75, 1
      %s947 = scalar_select %p946, %s75, 1
      %s948 = smul.addr %s947, 7
      %s949 = smul.addr %s948, 8
      %s950 = scalar_lea.vmem %s9, %s949
      %p951 = pneg %p200
      %p952 = pneg %p197
      %p953 = scmp.lt.s32.totalorder %s75, 1
      %s954 = scalar_select %p953, %s75, 1
      %s955 = smul.addr %s954, 7
      %s956 = smul.addr %s955, 8
      %s957 = scalar_lea.vmem %s11, %s956
      %p958 = pneg %p226
      %p959 = pneg %p223
      %p960 = scmp.lt.s32.totalorder %s75, 1
      %s961 = scalar_select %p960, %s75, 1
      %s962 = smul.addr %s961, 8
      %s963 = scalar_lea.vmem %s13, %s962
      %p964 = pneg %p252
      %p965 = pneg %p249
      %p966 = scmp.lt.s32.totalorder %s75, 1
      %s967 = scalar_select %p966, %s75, 1
      %s968 = smul.addr %s967, 8
      %s969 = scalar_lea.vmem %s15, %s968
      %p970 = pneg %p278
      %p971 = pneg %p275
      %p972 = pneg %p299
      %p973 = pneg %p296
      %p974 = pneg %p320
      %p975 = pneg %p317
      %p976 = pneg %p341
      %p977 = pneg %p338
      %p978 = pneg %p362
      %p979 = pneg %p359
      %p980 = pneg %p383
      %p981 = pneg %p380
      %p982 = pneg %p404
      %p983 = pneg %p401
      %p984 = pneg %p425
      %p985 = pneg %p422
      %p986 = pneg %p446
      %p987 = pneg %p443
      %p988 = pneg %p467
      %p989 = pneg %p464
      %p990 = pneg %p488
      %p991 = pneg %p485
      %p992 = pneg %p509
      %p993 = pneg %p506
      %p994 = pneg %p530
      %p995 = pneg %p527
      %p996 = pneg %p551
      %p997 = pneg %p548
      %p998 = pneg %p572
      %p999 = pneg %p569
      %p1000 = pneg %p593
      %p1001 = pneg %p590
      %p1002 = pneg %p614
      %p1003 = pneg %p611
      %p1004 = pneg %p635
      %p1005 = pneg %p632
      %p1006 = pneg %p656
      %p1007 = pneg %p653
      %p1008 = pneg %p677
      %p1009 = pneg %p674
      %p1010 = pneg %p698
      %p1011 = pneg %p695
      %p1012 = pneg %p719
      %p1013 = pneg %p716
      %p1014 = pneg %p745
      %p1015 = pneg %p742
      %p1016 = scmp.lt.s32.totalorder %s75, 1
      %s1017 = scalar_select %p1016, %s75, 1
      %s1018 = scalar_lea.vmem %s59, %s1017
      %p1019 = pneg %p771
      %p1020 = pneg %p768
      %p1021 = scmp.lt.s32.totalorder %s75, 1
      %s1022 = scalar_select %p1021, %s75, 1
      %s1023 = smul.addr %s1022, 8
      %s1024 = scalar_lea.vmem %s61, %s1023
      %p1025 = scmp.lt.s32.totalorder %s75, 1
      %s1026 = scalar_select %p1025, %s75, 1
      %s1027 = smul.addr %s1026, 8
      %s1028 = scalar_lea.vmem %s1, %s1027
      %p1029 = scmp.lt.s32.totalorder %s75, 1
      %s1030 = scalar_select %p1029, %s75, 1
      %s1031 = smul.addr %s1030, 8
      %s1032 = scalar_lea.vmem %s3, %s1031
      %p1033 = scmp.lt.s32.totalorder %s75, 1
      %s1034 = scalar_select %p1033, %s75, 1
      %s1035 = smul.addr %s1034, 7
      %s1036 = smul.addr %s1035, 4
      %s1037 = scalar_lea.vmem %s5, %s1036
      %p1038 = scmp.lt.s32.totalorder %s75, 1
      %s1039 = scalar_select %p1038, %s75, 1
      %s1040 = smul.addr %s1039, 7
      %s1041 = smul.addr %s1040, 4
      %s1042 = scalar_lea.vmem %s7, %s1041
      %p1043 = scmp.lt.s32.totalorder %s75, 1
      %s1044 = scalar_select %p1043, %s75, 1
      %s1045 = smul.addr %s1044, 7
      %s1046 = smul.addr %s1045, 8
      %s1047 = scalar_lea.vmem %s9, %s1046
      %p1048 = scmp.lt.s32.totalorder %s75, 1
      %s1049 = scalar_select %p1048, %s75, 1
      %s1050 = smul.addr %s1049, 7
      %s1051 = smul.addr %s1050, 8
      %s1052 = scalar_lea.vmem %s11, %s1051
      %p1053 = scmp.lt.s32.totalorder %s75, 1
      %s1054 = scalar_select %p1053, %s75, 1
      %s1055 = smul.addr %s1054, 8
      %s1056 = scalar_lea.vmem %s13, %s1055
      %p1057 = scmp.lt.s32.totalorder %s75, 1
      %s1058 = scalar_select %p1057, %s75, 1
      %s1059 = smul.addr %s1058, 8
      %s1060 = scalar_lea.vmem %s15, %s1059
      %p1061 = scmp.lt.s32.totalorder %s75, 1
      %s1062 = scalar_select %p1061, %s75, 1
      %s1063 = scalar_lea.vmem %s59, %s1062
      %p1064 = scmp.lt.s32.totalorder %s75, 1
      %s1065 = scalar_select %p1064, %s75, 1
      %s1066 = smul.addr %s1065, 8
      %s1067 = scalar_lea.vmem %s61, %s1066
      %v1069 = vld [vmem:[%s1037] sm:$0xf]
      %v1070 = vld [vmem:[%s1037 + $0x4] sm:$0xf]
      %v1071 = vld [vmem:[%s1037 + $0x8] sm:$0xf]
      %v1072 = vld [vmem:[%s1037 + $0xc] sm:$0xf]
      %v1073 = vld [vmem:[%s1037 + $0x10] sm:$0xf]
      %v1074 = vld [vmem:[%s1037 + $0x14] sm:$0xf]
      %v1075 = vld [vmem:[%s1037 + $0x18] sm:$0xf]
      %v1076 = vld [vmem:[%s1042] sm:$0xf]
      %v1077 = vld [vmem:[%s1042 + $0x4] sm:$0xf]
      %v1078 = vld [vmem:[%s1042 + $0x8] sm:$0xf]
      %v1079 = vld [vmem:[%s1042 + $0xc] sm:$0xf]
      %v1080 = vld [vmem:[%s1042 + $0x10] sm:$0xf]
      %v1081 = vld [vmem:[%s1042 + $0x14] sm:$0xf]
      %v1082 = vld [vmem:[%s1042 + $0x18] sm:$0xf]
      %v1083 = vld [vmem:[%s1032] sm:$0xff]
      %v1084 = vld [vmem:[%s1047] sm:$0xff]
      %v1085 = vld [vmem:[%s1047 + $0x8] sm:$0xff]
      %v1086 = vld [vmem:[%s1047 + $0x10] sm:$0xff]
      %v1087 = vld [vmem:[%s1047 + $0x18] sm:$0xff]
      %v1088 = vld [vmem:[%s1047 + $0x20] sm:$0xff]
      %v1089 = vld [vmem:[%s1047 + $0x28] sm:$0xff]
      %v1090 = vld [vmem:[%s1047 + $0x30] sm:$0xff]
      %v1091 = vld [vmem:[%s1052] sm:$0xff]
      %v1092 = vld [vmem:[%s1052 + $0x8] sm:$0xff]
      %v1093 = vld [vmem:[%s1052 + $0x10] sm:$0xff]
      %v1094 = vld [vmem:[%s1052 + $0x18] sm:$0xff]
      %v1095 = vld [vmem:[%s1052 + $0x20] sm:$0xff]
      %v1096 = vld [vmem:[%s1052 + $0x28] sm:$0xff]
      %v1097 = vld [vmem:[%s1052 + $0x30] sm:$0xff]
      %v1098 = vld [vmem:[%s1060] sm:$0xff]
      %v1099 = vrcp.pop %v1098
      %v1100 = vld [vmem:[%s1028] sm:$0xff]
      %v1101 = vld [vmem:[%s17] sm:$0xf]
      %v1102 = vld [vmem:[%s19] sm:$0x1]
      %v1104 = vlaneseq
      %v1105 = vshrl.u32 %v1104, 7
      %v1106 = vsub.s32 0, %v1105
      %v1107 = vrot.slane %v1102, %v1106
      %vm1109 = vcmask 31744
      %v1111 = vsel %vm1109, %v1100, 0
      %vm1113 = vcmask 1043456
      %v1115 = vsel %vm1113, %v1101, 0
      %1117 = vmatprep.subr.mxu0 0.0
      %1118 = vmatpush1.msra.mxu0 0.0
      %1119 = vmatprep.subr.mxu0 0.0
      %1120 = vmatpush1.msra.mxu0 0.0
      %1121 = vmatprep.subr.mxu0 0.0
      %1122 = vmatpush1.msra.mxu0 0.0
      %1123 = vmatprep.subr.mxu0 0.0
      %1124 = vmatpush1.msra.mxu0 0.0
      %1125 = vmatprep.subr.mxu0 0.0
      %1126 = vmatpush1.msra.mxu0 0.0
      %1127 = vmatprep.subr.mxu0 0.0
      %1128 = vmatpush1.msra.mxu0 0.0
      %1129 = vmatprep.subr.mxu0 0.0
      %1130 = vmatpush1.msra.mxu0 0.0
      %1131 = vmatprep.subr.mxu0 0.0
      %1132 = vmatpush1.msra.mxu0 0.0
      %1133 = vmatprep.subr.mxu0 0.0
      %1134 = vmatpush1.msra.mxu0 0.0
      %1135 = vmatprep.subr.mxu0 0.0
      %1136 = vmatpush1.msra.mxu0 0.0
      %1137 = vmatprep.subr.mxu0 0.0
      %1138 = vmatpush1.msra.mxu0 0.0
      %1139 = vmatprep.subr.mxu0 0.0
      %1140 = vmatpush1.msra.mxu0 0.0
      %1141 = vmatprep.subr.mxu0 0.0
      %1142 = vmatpush1.msra.mxu0 0.0
      %1143 = vmatprep.subr.mxu0 0.0
      %1144 = vmatpush1.msra.mxu0 0.0
      %1145 = vmatprep.subr.mxu0 0.0
      %1146 = vmatpush1.msra.mxu0 0.0
      %1147 = vmatprep.subr.mxu0 0.0
      %1148 = vmatpush1.msra.mxu0 %v1115
      %1149 = vmatprep.subr.mxu0 0.0
      %1150 = vmatpush2.msra.mxu0 0.0
      %1151 = vmatprep.subr.mxu0 0.0
      %1152 = vmatpush2.msra.mxu0 0.0
      %1153 = vmatprep.subr.mxu0 0.0
      %1154 = vmatpush2.msra.mxu0 0.0
      %1155 = vmatprep.subr.mxu0 0.0
      %1156 = vmatpush2.msra.mxu0 0.0
      %1157 = vmatprep.subr.mxu0 0.0
      %1158 = vmatpush2.msra.mxu0 0.0
      %1159 = vmatprep.subr.mxu0 0.0
      %1160 = vmatpush2.msra.mxu0 0.0
      %1161 = vmatprep.subr.mxu0 0.0
      %1162 = vmatpush2.msra.mxu0 0.0
      %1163 = vmatprep.subr.mxu0 0.0
      %1164 = vmatpush2.msra.mxu0 0.0
      %1165 = vmatprep.subr.mxu0 0.0
      %1166 = vmatpush2.msra.mxu0 0.0
      %1167 = vmatprep.subr.mxu0 0.0
      %1168 = vmatpush2.msra.mxu0 0.0
      %1169 = vmatprep.subr.mxu0 0.0
      %1170 = vmatpush2.msra.mxu0 0.0
      %1171 = vmatprep.subr.mxu0 0.0
      %1172 = vmatpush2.msra.mxu0 0.0
      %1173 = vmatprep.subr.mxu0 0.0
      %1174 = vmatpush2.msra.mxu0 0.0
      %1175 = vmatprep.subr.mxu0 0.0
      %1176 = vmatpush2.msra.mxu0 0.0
      %1177 = vmatprep.subr.mxu0 0.0
      %1178 = vmatpush2.msra.mxu0 0.0
      %1179 = vmatprep.subr.mxu0 0.0
      %1180 = vmatpush2.msra.mxu0 0.0
      %1181 = vmatprep.mubr.f32.mxu0 0.0
      %1182 = vmatmul.mubr.f32.gmra.mxu0 %v1111
      %v1183 = vpop.f32.mrf.mxu0
      %v1184 = vadd.f32 %v1107, %v1183
      %v1185 = vpop.f32.mrf.mxu0
      %1186 = vdwg.mxu0
      %1188 = vrot.lane.b32.xlu0 %v1083, 32
      %v1189 = vpop.permute.xlu0 %1188
      %vm1191 = vcmask 261120
      %v1192 = vsel %vm1191, %v1184, %v1189
      %v1193 = vpack.c.bf16 %v1192, %v1192
      %v1201 = vunpack.c.l.b16 %v1069
      %v1202 = vunpack.c.l.b16 %v1070
      %v1203 = vunpack.c.l.b16 %v1071
      %v1204 = vunpack.c.l.b16 %v1072
      %v1205 = vunpack.c.l.b16 %v1073
      %v1206 = vunpack.c.l.b16 %v1074
      %v1207 = vunpack.c.l.b16 %v1075
      %v1208 = vpack.c.b16 %v1202, %v1201
      %v1209 = vpack.c.b16 %v1204, %v1203
      %v1210 = vpack.c.b16 %v1206, %v1205
      %v1211 = vpack.c.b16 %v1207, %v1207
      %vm1212 = vcmask 64512
      %v1214 = vsel %vm1212, %v1208, 0
      %v1217 = vsel %vm1212, %v1209, 0
      %v1220 = vsel %vm1212, %v1210, 0
      %v1223 = vsel %vm1212, %v1211, 0
      %v1226 = vsel %vm1113, %v1193, 0
      %1228 = vmatprep.subr.bf16.mxu0 0
      %1229 = vmatpush1.bf16.msra.mxu0 0
      %1230 = vmatprep.subr.bf16.mxu0 0
      %1231 = vmatpush1.bf16.msra.mxu0 0
      %1232 = vmatprep.subr.bf16.mxu0 0
      %1233 = vmatpush1.bf16.msra.mxu0 0
      %1234 = vmatprep.subr.bf16.mxu0 0
      %1235 = vmatpush1.bf16.msra.mxu0 0
      %1236 = vmatprep.subr.bf16.mxu0 0
      %1237 = vmatpush1.bf16.msra.mxu0 0
      %1238 = vmatprep.subr.bf16.mxu0 0
      %1239 = vmatpush1.bf16.msra.mxu0 0
      %1240 = vmatprep.subr.bf16.mxu0 0
      %1241 = vmatpush1.bf16.msra.mxu0 0
      %1242 = vmatprep.subr.bf16.mxu0 0
      %1243 = vmatpush1.bf16.msra.mxu0 %v1226
      %1244 = vmatprep.subr.bf16.mxu0 0
      %1245 = vmatpush2.bf16.msra.mxu0 0
      %1246 = vmatprep.subr.bf16.mxu0 0
      %1247 = vmatpush2.bf16.msra.mxu0 0
      %1248 = vmatprep.subr.bf16.mxu0 0
      %1249 = vmatpush2.bf16.msra.mxu0 0
      %1250 = vmatprep.subr.bf16.mxu0 0
      %1251 = vmatpush2.bf16.msra.mxu0 0
      %1252 = vmatprep.subr.bf16.mxu0 0
      %1253 = vmatpush2.bf16.msra.mxu0 0
      %1254 = vmatprep.subr.bf16.mxu0 0
      %1255 = vmatpush2.bf16.msra.mxu0 0
      %1256 = vmatprep.subr.bf16.mxu0 0
      %1257 = vmatpush2.bf16.msra.mxu0 0
      %1258 = vmatprep.subr.bf16.mxu0 0
      %1259 = vmatpush2.bf16.msra.mxu0 0
      %1260 = vmatprep.mubr.bf16.mxu0 0
      %1261 = vmatmul.mubr.bf16.gmra.mxu0 %v1214
      %v1262 = vpop.f32.mrf.mxu0
      %v1263 = vadd.f32 0.0, %v1262
      %v1264 = vpop.f32.mrf.mxu0
      %v1265 = vpop.f32.mrf.mxu0
      %v1266 = vadd.f32 0.0, %v1265
      %v1267 = vpop.f32.mrf.mxu0
      %1268 = vmatprep.mubr.bf16.mxu0 0
      %1269 = vmatmul.mubr.bf16.gmra.mxu0 %v1217
      %v1270 = vpop.f32.mrf.mxu0
      %v1271 = vadd.f32 0.0, %v1270
      %v1272 = vpop.f32.mrf.mxu0
      %v1273 = vpop.f32.mrf.mxu0
      %v1274 = vadd.f32 0.0, %v1273
      %v1275 = vpop.f32.mrf.mxu0
      %1276 = vmatprep.mubr.bf16.mxu0 0
      %1277 = vmatmul.mubr.bf16.gmra.mxu0 %v1220
      %v1278 = vpop.f32.mrf.mxu0
      %v1279 = vadd.f32 0.0, %v1278
      %v1280 = vpop.f32.mrf.mxu0
      %v1281 = vpop.f32.mrf.mxu0
      %v1282 = vadd.f32 0.0, %v1281
      %v1283 = vpop.f32.mrf.mxu0
      %1284 = vmatprep.mubr.bf16.mxu0 0
      %1285 = vmatmul.mubr.bf16.gmra.mxu0 %v1223
      %v1286 = vpop.f32.mrf.mxu0
      %v1287 = vadd.f32 0.0, %v1286
      %v1288 = vpop.f32.mrf.mxu0
      %v1289 = vpop.f32.mrf.mxu0
      %v1290 = vpop.f32.mrf.mxu0
      %1291 = vdwg.mxu0
      %v1299 = vunpack.c.l.b16 %v1076
      %v1300 = vunpack.c.l.b16 %v1077
      %v1301 = vunpack.c.l.b16 %v1078
      %v1302 = vunpack.c.l.b16 %v1079
      %v1303 = vunpack.c.l.b16 %v1080
      %v1304 = vunpack.c.l.b16 %v1081
      %v1305 = vunpack.c.l.b16 %v1082
      %v1306 = vpack.c.b16 %v1300, %v1299
      %v1307 = vpack.c.b16 %v1302, %v1301
      %v1308 = vpack.c.b16 %v1304, %v1303
      %v1309 = vpack.c.b16 %v1305, %v1305
      %v1311 = vsel %vm1212, %v1306, 0
      %v1314 = vsel %vm1212, %v1307, 0
      %v1317 = vsel %vm1212, %v1308, 0
      %v1320 = vsel %vm1212, %v1309, 0
      %1322 = vmatprep.subr.bf16.mxu0 0
      %1323 = vmatpush1.bf16.msra.mxu0 0
      %1324 = vmatprep.subr.bf16.mxu0 0
      %1325 = vmatpush1.bf16.msra.mxu0 0
      %1326 = vmatprep.subr.bf16.mxu0 0
      %1327 = vmatpush1.bf16.msra.mxu0 0
      %1328 = vmatprep.subr.bf16.mxu0 0
      %1329 = vmatpush1.bf16.msra.mxu0 0
      %1330 = vmatprep.subr.bf16.mxu0 0
      %1331 = vmatpush1.bf16.msra.mxu0 0
      %1332 = vmatprep.subr.bf16.mxu0 0
      %1333 = vmatpush1.bf16.msra.mxu0 0
      %1334 = vmatprep.subr.bf16.mxu0 0
      %1335 = vmatpush1.bf16.msra.mxu0 0
      %1336 = vmatprep.subr.bf16.mxu0 0
      %1337 = vmatpush1.bf16.msra.mxu0 %v1226
      %1338 = vmatprep.subr.bf16.mxu0 0
      %1339 = vmatpush2.bf16.msra.mxu0 0
      %1340 = vmatprep.subr.bf16.mxu0 0
      %1341 = vmatpush2.bf16.msra.mxu0 0
      %1342 = vmatprep.subr.bf16.mxu0 0
      %1343 = vmatpush2.bf16.msra.mxu0 0
      %1344 = vmatprep.subr.bf16.mxu0 0
      %1345 = vmatpush2.bf16.msra.mxu0 0
      %1346 = vmatprep.subr.bf16.mxu0 0
      %1347 = vmatpush2.bf16.msra.mxu0 0
      %1348 = vmatprep.subr.bf16.mxu0 0
      %1349 = vmatpush2.bf16.msra.mxu0 0
      %1350 = vmatprep.subr.bf16.mxu0 0
      %1351 = vmatpush2.bf16.msra.mxu0 0
      %1352 = vmatprep.subr.bf16.mxu0 0
      %1353 = vmatpush2.bf16.msra.mxu0 0
      %1354 = vmatprep.mubr.bf16.mxu0 0
      %1355 = vmatmul.mubr.bf16.gmra.mxu0 %v1311
      %v1356 = vpop.f32.mrf.mxu0
      %v1357 = vadd.f32 0.0, %v1356
      %v1358 = vpop.f32.mrf.mxu0
      %v1359 = vpop.f32.mrf.mxu0
      %v1360 = vadd.f32 0.0, %v1359
      %v1361 = vpop.f32.mrf.mxu0
      %1362 = vmatprep.mubr.bf16.mxu0 0
      %1363 = vmatmul.mubr.bf16.gmra.mxu0 %v1314
      %v1364 = vpop.f32.mrf.mxu0
      %v1365 = vadd.f32 0.0, %v1364
      %v1366 = vpop.f32.mrf.mxu0
      %v1367 = vpop.f32.mrf.mxu0
      %v1368 = vadd.f32 0.0, %v1367
      %v1369 = vpop.f32.mrf.mxu0
      %1370 = vmatprep.mubr.bf16.mxu0 0
      %1371 = vmatmul.mubr.bf16.gmra.mxu0 %v1317
      %v1372 = vpop.f32.mrf.mxu0
      %v1373 = vadd.f32 0.0, %v1372
      %v1374 = vpop.f32.mrf.mxu0
      %v1375 = vpop.f32.mrf.mxu0
      %v1376 = vadd.f32 0.0, %v1375
      %v1377 = vpop.f32.mrf.mxu0
      %1378 = vmatprep.mubr.bf16.mxu0 0
      %1379 = vmatmul.mubr.bf16.gmra.mxu0 %v1320
      %v1380 = vpop.f32.mrf.mxu0
      %v1381 = vadd.f32 0.0, %v1380
      %v1382 = vpop.f32.mrf.mxu0
      %v1383 = vpop.f32.mrf.mxu0
      %v1384 = vpop.f32.mrf.mxu0
      %1385 = vdwg.mxu0
      %v1386 = vsub.f32 %v1263, %v1357
      %v1387 = vsub.f32 %v1266, %v1360
      %v1388 = vsub.f32 %v1271, %v1365
      %v1389 = vsub.f32 %v1274, %v1368
      %v1390 = vsub.f32 %v1279, %v1373
      %v1391 = vsub.f32 %v1282, %v1376
      %v1392 = vsub.f32 %v1287, %v1381
      %v1393 = vmul.f32 %v1386, %v1386
      %v1394 = vmul.f32 %v1387, %v1387
      %v1395 = vmul.f32 %v1388, %v1388
      %v1396 = vmul.f32 %v1389, %v1389
      %v1397 = vmul.f32 %v1390, %v1390
      %v1398 = vmul.f32 %v1391, %v1391
      %v1399 = vmul.f32 %v1392, %v1392
      %1407 = vrot.lane.b32.xlu0 %v1393, 96
      %v1408 = vpop.permute.xlu0 %1407
      %1409 = vrot.lane.b32.xlu0 %v1394, 96
      %v1410 = vpop.permute.xlu0 %1409
      %1411 = vrot.lane.b32.xlu0 %v1395, 96
      %v1412 = vpop.permute.xlu0 %1411
      %1413 = vrot.lane.b32.xlu0 %v1396, 96
      %v1414 = vpop.permute.xlu0 %1413
      %1415 = vrot.lane.b32.xlu0 %v1397, 96
      %v1416 = vpop.permute.xlu0 %1415
      %1417 = vrot.lane.b32.xlu0 %v1398, 96
      %v1418 = vpop.permute.xlu0 %1417
      %1419 = vrot.lane.b32.xlu0 %v1399, 96
      %v1420 = vpop.permute.xlu0 %1419
      %vm1428 = vcmask 23552
      %v1429 = vsel %vm1428, %v1408, 0.0
      %1430 = vadd.xlane.f32.xlu0 %v1429
      %v1431 = vpop.xlane.xlu0 %1430
      %v1432 = vsel %vm1428, %v1410, 0.0
      %1433 = vadd.xlane.f32.xlu0 %v1432
      %v1434 = vpop.xlane.xlu0 %1433
      %v1435 = vsel %vm1428, %v1412, 0.0
      %1436 = vadd.xlane.f32.xlu0 %v1435
      %v1437 = vpop.xlane.xlu0 %1436
      %v1438 = vsel %vm1428, %v1414, 0.0
      %1439 = vadd.xlane.f32.xlu0 %v1438
      %v1440 = vpop.xlane.xlu0 %1439
      %v1441 = vsel %vm1428, %v1416, 0.0
      %1442 = vadd.xlane.f32.xlu0 %v1441
      %v1443 = vpop.xlane.xlu0 %1442
      %v1444 = vsel %vm1428, %v1418, 0.0
      %1445 = vadd.xlane.f32.xlu0 %v1444
      %v1446 = vpop.xlane.xlu0 %1445
      %v1447 = vsel %vm1428, %v1420, 0.0
      %1448 = vadd.xlane.f32.xlu0 %v1447
      %v1449 = vpop.xlane.xlu0 %1448
      %1457 = vrot.lane.b32.xlu0 %v1357, 35
      %v1458 = vpop.permute.xlu0 %1457
      %1459 = vrot.lane.b32.xlu0 %v1360, 35
      %v1460 = vpop.permute.xlu0 %1459
      %1461 = vrot.lane.b32.xlu0 %v1365, 35
      %v1462 = vpop.permute.xlu0 %1461
      %1463 = vrot.lane.b32.xlu0 %v1368, 35
      %v1464 = vpop.permute.xlu0 %1463
      %1465 = vrot.lane.b32.xlu0 %v1373, 35
      %v1466 = vpop.permute.xlu0 %1465
      %1467 = vrot.lane.b32.xlu0 %v1376, 35
      %v1468 = vpop.permute.xlu0 %1467
      %1469 = vrot.lane.b32.xlu0 %v1381, 35
      %v1470 = vpop.permute.xlu0 %1469
      %1485 = vrot.lane.b32.xlu0 %v1084, 71
      %v1486 = vpop.permute.xlu0 %1485
      %1487 = vrot.lane.b32.xlu0 %v1085, 71
      %v1488 = vpop.permute.xlu0 %1487
      %1489 = vrot.lane.b32.xlu0 %v1086, 71
      %v1490 = vpop.permute.xlu0 %1489
      %1491 = vrot.lane.b32.xlu0 %v1087, 71
      %v1492 = vpop.permute.xlu0 %1491
      %1493 = vrot.lane.b32.xlu0 %v1088, 71
      %v1494 = vpop.permute.xlu0 %1493
      %1495 = vrot.lane.b32.xlu0 %v1089, 71
      %v1496 = vpop.permute.xlu0 %1495
      %1497 = vrot.lane.b32.xlu0 %v1090, 71
      %v1498 = vpop.permute.xlu0 %1497
      %vm1506 = vcmask 285696
      %v1507 = vsel %vm1506, %v1263, %v1458
      %v1508 = vsel %vm1506, %v1266, %v1460
      %v1509 = vsel %vm1506, %v1271, %v1462
      %v1510 = vsel %vm1506, %v1274, %v1464
      %v1511 = vsel %vm1506, %v1279, %v1466
      %v1512 = vsel %vm1506, %v1282, %v1468
      %v1513 = vsel %vm1506, %v1287, %v1470
      %vm1514 = vcmask 572416
      %v1515 = vsel %vm1514, %v1507, %v1431
      %v1516 = vsel %vm1514, %v1508, %v1434
      %v1517 = vsel %vm1514, %v1509, %v1437
      %v1518 = vsel %vm1514, %v1510, %v1440
      %v1519 = vsel %vm1514, %v1511, %v1443
      %v1520 = vsel %vm1514, %v1512, %v1446
      %v1521 = vsel %vm1514, %v1513, %v1449
      %vm1522 = vcmask 580608
      %v1523 = vsel %vm1522, %v1515, %v1486
      %v1524 = vsel %vm1522, %v1516, %v1488
      %v1525 = vsel %vm1522, %v1517, %v1490
      %v1526 = vsel %vm1522, %v1518, %v1492
      %v1527 = vsel %vm1522, %v1519, %v1494
      %v1528 = vsel %vm1522, %v1520, %v1496
      %v1529 = vsel %vm1522, %v1521, %v1498
      %v1530 = vld [vmem:[%s21] sm:$0xff]
      %v1531 = vld [vmem:[%s21 + $0x8] sm:$0xff]
      %v1532 = vld [vmem:[%s21 + $0x10] sm:$0xff]
      %v1533 = vld [vmem:[%s21 + $0x18] sm:$0xff]
      %v1534 = vld [vmem:[%s21 + $0x20] sm:$0xff]
      %v1535 = vld [vmem:[%s21 + $0x28] sm:$0xff]
      %v1536 = vld [vmem:[%s21 + $0x30] sm:$0xff]
      %v1537 = vld [vmem:[%s21 + $0x38] sm:$0xff]
      %v1538 = vld [vmem:[%s21 + $0x40] sm:$0xff]
      %v1539 = vld [vmem:[%s21 + $0x48] sm:$0x1]
      %v1540 = vld [vmem:[%s23] sm:$0x1]
      %v1542 = vlaneseq
      %v1543 = vshrl.u32 %v1542, 7
      %v1544 = vsub.s32 0, %v1543
      %v1545 = vrot.slane %v1540, %v1544
      %vm1547 = vcmask 596992
      %v1549 = vsel %vm1547, %v1523, 0
      %v1552 = vsel %vm1547, %v1524, 0
      %v1555 = vsel %vm1547, %v1525, 0
      %v1558 = vsel %vm1547, %v1526, 0
      %v1561 = vsel %vm1547, %v1527, 0
      %v1564 = vsel %vm1547, %v1528, 0
      %v1567 = vsel %vm1547, %v1529, 0
      %vm1569 = vcmask 1040384
      %v1571 = vsel %vm1569, %v1539, 0
      %1573 = vmatprep.subr.mxu0 0.0
      %1574 = vmatpush1.msra.mxu0 0.0
      %1575 = vmatprep.subr.mxu0 0.0
      %1576 = vmatpush1.msra.mxu0 0.0
      %1577 = vmatprep.subr.mxu0 0.0
      %1578 = vmatpush1.msra.mxu0 0.0
      %1579 = vmatprep.subr.mxu0 0.0
      %1580 = vmatpush1.msra.mxu0 0.0
      %1581 = vmatprep.subr.mxu0 0.0
      %1582 = vmatpush1.msra.mxu0 0.0
      %1583 = vmatprep.subr.mxu0 0.0
      %1584 = vmatpush1.msra.mxu0 0.0
      %1585 = vmatprep.subr.mxu0 0.0
      %1586 = vmatpush1.msra.mxu0 %v1571
      %1587 = vmatprep.subr.mxu0 0.0
      %1588 = vmatpush1.msra.mxu0 %v1538
      %1589 = vmatprep.subr.mxu0 0.0
      %1590 = vmatpush1.msra.mxu0 %v1537
      %1591 = vmatprep.subr.mxu0 0.0
      %1592 = vmatpush1.msra.mxu0 %v1536
      %1593 = vmatprep.subr.mxu0 0.0
      %1594 = vmatpush1.msra.mxu0 %v1535
      %1595 = vmatprep.subr.mxu0 0.0
      %1596 = vmatpush1.msra.mxu0 %v1534
      %1597 = vmatprep.subr.mxu0 0.0
      %1598 = vmatpush1.msra.mxu0 %v1533
      %1599 = vmatprep.subr.mxu0 0.0
      %1600 = vmatpush1.msra.mxu0 %v1532
      %1601 = vmatprep.subr.mxu0 0.0
      %1602 = vmatpush1.msra.mxu0 %v1531
      %1603 = vmatprep.subr.mxu0 0.0
      %1604 = vmatpush1.msra.mxu0 %v1530
      %1605 = vmatprep.subr.mxu0 0.0
      %1606 = vmatpush2.msra.mxu0 0.0
      %1607 = vmatprep.subr.mxu0 0.0
      %1608 = vmatpush2.msra.mxu0 0.0
      %1609 = vmatprep.subr.mxu0 0.0
      %1610 = vmatpush2.msra.mxu0 0.0
      %1611 = vmatprep.subr.mxu0 0.0
      %1612 = vmatpush2.msra.mxu0 0.0
      %1613 = vmatprep.subr.mxu0 0.0
      %1614 = vmatpush2.msra.mxu0 0.0
      %1615 = vmatprep.subr.mxu0 0.0
      %1616 = vmatpush2.msra.mxu0 0.0
      %1617 = vmatprep.subr.mxu0 0.0
      %1618 = vmatpush2.msra.mxu0 0.0
      %1619 = vmatprep.subr.mxu0 0.0
      %1620 = vmatpush2.msra.mxu0 0.0
      %1621 = vmatprep.subr.mxu0 0.0
      %1622 = vmatpush2.msra.mxu0 0.0
      %1623 = vmatprep.subr.mxu0 0.0
      %1624 = vmatpush2.msra.mxu0 0.0
      %1625 = vmatprep.subr.mxu0 0.0
      %1626 = vmatpush2.msra.mxu0 0.0
      %1627 = vmatprep.subr.mxu0 0.0
      %1628 = vmatpush2.msra.mxu0 0.0
      %1629 = vmatprep.subr.mxu0 0.0
      %1630 = vmatpush2.msra.mxu0 0.0
      %1631 = vmatprep.subr.mxu0 0.0
      %1632 = vmatpush2.msra.mxu0 0.0
      %1633 = vmatprep.subr.mxu0 0.0
      %1634 = vmatpush2.msra.mxu0 0.0
      %1635 = vmatprep.subr.mxu0 0.0
      %1636 = vmatpush2.msra.mxu0 0.0
      %1637 = vmatprep.mubr.f32.mxu0 0.0
      %1638 = vmatmul.mubr.f32.gmra.mxu0 %v1549
      %v1639 = vpop.f32.mrf.mxu0
      %v1640 = vadd.f32 %v1545, %v1639
      %v1641 = vpop.f32.mrf.mxu0
      %1642 = vmatprep.mubr.f32.mxu0 0.0
      %1643 = vmatmul.mubr.f32.gmra.mxu0 %v1552
      %v1644 = vpop.f32.mrf.mxu0
      %v1645 = vadd.f32 %v1545, %v1644
      %v1646 = vpop.f32.mrf.mxu0
      %1647 = vmatprep.mubr.f32.mxu0 0.0
      %1648 = vmatmul.mubr.f32.gmra.mxu0 %v1555
      %v1649 = vpop.f32.mrf.mxu0
      %v1650 = vadd.f32 %v1545, %v1649
      %v1651 = vpop.f32.mrf.mxu0
      %1652 = vmatprep.mubr.f32.mxu0 0.0
      %1653 = vmatmul.mubr.f32.gmra.mxu0 %v1558
      %v1654 = vpop.f32.mrf.mxu0
      %v1655 = vadd.f32 %v1545, %v1654
      %v1656 = vpop.f32.mrf.mxu0
      %1657 = vmatprep.mubr.f32.mxu0 0.0
      %1658 = vmatmul.mubr.f32.gmra.mxu0 %v1561
      %v1659 = vpop.f32.mrf.mxu0
      %v1660 = vadd.f32 %v1545, %v1659
      %v1661 = vpop.f32.mrf.mxu0
      %1662 = vmatprep.mubr.f32.mxu0 0.0
      %1663 = vmatmul.mubr.f32.gmra.mxu0 %v1564
      %v1664 = vpop.f32.mrf.mxu0
      %v1665 = vadd.f32 %v1545, %v1664
      %v1666 = vpop.f32.mrf.mxu0
      %1667 = vmatprep.mubr.f32.mxu0 0.0
      %1668 = vmatmul.mubr.f32.gmra.mxu0 %v1567
      %v1669 = vpop.f32.mrf.mxu0
      %v1670 = vadd.f32 %v1545, %v1669
      %v1671 = vpop.f32.mrf.mxu0
      %1672 = vdwg.mxu0
      %v1673 = vxor.u32 %v1640, 2147483648
      %v1674 = vxor.u32 %v1645, 2147483648
      %v1675 = vxor.u32 %v1650, 2147483648
      %v1676 = vxor.u32 %v1655, 2147483648
      %v1677 = vxor.u32 %v1660, 2147483648
      %v1678 = vxor.u32 %v1665, 2147483648
      %v1679 = vxor.u32 %v1670, 2147483648
      %v1680 = vmul.f32 %v1673, 1.442695
      %v1681 = vpow.pop %v1680
      %v1682 = vmul.f32 %v1674, 1.442695
      %v1683 = vpow.pop %v1682
      %v1684 = vmul.f32 %v1675, 1.442695
      %v1685 = vpow.pop %v1684
      %v1686 = vmul.f32 %v1676, 1.442695
      %v1687 = vpow.pop %v1686
      %v1688 = vmul.f32 %v1677, 1.442695
      %v1689 = vpow.pop %v1688
      %v1690 = vmul.f32 %v1678, 1.442695
      %v1691 = vpow.pop %v1690
      %v1692 = vmul.f32 %v1679, 1.442695
      %v1693 = vpow.pop %v1692
      %v1694 = vadd.f32 %v1681, 1.0
      %v1695 = vadd.f32 %v1683, 1.0
      %v1696 = vadd.f32 %v1685, 1.0
      %v1697 = vadd.f32 %v1687, 1.0
      %v1698 = vadd.f32 %v1689, 1.0
      %v1699 = vadd.f32 %v1691, 1.0
      %v1700 = vadd.f32 %v1693, 1.0
      %v1701 = vrcp.pop %v1694
      %v1702 = vmul.f32 1.0, %v1701
      %v1703 = vrcp.pop %v1695
      %v1704 = vmul.f32 1.0, %v1703
      %v1705 = vrcp.pop %v1696
      %v1706 = vmul.f32 1.0, %v1705
      %v1707 = vrcp.pop %v1697
      %v1708 = vmul.f32 1.0, %v1707
      %v1709 = vrcp.pop %v1698
      %v1710 = vmul.f32 1.0, %v1709
      %v1711 = vrcp.pop %v1699
      %v1712 = vmul.f32 1.0, %v1711
      %v1713 = vrcp.pop %v1700
      %v1714 = vmul.f32 1.0, %v1713
      %v1715 = vmul.f32 %v1640, %v1702
      %v1716 = vmul.f32 %v1645, %v1704
      %v1717 = vmul.f32 %v1650, %v1706
      %v1718 = vmul.f32 %v1655, %v1708
      %v1719 = vmul.f32 %v1660, %v1710
      %v1720 = vmul.f32 %v1665, %v1712
      %v1721 = vmul.f32 %v1670, %v1714
      %v1722 = vld [vmem:[%s25] sm:$0xff]
      %v1723 = vld [vmem:[%s25 + $0x8] sm:$0xff]
      %v1724 = vld [vmem:[%s25 + $0x10] sm:$0xff]
      %v1725 = vld [vmem:[%s25 + $0x18] sm:$0xff]
      %v1726 = vld [vmem:[%s27] sm:$0x1]
      %v1728 = vlaneseq
      %v1729 = vshrl.u32 %v1728, 7
      %v1730 = vsub.s32 0, %v1729
      %v1731 = vrot.slane %v1726, %v1730
      %v1734 = vsel %vm1191, %v1715, 0
      %v1737 = vsel %vm1191, %v1716, 0
      %v1740 = vsel %vm1191, %v1717, 0
      %v1743 = vsel %vm1191, %v1718, 0
      %v1746 = vsel %vm1191, %v1719, 0
      %v1749 = vsel %vm1191, %v1720, 0
      %v1752 = vsel %vm1191, %v1721, 0
      %1754 = vmatprep.subr.mxu0 0.0
      %1755 = vmatpush1.msra.mxu0 0.0
      %1756 = vmatprep.subr.mxu0 0.0
      %1757 = vmatpush1.msra.mxu0 0.0
      %1758 = vmatprep.subr.mxu0 0.0
      %1759 = vmatpush1.msra.mxu0 0.0
      %1760 = vmatprep.subr.mxu0 0.0
      %1761 = vmatpush1.msra.mxu0 0.0
      %1762 = vmatprep.subr.mxu0 0.0
      %1763 = vmatpush1.msra.mxu0 0.0
      %1764 = vmatprep.subr.mxu0 0.0
      %1765 = vmatpush1.msra.mxu0 0.0
      %1766 = vmatprep.subr.mxu0 0.0
      %1767 = vmatpush1.msra.mxu0 0.0
      %1768 = vmatprep.subr.mxu0 0.0
      %1769 = vmatpush1.msra.mxu0 0.0
      %1770 = vmatprep.subr.mxu0 0.0
      %1771 = vmatpush1.msra.mxu0 0.0
      %1772 = vmatprep.subr.mxu0 0.0
      %1773 = vmatpush1.msra.mxu0 0.0
      %1774 = vmatprep.subr.mxu0 0.0
      %1775 = vmatpush1.msra.mxu0 0.0
      %1776 = vmatprep.subr.mxu0 0.0
      %1777 = vmatpush1.msra.mxu0 0.0
      %1778 = vmatprep.subr.mxu0 0.0
      %1779 = vmatpush1.msra.mxu0 %v1725
      %1780 = vmatprep.subr.mxu0 0.0
      %1781 = vmatpush1.msra.mxu0 %v1724
      %1782 = vmatprep.subr.mxu0 0.0
      %1783 = vmatpush1.msra.mxu0 %v1723
      %1784 = vmatprep.subr.mxu0 0.0
      %1785 = vmatpush1.msra.mxu0 %v1722
      %1786 = vmatprep.subr.mxu0 0.0
      %1787 = vmatpush2.msra.mxu0 0.0
      %1788 = vmatprep.subr.mxu0 0.0
      %1789 = vmatpush2.msra.mxu0 0.0
      %1790 = vmatprep.subr.mxu0 0.0
      %1791 = vmatpush2.msra.mxu0 0.0
      %1792 = vmatprep.subr.mxu0 0.0
      %1793 = vmatpush2.msra.mxu0 0.0
      %1794 = vmatprep.subr.mxu0 0.0
      %1795 = vmatpush2.msra.mxu0 0.0
      %1796 = vmatprep.subr.mxu0 0.0
      %1797 = vmatpush2.msra.mxu0 0.0
      %1798 = vmatprep.subr.mxu0 0.0
      %1799 = vmatpush2.msra.mxu0 0.0
      %1800 = vmatprep.subr.mxu0 0.0
      %1801 = vmatpush2.msra.mxu0 0.0
      %1802 = vmatprep.subr.mxu0 0.0
      %1803 = vmatpush2.msra.mxu0 0.0
      %1804 = vmatprep.subr.mxu0 0.0
      %1805 = vmatpush2.msra.mxu0 0.0
      %1806 = vmatprep.subr.mxu0 0.0
      %1807 = vmatpush2.msra.mxu0 0.0
      %1808 = vmatprep.subr.mxu0 0.0
      %1809 = vmatpush2.msra.mxu0 0.0
      %1810 = vmatprep.subr.mxu0 0.0
      %1811 = vmatpush2.msra.mxu0 0.0
      %1812 = vmatprep.subr.mxu0 0.0
      %1813 = vmatpush2.msra.mxu0 0.0
      %1814 = vmatprep.subr.mxu0 0.0
      %1815 = vmatpush2.msra.mxu0 0.0
      %1816 = vmatprep.subr.mxu0 0.0
      %1817 = vmatpush2.msra.mxu0 0.0
      %1818 = vmatprep.mubr.f32.mxu0 0.0
      %1819 = vmatmul.mubr.f32.gmra.mxu0 %v1734
      %v1820 = vpop.f32.mrf.mxu0
      %v1821 = vadd.f32 %v1731, %v1820
      %v1822 = vpop.f32.mrf.mxu0
      %1823 = vmatprep.mubr.f32.mxu0 0.0
      %1824 = vmatmul.mubr.f32.gmra.mxu0 %v1737
      %v1825 = vpop.f32.mrf.mxu0
      %v1826 = vadd.f32 %v1731, %v1825
      %v1827 = vpop.f32.mrf.mxu0
      %1828 = vmatprep.mubr.f32.mxu0 0.0
      %1829 = vmatmul.mubr.f32.gmra.mxu0 %v1740
      %v1830 = vpop.f32.mrf.mxu0
      %v1831 = vadd.f32 %v1731, %v1830
      %v1832 = vpop.f32.mrf.mxu0
      %1833 = vmatprep.mubr.f32.mxu0 0.0
      %1834 = vmatmul.mubr.f32.gmra.mxu0 %v1743
      %v1835 = vpop.f32.mrf.mxu0
      %v1836 = vadd.f32 %v1731, %v1835
      %v1837 = vpop.f32.mrf.mxu0
      %1838 = vmatprep.mubr.f32.mxu0 0.0
      %1839 = vmatmul.mubr.f32.gmra.mxu0 %v1746
      %v1840 = vpop.f32.mrf.mxu0
      %v1841 = vadd.f32 %v1731, %v1840
      %v1842 = vpop.f32.mrf.mxu0
      %1843 = vmatprep.mubr.f32.mxu0 0.0
      %1844 = vmatmul.mubr.f32.gmra.mxu0 %v1749
      %v1845 = vpop.f32.mrf.mxu0
      %v1846 = vadd.f32 %v1731, %v1845
      %v1847 = vpop.f32.mrf.mxu0
      %1848 = vmatprep.mubr.f32.mxu0 0.0
      %1849 = vmatmul.mubr.f32.gmra.mxu0 %v1752
      %v1850 = vpop.f32.mrf.mxu0
      %v1851 = vadd.f32 %v1731, %v1850
      %v1852 = vpop.f32.mrf.mxu0
      %1853 = vdwg.mxu0
      %v1854 = vxor.u32 %v1821, 2147483648
      %v1855 = vxor.u32 %v1826, 2147483648
      %v1856 = vxor.u32 %v1831, 2147483648
      %v1857 = vxor.u32 %v1836, 2147483648
      %v1858 = vxor.u32 %v1841, 2147483648
      %v1859 = vxor.u32 %v1846, 2147483648
      %v1860 = vxor.u32 %v1851, 2147483648
      %v1861 = vmul.f32 %v1854, 1.442695
      %v1862 = vpow.pop %v1861
      %v1863 = vmul.f32 %v1855, 1.442695
      %v1864 = vpow.pop %v1863
      %v1865 = vmul.f32 %v1856, 1.442695
      %v1866 = vpow.pop %v1865
      %v1867 = vmul.f32 %v1857, 1.442695
      %v1868 = vpow.pop %v1867
      %v1869 = vmul.f32 %v1858, 1.442695
      %v1870 = vpow.pop %v1869
      %v1871 = vmul.f32 %v1859, 1.442695
      %v1872 = vpow.pop %v1871
      %v1873 = vmul.f32 %v1860, 1.442695
      %v1874 = vpow.pop %v1873
      %v1875 = vadd.f32 %v1862, 1.0
      %v1876 = vadd.f32 %v1864, 1.0
      %v1877 = vadd.f32 %v1866, 1.0
      %v1878 = vadd.f32 %v1868, 1.0
      %v1879 = vadd.f32 %v1870, 1.0
      %v1880 = vadd.f32 %v1872, 1.0
      %v1881 = vadd.f32 %v1874, 1.0
      %v1882 = vrcp.pop %v1875
      %v1883 = vmul.f32 1.0, %v1882
      %v1884 = vrcp.pop %v1876
      %v1885 = vmul.f32 1.0, %v1884
      %v1886 = vrcp.pop %v1877
      %v1887 = vmul.f32 1.0, %v1886
      %v1888 = vrcp.pop %v1878
      %v1889 = vmul.f32 1.0, %v1888
      %v1890 = vrcp.pop %v1879
      %v1891 = vmul.f32 1.0, %v1890
      %v1892 = vrcp.pop %v1880
      %v1893 = vmul.f32 1.0, %v1892
      %v1894 = vrcp.pop %v1881
      %v1895 = vmul.f32 1.0, %v1894
      %v1896 = vmul.f32 %v1821, %v1883
      %v1897 = vmul.f32 %v1826, %v1885
      %v1898 = vmul.f32 %v1831, %v1887
      %v1899 = vmul.f32 %v1836, %v1889
      %v1900 = vmul.f32 %v1841, %v1891
      %v1901 = vmul.f32 %v1846, %v1893
      %v1902 = vmul.f32 %v1851, %v1895
      %1904 = vset.pattern.permute.xlu0 0
      %1905 = vperm.xlu0 %1904, %v1091
      %v1906 = vpop.permute.xlu0 %1905
      %1909 = vset.pattern.permute.xlu0 0
      %1910 = vperm.xlu0 %1909, %v1092
      %v1911 = vpop.permute.xlu0 %1910
      %1914 = vset.pattern.permute.xlu0 0
      %1915 = vperm.xlu0 %1914, %v1093
      %v1916 = vpop.permute.xlu0 %1915
      %1919 = vset.pattern.permute.xlu0 0
      %1920 = vperm.xlu0 %1919, %v1094
      %v1921 = vpop.permute.xlu0 %1920
      %1924 = vset.pattern.permute.xlu0 0
      %1925 = vperm.xlu0 %1924, %v1095
      %v1926 = vpop.permute.xlu0 %1925
      %1929 = vset.pattern.permute.xlu0 0
      %1930 = vperm.xlu0 %1929, %v1096
      %v1931 = vpop.permute.xlu0 %1930
      %1934 = vset.pattern.permute.xlu0 0
      %1935 = vperm.xlu0 %1934, %v1097
      %v1936 = vpop.permute.xlu0 %1935
      %v1938 = vmul.f32 %v1896, %v1906
      %v1939 = vmul.f32 %v1897, %v1911
      %v1940 = vmul.f32 %v1898, %v1916
      %v1941 = vmul.f32 %v1899, %v1921
      %v1942 = vmul.f32 %v1900, %v1926
      %v1943 = vmul.f32 %v1901, %v1931
      %v1944 = vmul.f32 %v1902, %v1936
      %v1945 = vpack.c.bf16 %v1939, %v1938
      %v1946 = vpack.c.bf16 %v1941, %v1940
      %v1947 = vpack.c.bf16 %v1943, %v1942
      %v1948 = vpack.c.bf16 %v1944, %v1944
      %1953 = vxpose.xlu0.c.b16.start [1/8] %v1208, 128
      %1954 = vxpose.xlu0.c.b16.cont [2/8] %v1209, 128
      %1955 = vxpose.xlu0.c.b16.cont [3/8] %v1210, 128
      %1956 = vxpose.xlu0.c.b16.cont [4/8] %v1211, 128
      %1957 = vxpose.xlu0.c.b16.cont [5/8] 0, 128
      %1958 = vxpose.xlu0.c.b16.cont [6/8] 0, 128
      %1959 = vxpose.xlu0.c.b16.cont [7/8] 0, 128
      %1960 = vxpose.xlu0.c.b16.end [8/8] 0, 128
      %v1961 = vpop.trf.xlu0
      %v1962 = vpop.trf.xlu0
      %v1963 = vpop.trf.xlu0
      %v1964 = vpop.trf.xlu0
      %v1965 = vpop.trf.xlu0
      %v1966 = vpop.trf.xlu0
      %v1967 = vpop.trf.xlu0
      %v1968 = vpop.trf.xlu0
      %vm1969 = vcmask 457728
      %v1971 = vsel %vm1969, %v1961, 0
      %v1974 = vsel %vm1113, %v1948, 0
      %1976 = vmatprep.subr.bf16.mxu0 0
      %1977 = vmatpush1.bf16.msra.mxu0 0
      %1978 = vmatprep.subr.bf16.mxu0 0
      %1979 = vmatpush1.bf16.msra.mxu0 0
      %1980 = vmatprep.subr.bf16.mxu0 0
      %1981 = vmatpush1.bf16.msra.mxu0 0
      %1982 = vmatprep.subr.bf16.mxu0 0
      %1983 = vmatpush1.bf16.msra.mxu0 0
      %1984 = vmatprep.subr.bf16.mxu0 0
      %1985 = vmatpush1.bf16.msra.mxu0 %v1974
      %1986 = vmatprep.subr.bf16.mxu0 0
      %1987 = vmatpush1.bf16.msra.mxu0 %v1947
      %1988 = vmatprep.subr.bf16.mxu0 0
      %1989 = vmatpush1.bf16.msra.mxu0 %v1946
      %1990 = vmatprep.subr.bf16.mxu0 0
      %1991 = vmatpush1.bf16.msra.mxu0 %v1945
      %1992 = vmatprep.subr.bf16.mxu0 0
      %1993 = vmatpush2.bf16.msra.mxu0 0
      %1994 = vmatprep.subr.bf16.mxu0 0
      %1995 = vmatpush2.bf16.msra.mxu0 0
      %1996 = vmatprep.subr.bf16.mxu0 0
      %1997 = vmatpush2.bf16.msra.mxu0 0
      %1998 = vmatprep.subr.bf16.mxu0 0
      %1999 = vmatpush2.bf16.msra.mxu0 0
      %2000 = vmatprep.subr.bf16.mxu0 0
      %2001 = vmatpush2.bf16.msra.mxu0 0
      %2002 = vmatprep.subr.bf16.mxu0 0
      %2003 = vmatpush2.bf16.msra.mxu0 0
      %2004 = vmatprep.subr.bf16.mxu0 0
      %2005 = vmatpush2.bf16.msra.mxu0 0
      %2006 = vmatprep.subr.bf16.mxu0 0
      %2007 = vmatpush2.bf16.msra.mxu0 0
      %2008 = vmatprep.mubr.bf16.mxu0 0
      %2009 = vmatmul.mubr.bf16.gmra.mxu0 %v1971
      %v2010 = vpop.f32.mrf.mxu0
      %v2011 = vadd.f32 0.0, %v2010
      %v2012 = vpop.f32.mrf.mxu0
      %v2013 = vpop.f32.mrf.mxu0
      %v2014 = vpop.f32.mrf.mxu0
      %2015 = vdwg.mxu0
      %2017 = vrot.lane.b32.xlu0 %v2011, 32
      %v2018 = vpop.permute.xlu0 %2017
      %v2020 = vsel %vm1191, %v1184, %v2018
      %v2021 = vld [vmem:[%s29] sm:$0xff]
      %v2022 = vld [vmem:[%s29 + $0x8] sm:$0xff]
      %v2023 = vld [vmem:[%s29 + $0x10] sm:$0xff]
      %v2024 = vld [vmem:[%s29 + $0x18] sm:$0xff]
      %v2025 = vld [vmem:[%s29 + $0x20] sm:$0xff]
      %v2026 = vld [vmem:[%s29 + $0x28] sm:$0xff]
      %v2027 = vld [vmem:[%s29 + $0x30] sm:$0xff]
      %v2028 = vld [vmem:[%s29 + $0x38] sm:$0xff]
      %v2029 = vld [vmem:[%s31] sm:$0x1]
      %v2031 = vlaneseq
      %v2032 = vshrl.u32 %v2031, 7
      %v2033 = vsub.s32 0, %v2032
      %v2034 = vrot.slane %v2029, %v2033
      %vm2036 = vcmask 523264
      %v2038 = vsel %vm2036, %v2020, 0
      %2040 = vmatprep.subr.mxu0 0.0
      %2041 = vmatpush1.msra.mxu0 0.0
      %2042 = vmatprep.subr.mxu0 0.0
      %2043 = vmatpush1.msra.mxu0 0.0
      %2044 = vmatprep.subr.mxu0 0.0
      %2045 = vmatpush1.msra.mxu0 0.0
      %2046 = vmatprep.subr.mxu0 0.0
      %2047 = vmatpush1.msra.mxu0 0.0
      %2048 = vmatprep.subr.mxu0 0.0
      %2049 = vmatpush1.msra.mxu0 0.0
      %2050 = vmatprep.subr.mxu0 0.0
      %2051 = vmatpush1.msra.mxu0 0.0
      %2052 = vmatprep.subr.mxu0 0.0
      %2053 = vmatpush1.msra.mxu0 0.0
      %2054 = vmatprep.subr.mxu0 0.0
      %2055 = vmatpush1.msra.mxu0 0.0
      %2056 = vmatprep.subr.mxu0 0.0
      %2057 = vmatpush1.msra.mxu0 %v2028
      %2058 = vmatprep.subr.mxu0 0.0
      %2059 = vmatpush1.msra.mxu0 %v2027
      %2060 = vmatprep.subr.mxu0 0.0
      %2061 = vmatpush1.msra.mxu0 %v2026
      %2062 = vmatprep.subr.mxu0 0.0
      %2063 = vmatpush1.msra.mxu0 %v2025
      %2064 = vmatprep.subr.mxu0 0.0
      %2065 = vmatpush1.msra.mxu0 %v2024
      %2066 = vmatprep.subr.mxu0 0.0
      %2067 = vmatpush1.msra.mxu0 %v2023
      %2068 = vmatprep.subr.mxu0 0.0
      %2069 = vmatpush1.msra.mxu0 %v2022
      %2070 = vmatprep.subr.mxu0 0.0
      %2071 = vmatpush1.msra.mxu0 %v2021
      %2072 = vmatprep.subr.mxu0 0.0
      %2073 = vmatpush2.msra.mxu0 0.0
      %2074 = vmatprep.subr.mxu0 0.0
      %2075 = vmatpush2.msra.mxu0 0.0
      %2076 = vmatprep.subr.mxu0 0.0
      %2077 = vmatpush2.msra.mxu0 0.0
      %2078 = vmatprep.subr.mxu0 0.0
      %2079 = vmatpush2.msra.mxu0 0.0
      %2080 = vmatprep.subr.mxu0 0.0
      %2081 = vmatpush2.msra.mxu0 0.0
      %2082 = vmatprep.subr.mxu0 0.0
      %2083 = vmatpush2.msra.mxu0 0.0
      %2084 = vmatprep.subr.mxu0 0.0
      %2085 = vmatpush2.msra.mxu0 0.0
      %2086 = vmatprep.subr.mxu0 0.0
      %2087 = vmatpush2.msra.mxu0 0.0
      %2088 = vmatprep.subr.mxu0 0.0
      %2089 = vmatpush2.msra.mxu0 0.0
      %2090 = vmatprep.subr.mxu0 0.0
      %2091 = vmatpush2.msra.mxu0 0.0
      %2092 = vmatprep.subr.mxu0 0.0
      %2093 = vmatpush2.msra.mxu0 0.0
      %2094 = vmatprep.subr.mxu0 0.0
      %2095 = vmatpush2.msra.mxu0 0.0
      %2096 = vmatprep.subr.mxu0 0.0
      %2097 = vmatpush2.msra.mxu0 0.0
      %2098 = vmatprep.subr.mxu0 0.0
      %2099 = vmatpush2.msra.mxu0 0.0
      %2100 = vmatprep.subr.mxu0 0.0
      %2101 = vmatpush2.msra.mxu0 0.0
      %2102 = vmatprep.subr.mxu0 0.0
      %2103 = vmatpush2.msra.mxu0 0.0
      %2104 = vmatprep.mubr.f32.mxu0 0.0
      %2105 = vmatmul.mubr.f32.gmra.mxu0 %v2038
      %v2106 = vpop.f32.mrf.mxu0
      %v2107 = vadd.f32 %v2034, %v2106
      %v2108 = vpop.f32.mrf.mxu0
      %2109 = vdwg.mxu0
      %v2110 = vxor.u32 %v2107, 2147483648
      %v2111 = vmul.f32 %v2110, 1.442695
      %v2112 = vpow.pop %v2111
      %v2113 = vadd.f32 %v2112, 1.0
      %v2114 = vrcp.pop %v2113
      %v2115 = vmul.f32 1.0, %v2114
      %v2116 = vmul.f32 %v2107, %v2115
      %v2117 = vld [vmem:[%s33] sm:$0xff]
      %v2118 = vld [vmem:[%s33 + $0x8] sm:$0xff]
      %v2119 = vld [vmem:[%s33 + $0x10] sm:$0xff]
      %v2120 = vld [vmem:[%s33 + $0x18] sm:$0xff]
      %v2122 = vsel %vm1191, %v2116, 0
      %2124 = vmatprep.subr.mxu0 0.0
      %2125 = vmatpush1.msra.mxu0 0.0
      %2126 = vmatprep.subr.mxu0 0.0
      %2127 = vmatpush1.msra.mxu0 0.0
      %2128 = vmatprep.subr.mxu0 0.0
      %2129 = vmatpush1.msra.mxu0 0.0
      %2130 = vmatprep.subr.mxu0 0.0
      %2131 = vmatpush1.msra.mxu0 0.0
      %2132 = vmatprep.subr.mxu0 0.0
      %2133 = vmatpush1.msra.mxu0 0.0
      %2134 = vmatprep.subr.mxu0 0.0
      %2135 = vmatpush1.msra.mxu0 0.0
      %2136 = vmatprep.subr.mxu0 0.0
      %2137 = vmatpush1.msra.mxu0 0.0
      %2138 = vmatprep.subr.mxu0 0.0
      %2139 = vmatpush1.msra.mxu0 0.0
      %2140 = vmatprep.subr.mxu0 0.0
      %2141 = vmatpush1.msra.mxu0 0.0
      %2142 = vmatprep.subr.mxu0 0.0
      %2143 = vmatpush1.msra.mxu0 0.0
      %2144 = vmatprep.subr.mxu0 0.0
      %2145 = vmatpush1.msra.mxu0 0.0
      %2146 = vmatprep.subr.mxu0 0.0
      %2147 = vmatpush1.msra.mxu0 0.0
      %2148 = vmatprep.subr.mxu0 0.0
      %2149 = vmatpush1.msra.mxu0 %v2120
      %2150 = vmatprep.subr.mxu0 0.0
      %2151 = vmatpush1.msra.mxu0 %v2119
      %2152 = vmatprep.subr.mxu0 0.0
      %2153 = vmatpush1.msra.mxu0 %v2118
      %2154 = vmatprep.subr.mxu0 0.0
      %2155 = vmatpush1.msra.mxu0 %v2117
      %2156 = vmatprep.subr.mxu0 0.0
      %2157 = vmatpush2.msra.mxu0 0.0
      %2158 = vmatprep.subr.mxu0 0.0
      %2159 = vmatpush2.msra.mxu0 0.0
      %2160 = vmatprep.subr.mxu0 0.0
      %2161 = vmatpush2.msra.mxu0 0.0
      %2162 = vmatprep.subr.mxu0 0.0
      %2163 = vmatpush2.msra.mxu0 0.0
      %2164 = vmatprep.subr.mxu0 0.0
      %2165 = vmatpush2.msra.mxu0 0.0
      %2166 = vmatprep.subr.mxu0 0.0
      %2167 = vmatpush2.msra.mxu0 0.0
      %2168 = vmatprep.subr.mxu0 0.0
      %2169 = vmatpush2.msra.mxu0 0.0
      %2170 = vmatprep.subr.mxu0 0.0
      %2171 = vmatpush2.msra.mxu0 0.0
      %2172 = vmatprep.subr.mxu0 0.0
      %2173 = vmatpush2.msra.mxu0 0.0
      %2174 = vmatprep.subr.mxu0 0.0
      %2175 = vmatpush2.msra.mxu0 0.0
      %2176 = vmatprep.subr.mxu0 0.0
      %2177 = vmatpush2.msra.mxu0 0.0
      %2178 = vmatprep.subr.mxu0 0.0
      %2179 = vmatpush2.msra.mxu0 0.0
      %2180 = vmatprep.subr.mxu0 0.0
      %2181 = vmatpush2.msra.mxu0 0.0
      %2182 = vmatprep.subr.mxu0 0.0
      %2183 = vmatpush2.msra.mxu0 0.0
      %2184 = vmatprep.subr.mxu0 0.0
      %2185 = vmatpush2.msra.mxu0 0.0
      %2186 = vmatprep.subr.mxu0 0.0
      %2187 = vmatpush2.msra.mxu0 0.0
      %2188 = vmatprep.mubr.f32.mxu0 0.0
      %2189 = vmatmul.mubr.f32.gmra.mxu0 %v2122
      %v2190 = vpop.f32.mrf.mxu0
      %v2191 = vadd.f32 0.0, %v2190
      %v2192 = vpop.f32.mrf.mxu0
      %2193 = vdwg.mxu0
      %v2194 = vadd.f32 %v1184, %v2191
      %v2195 = vld [vmem:[%s35] sm:$0x1]
      %v2197 = vlaneseq
      %v2198 = vshrl.u32 %v2197, 7
      %v2199 = vsub.s32 0, %v2198
      %v2200 = vrot.slane %v2195, %v2199
      %v2202 = vadd.f32 %v2194, %v2200
      %v2203 = vsel %vm1191, %v2202, %v1189
      %v2204 = vpack.c.bf16 %v2203, %v2203
      %v2206 = vsel %vm1113, %v2204, 0
      %2208 = vmatprep.subr.bf16.mxu0 0
      %2209 = vmatpush1.bf16.msra.mxu0 0
      %2210 = vmatprep.subr.bf16.mxu0 0
      %2211 = vmatpush1.bf16.msra.mxu0 0
      %2212 = vmatprep.subr.bf16.mxu0 0
      %2213 = vmatpush1.bf16.msra.mxu0 0
      %2214 = vmatprep.subr.bf16.mxu0 0
      %2215 = vmatpush1.bf16.msra.mxu0 0
      %2216 = vmatprep.subr.bf16.mxu0 0
      %2217 = vmatpush1.bf16.msra.mxu0 0
      %2218 = vmatprep.subr.bf16.mxu0 0
      %2219 = vmatpush1.bf16.msra.mxu0 0
      %2220 = vmatprep.subr.bf16.mxu0 0
      %2221 = vmatpush1.bf16.msra.mxu0 0
      %2222 = vmatprep.subr.bf16.mxu0 0
      %2223 = vmatpush1.bf16.msra.mxu0 %v2206
      %2224 = vmatprep.subr.bf16.mxu0 0
      %2225 = vmatpush2.bf16.msra.mxu0 0
      %2226 = vmatprep.subr.bf16.mxu0 0
      %2227 = vmatpush2.bf16.msra.mxu0 0
      %2228 = vmatprep.subr.bf16.mxu0 0
      %2229 = vmatpush2.bf16.msra.mxu0 0
      %2230 = vmatprep.subr.bf16.mxu0 0
      %2231 = vmatpush2.bf16.msra.mxu0 0
      %2232 = vmatprep.subr.bf16.mxu0 0
      %2233 = vmatpush2.bf16.msra.mxu0 0
      %2234 = vmatprep.subr.bf16.mxu0 0
      %2235 = vmatpush2.bf16.msra.mxu0 0
      %2236 = vmatprep.subr.bf16.mxu0 0
      %2237 = vmatpush2.bf16.msra.mxu0 0
      %2238 = vmatprep.subr.bf16.mxu0 0
      %2239 = vmatpush2.bf16.msra.mxu0 0
      %2240 = vmatprep.mubr.bf16.mxu0 0
      %2241 = vmatmul.mubr.bf16.gmra.mxu0 %v1214
      %v2242 = vpop.f32.mrf.mxu0
      %v2243 = vadd.f32 0.0, %v2242
      %v2244 = vpop.f32.mrf.mxu0
      %v2245 = vpop.f32.mrf.mxu0
      %v2246 = vadd.f32 0.0, %v2245
      %v2247 = vpop.f32.mrf.mxu0
      %2248 = vmatprep.mubr.bf16.mxu0 0
      %2249 = vmatmul.mubr.bf16.gmra.mxu0 %v1217
      %v2250 = vpop.f32.mrf.mxu0
      %v2251 = vadd.f32 0.0, %v2250
      %v2252 = vpop.f32.mrf.mxu0
      %v2253 = vpop.f32.mrf.mxu0
      %v2254 = vadd.f32 0.0, %v2253
      %v2255 = vpop.f32.mrf.mxu0
      %2256 = vmatprep.mubr.bf16.mxu0 0
      %2257 = vmatmul.mubr.bf16.gmra.mxu0 %v1220
      %v2258 = vpop.f32.mrf.mxu0
      %v2259 = vadd.f32 0.0, %v2258
      %v2260 = vpop.f32.mrf.mxu0
      %v2261 = vpop.f32.mrf.mxu0
      %v2262 = vadd.f32 0.0, %v2261
      %v2263 = vpop.f32.mrf.mxu0
      %2264 = vmatprep.mubr.bf16.mxu0 0
      %2265 = vmatmul.mubr.bf16.gmra.mxu0 %v1223
      %v2266 = vpop.f32.mrf.mxu0
      %v2267 = vadd.f32 0.0, %v2266
      %v2268 = vpop.f32.mrf.mxu0
      %v2269 = vpop.f32.mrf.mxu0
      %v2270 = vpop.f32.mrf.mxu0
      %2271 = vdwg.mxu0
      %2272 = vmatprep.subr.bf16.mxu0 0
      %2273 = vmatpush1.bf16.msra.mxu0 0
      %2274 = vmatprep.subr.bf16.mxu0 0
      %2275 = vmatpush1.bf16.msra.mxu0 0
      %2276 = vmatprep.subr.bf16.mxu0 0
      %2277 = vmatpush1.bf16.msra.mxu0 0
      %2278 = vmatprep.subr.bf16.mxu0 0
      %2279 = vmatpush1.bf16.msra.mxu0 0
      %2280 = vmatprep.subr.bf16.mxu0 0
      %2281 = vmatpush1.bf16.msra.mxu0 0
      %2282 = vmatprep.subr.bf16.mxu0 0
      %2283 = vmatpush1.bf16.msra.mxu0 0
      %2284 = vmatprep.subr.bf16.mxu0 0
      %2285 = vmatpush1.bf16.msra.mxu0 0
      %2286 = vmatprep.subr.bf16.mxu0 0
      %2287 = vmatpush1.bf16.msra.mxu0 %v2206
      %2288 = vmatprep.subr.bf16.mxu0 0
      %2289 = vmatpush2.bf16.msra.mxu0 0
      %2290 = vmatprep.subr.bf16.mxu0 0
      %2291 = vmatpush2.bf16.msra.mxu0 0
      %2292 = vmatprep.subr.bf16.mxu0 0
      %2293 = vmatpush2.bf16.msra.mxu0 0
      %2294 = vmatprep.subr.bf16.mxu0 0
      %2295 = vmatpush2.bf16.msra.mxu0 0
      %2296 = vmatprep.subr.bf16.mxu0 0
      %2297 = vmatpush2.bf16.msra.mxu0 0
      %2298 = vmatprep.subr.bf16.mxu0 0
      %2299 = vmatpush2.bf16.msra.mxu0 0
      %2300 = vmatprep.subr.bf16.mxu0 0
      %2301 = vmatpush2.bf16.msra.mxu0 0
      %2302 = vmatprep.subr.bf16.mxu0 0
      %2303 = vmatpush2.bf16.msra.mxu0 0
      %2304 = vmatprep.mubr.bf16.mxu0 0
      %2305 = vmatmul.mubr.bf16.gmra.mxu0 %v1311
      %v2306 = vpop.f32.mrf.mxu0
      %v2307 = vadd.f32 0.0, %v2306
      %v2308 = vpop.f32.mrf.mxu0
      %v2309 = vpop.f32.mrf.mxu0
      %v2310 = vadd.f32 0.0, %v2309
      %v2311 = vpop.f32.mrf.mxu0
      %2312 = vmatprep.mubr.bf16.mxu0 0
      %2313 = vmatmul.mubr.bf16.gmra.mxu0 %v1314
      %v2314 = vpop.f32.mrf.mxu0
      %v2315 = vadd.f32 0.0, %v2314
      %v2316 = vpop.f32.mrf.mxu0
      %v2317 = vpop.f32.mrf.mxu0
      %v2318 = vadd.f32 0.0, %v2317
      %v2319 = vpop.f32.mrf.mxu0
      %2320 = vmatprep.mubr.bf16.mxu0 0
      %2321 = vmatmul.mubr.bf16.gmra.mxu0 %v1317
      %v2322 = vpop.f32.mrf.mxu0
      %v2323 = vadd.f32 0.0, %v2322
      %v2324 = vpop.f32.mrf.mxu0
      %v2325 = vpop.f32.mrf.mxu0
      %v2326 = vadd.f32 0.0, %v2325
      %v2327 = vpop.f32.mrf.mxu0
      %2328 = vmatprep.mubr.bf16.mxu0 0
      %2329 = vmatmul.mubr.bf16.gmra.mxu0 %v1320
      %v2330 = vpop.f32.mrf.mxu0
      %v2331 = vadd.f32 0.0, %v2330
      %v2332 = vpop.f32.mrf.mxu0
      %v2333 = vpop.f32.mrf.mxu0
      %v2334 = vpop.f32.mrf.mxu0
      %2335 = vdwg.mxu0
      %v2336 = vsub.f32 %v2243, %v2307
      %v2337 = vsub.f32 %v2246, %v2310
      %v2338 = vsub.f32 %v2251, %v2315
      %v2339 = vsub.f32 %v2254, %v2318
      %v2340 = vsub.f32 %v2259, %v2323
      %v2341 = vsub.f32 %v2262, %v2326
      %v2342 = vsub.f32 %v2267, %v2331
      %v2343 = vmul.f32 %v2336, %v2336
      %v2344 = vmul.f32 %v2337, %v2337
      %v2345 = vmul.f32 %v2338, %v2338
      %v2346 = vmul.f32 %v2339, %v2339
      %v2347 = vmul.f32 %v2340, %v2340
      %v2348 = vmul.f32 %v2341, %v2341
      %v2349 = vmul.f32 %v2342, %v2342
      %2357 = vrot.lane.b32.xlu0 %v2343, 96
      %v2358 = vpop.permute.xlu0 %2357
      %2359 = vrot.lane.b32.xlu0 %v2344, 96
      %v2360 = vpop.permute.xlu0 %2359
      %2361 = vrot.lane.b32.xlu0 %v2345, 96
      %v2362 = vpop.permute.xlu0 %2361
      %2363 = vrot.lane.b32.xlu0 %v2346, 96
      %v2364 = vpop.permute.xlu0 %2363
      %2365 = vrot.lane.b32.xlu0 %v2347, 96
      %v2366 = vpop.permute.xlu0 %2365
      %2367 = vrot.lane.b32.xlu0 %v2348, 96
      %v2368 = vpop.permute.xlu0 %2367
      %2369 = vrot.lane.b32.xlu0 %v2349, 96
      %v2370 = vpop.permute.xlu0 %2369
      %v2378 = vsel %vm1428, %v2358, 0.0
      %2379 = vadd.xlane.f32.xlu0 %v2378
      %v2380 = vpop.xlane.xlu0 %2379
      %v2381 = vsel %vm1428, %v2360, 0.0
      %2382 = vadd.xlane.f32.xlu0 %v2381
      %v2383 = vpop.xlane.xlu0 %2382
      %v2384 = vsel %vm1428, %v2362, 0.0
      %2385 = vadd.xlane.f32.xlu0 %v2384
      %v2386 = vpop.xlane.xlu0 %2385
      %v2387 = vsel %vm1428, %v2364, 0.0
      %2388 = vadd.xlane.f32.xlu0 %v2387
      %v2389 = vpop.xlane.xlu0 %2388
      %v2390 = vsel %vm1428, %v2366, 0.0
      %2391 = vadd.xlane.f32.xlu0 %v2390
      %v2392 = vpop.xlane.xlu0 %2391
      %v2393 = vsel %vm1428, %v2368, 0.0
      %2394 = vadd.xlane.f32.xlu0 %v2393
      %v2395 = vpop.xlane.xlu0 %2394
      %v2396 = vsel %vm1428, %v2370, 0.0
      %2397 = vadd.xlane.f32.xlu0 %v2396
      %v2398 = vpop.xlane.xlu0 %2397
      %2406 = vrot.lane.b32.xlu0 %v2307, 35
      %v2407 = vpop.permute.xlu0 %2406
      %2408 = vrot.lane.b32.xlu0 %v2310, 35
      %v2409 = vpop.permute.xlu0 %2408
      %2410 = vrot.lane.b32.xlu0 %v2315, 35
      %v2411 = vpop.permute.xlu0 %2410
      %2412 = vrot.lane.b32.xlu0 %v2318, 35
      %v2413 = vpop.permute.xlu0 %2412
      %2414 = vrot.lane.b32.xlu0 %v2323, 35
      %v2415 = vpop.permute.xlu0 %2414
      %2416 = vrot.lane.b32.xlu0 %v2326, 35
      %v2417 = vpop.permute.xlu0 %2416
      %2418 = vrot.lane.b32.xlu0 %v2331, 35
      %v2419 = vpop.permute.xlu0 %2418
      %v2427 = vsel %vm1506, %v2243, %v2407
      %v2428 = vsel %vm1506, %v2246, %v2409
      %v2429 = vsel %vm1506, %v2251, %v2411
      %v2430 = vsel %vm1506, %v2254, %v2413
      %v2431 = vsel %vm1506, %v2259, %v2415
      %v2432 = vsel %vm1506, %v2262, %v2417
      %v2433 = vsel %vm1506, %v2267, %v2419
      %v2434 = vsel %vm1514, %v2427, %v2380
      %v2435 = vsel %vm1514, %v2428, %v2383
      %v2436 = vsel %vm1514, %v2429, %v2386
      %v2437 = vsel %vm1514, %v2430, %v2389
      %v2438 = vsel %vm1514, %v2431, %v2392
      %v2439 = vsel %vm1514, %v2432, %v2395
      %v2440 = vsel %vm1514, %v2433, %v2398
      %v2441 = vsel %vm1522, %v2434, %v1486
      %v2442 = vsel %vm1522, %v2435, %v1488
      %v2443 = vsel %vm1522, %v2436, %v1490
      %v2444 = vsel %vm1522, %v2437, %v1492
      %v2445 = vsel %vm1522, %v2438, %v1494
      %v2446 = vsel %vm1522, %v2439, %v1496
      %v2447 = vsel %vm1522, %v2440, %v1498
      %s2448 = scalar_lea.vmem %s21, 80
      %v2449 = vld [vmem:[%s2448] sm:$0xff]
      %v2450 = vld [vmem:[%s2448 + $0x8] sm:$0xff]
      %v2451 = vld [vmem:[%s2448 + $0x10] sm:$0xff]
      %v2452 = vld [vmem:[%s2448 + $0x18] sm:$0xff]
      %v2453 = vld [vmem:[%s2448 + $0x20] sm:$0xff]
      %v2454 = vld [vmem:[%s2448 + $0x28] sm:$0xff]
      %v2455 = vld [vmem:[%s2448 + $0x30] sm:$0xff]
      %v2456 = vld [vmem:[%s2448 + $0x38] sm:$0xff]
      %v2457 = vld [vmem:[%s2448 + $0x40] sm:$0xff]
      %v2458 = vld [vmem:[%s2448 + $0x48] sm:$0x1]
      %s2459 = scalar_lea.vmem %s23, 1
      %v2460 = vld [vmem:[%s2459] sm:$0x1]
      %v2462 = vlaneseq
      %v2463 = vshrl.u32 %v2462, 7
      %v2464 = vsub.s32 0, %v2463
      %v2465 = vrot.slane %v2460, %v2464
      %v2468 = vsel %vm1547, %v2441, 0
      %v2471 = vsel %vm1547, %v2442, 0
      %v2474 = vsel %vm1547, %v2443, 0
      %v2477 = vsel %vm1547, %v2444, 0
      %v2480 = vsel %vm1547, %v2445, 0
      %v2483 = vsel %vm1547, %v2446, 0
      %v2486 = vsel %vm1547, %v2447, 0
      %v2489 = vsel %vm1569, %v2458, 0
      %2491 = vmatprep.subr.mxu0 0.0
      %2492 = vmatpush1.msra.mxu0 0.0
      %2493 = vmatprep.subr.mxu0 0.0
      %2494 = vmatpush1.msra.mxu0 0.0
      %2495 = vmatprep.subr.mxu0 0.0
      %2496 = vmatpush1.msra.mxu0 0.0
      %2497 = vmatprep.subr.mxu0 0.0
      %2498 = vmatpush1.msra.mxu0 0.0
      %2499 = vmatprep.subr.mxu0 0.0
      %2500 = vmatpush1.msra.mxu0 0.0
      %2501 = vmatprep.subr.mxu0 0.0
      %2502 = vmatpush1.msra.mxu0 0.0
      %2503 = vmatprep.subr.mxu0 0.0
      %2504 = vmatpush1.msra.mxu0 %v2489
      %2505 = vmatprep.subr.mxu0 0.0
      %2506 = vmatpush1.msra.mxu0 %v2457
      %2507 = vmatprep.subr.mxu0 0.0
      %2508 = vmatpush1.msra.mxu0 %v2456
      %2509 = vmatprep.subr.mxu0 0.0
      %2510 = vmatpush1.msra.mxu0 %v2455
      %2511 = vmatprep.subr.mxu0 0.0
      %2512 = vmatpush1.msra.mxu0 %v2454
      %2513 = vmatprep.subr.mxu0 0.0
      %2514 = vmatpush1.msra.mxu0 %v2453
      %2515 = vmatprep.subr.mxu0 0.0
      %2516 = vmatpush1.msra.mxu0 %v2452
      %2517 = vmatprep.subr.mxu0 0.0
      %2518 = vmatpush1.msra.mxu0 %v2451
      %2519 = vmatprep.subr.mxu0 0.0
      %2520 = vmatpush1.msra.mxu0 %v2450
      %2521 = vmatprep.subr.mxu0 0.0
      %2522 = vmatpush1.msra.mxu0 %v2449
      %2523 = vmatprep.subr.mxu0 0.0
      %2524 = vmatpush2.msra.mxu0 0.0
      %2525 = vmatprep.subr.mxu0 0.0
      %2526 = vmatpush2.msra.mxu0 0.0
      %2527 = vmatprep.subr.mxu0 0.0
      %2528 = vmatpush2.msra.mxu0 0.0
      %2529 = vmatprep.subr.mxu0 0.0
      %2530 = vmatpush2.msra.mxu0 0.0
      %2531 = vmatprep.subr.mxu0 0.0
      %2532 = vmatpush2.msra.mxu0 0.0
      %2533 = vmatprep.subr.mxu0 0.0
      %2534 = vmatpush2.msra.mxu0 0.0
      %2535 = vmatprep.subr.mxu0 0.0
      %2536 = vmatpush2.msra.mxu0 0.0
      %2537 = vmatprep.subr.mxu0 0.0
      %2538 = vmatpush2.msra.mxu0 0.0
      %2539 = vmatprep.subr.mxu0 0.0
      %2540 = vmatpush2.msra.mxu0 0.0
      %2541 = vmatprep.subr.mxu0 0.0
      %2542 = vmatpush2.msra.mxu0 0.0
      %2543 = vmatprep.subr.mxu0 0.0
      %2544 = vmatpush2.msra.mxu0 0.0
      %2545 = vmatprep.subr.mxu0 0.0
      %2546 = vmatpush2.msra.mxu0 0.0
      %2547 = vmatprep.subr.mxu0 0.0
      %2548 = vmatpush2.msra.mxu0 0.0
      %2549 = vmatprep.subr.mxu0 0.0
      %2550 = vmatpush2.msra.mxu0 0.0
      %2551 = vmatprep.subr.mxu0 0.0
      %2552 = vmatpush2.msra.mxu0 0.0
      %2553 = vmatprep.subr.mxu0 0.0
      %2554 = vmatpush2.msra.mxu0 0.0
      %2555 = vmatprep.mubr.f32.mxu0 0.0
      %2556 = vmatmul.mubr.f32.gmra.mxu0 %v2468
      %v2557 = vpop.f32.mrf.mxu0
      %v2558 = vadd.f32 %v2465, %v2557
      %v2559 = vpop.f32.mrf.mxu0
      %2560 = vmatprep.mubr.f32.mxu0 0.0
      %2561 = vmatmul.mubr.f32.gmra.mxu0 %v2471
      %v2562 = vpop.f32.mrf.mxu0
      %v2563 = vadd.f32 %v2465, %v2562
      %v2564 = vpop.f32.mrf.mxu0
      %2565 = vmatprep.mubr.f32.mxu0 0.0
      %2566 = vmatmul.mubr.f32.gmra.mxu0 %v2474
      %v2567 = vpop.f32.mrf.mxu0
      %v2568 = vadd.f32 %v2465, %v2567
      %v2569 = vpop.f32.mrf.mxu0
      %2570 = vmatprep.mubr.f32.mxu0 0.0
      %2571 = vmatmul.mubr.f32.gmra.mxu0 %v2477
      %v2572 = vpop.f32.mrf.mxu0
      %v2573 = vadd.f32 %v2465, %v2572
      %v2574 = vpop.f32.mrf.mxu0
      %2575 = vmatprep.mubr.f32.mxu0 0.0
      %2576 = vmatmul.mubr.f32.gmra.mxu0 %v2480
      %v2577 = vpop.f32.mrf.mxu0
      %v2578 = vadd.f32 %v2465, %v2577
      %v2579 = vpop.f32.mrf.mxu0
      %2580 = vmatprep.mubr.f32.mxu0 0.0
      %2581 = vmatmul.mubr.f32.gmra.mxu0 %v2483
      %v2582 = vpop.f32.mrf.mxu0
      %v2583 = vadd.f32 %v2465, %v2582
      %v2584 = vpop.f32.mrf.mxu0
      %2585 = vmatprep.mubr.f32.mxu0 0.0
      %2586 = vmatmul.mubr.f32.gmra.mxu0 %v2486
      %v2587 = vpop.f32.mrf.mxu0
      %v2588 = vadd.f32 %v2465, %v2587
      %v2589 = vpop.f32.mrf.mxu0
      %2590 = vdwg.mxu0
      %v2591 = vxor.u32 %v2558, 2147483648
      %v2592 = vxor.u32 %v2563, 2147483648
      %v2593 = vxor.u32 %v2568, 2147483648
      %v2594 = vxor.u32 %v2573, 2147483648
      %v2595 = vxor.u32 %v2578, 2147483648
      %v2596 = vxor.u32 %v2583, 2147483648
      %v2597 = vxor.u32 %v2588, 2147483648
      %v2598 = vmul.f32 %v2591, 1.442695
      %v2599 = vpow.pop %v2598
      %v2600 = vmul.f32 %v2592, 1.442695
      %v2601 = vpow.pop %v2600
      %v2602 = vmul.f32 %v2593, 1.442695
      %v2603 = vpow.pop %v2602
      %v2604 = vmul.f32 %v2594, 1.442695
      %v2605 = vpow.pop %v2604
      %v2606 = vmul.f32 %v2595, 1.442695
      %v2607 = vpow.pop %v2606
      %v2608 = vmul.f32 %v2596, 1.442695
      %v2609 = vpow.pop %v2608
      %v2610 = vmul.f32 %v2597, 1.442695
      %v2611 = vpow.pop %v2610
      %v2612 = vadd.f32 %v2599, 1.0
      %v2613 = vadd.f32 %v2601, 1.0
      %v2614 = vadd.f32 %v2603, 1.0
      %v2615 = vadd.f32 %v2605, 1.0
      %v2616 = vadd.f32 %v2607, 1.0
      %v2617 = vadd.f32 %v2609, 1.0
      %v2618 = vadd.f32 %v2611, 1.0
      %v2619 = vrcp.pop %v2612
      %v2620 = vmul.f32 1.0, %v2619
      %v2621 = vrcp.pop %v2613
      %v2622 = vmul.f32 1.0, %v2621
      %v2623 = vrcp.pop %v2614
      %v2624 = vmul.f32 1.0, %v2623
      %v2625 = vrcp.pop %v2615
      %v2626 = vmul.f32 1.0, %v2625
      %v2627 = vrcp.pop %v2616
      %v2628 = vmul.f32 1.0, %v2627
      %v2629 = vrcp.pop %v2617
      %v2630 = vmul.f32 1.0, %v2629
      %v2631 = vrcp.pop %v2618
      %v2632 = vmul.f32 1.0, %v2631
      %v2633 = vmul.f32 %v2558, %v2620
      %v2634 = vmul.f32 %v2563, %v2622
      %v2635 = vmul.f32 %v2568, %v2624
      %v2636 = vmul.f32 %v2573, %v2626
      %v2637 = vmul.f32 %v2578, %v2628
      %v2638 = vmul.f32 %v2583, %v2630
      %v2639 = vmul.f32 %v2588, %v2632
      %s2640 = scalar_lea.vmem %s25, 32
      %v2641 = vld [vmem:[%s2640] sm:$0xff]
      %v2642 = vld [vmem:[%s2640 + $0x8] sm:$0xff]
      %v2643 = vld [vmem:[%s2640 + $0x10] sm:$0xff]
      %v2644 = vld [vmem:[%s2640 + $0x18] sm:$0xff]
      %s2645 = scalar_lea.vmem %s27, 1
      %v2646 = vld [vmem:[%s2645] sm:$0x1]
      %v2648 = vlaneseq
      %v2649 = vshrl.u32 %v2648, 7
      %v2650 = vsub.s32 0, %v2649
      %v2651 = vrot.slane %v2646, %v2650
      %v2654 = vsel %vm1191, %v2633, 0
      %v2657 = vsel %vm1191, %v2634, 0
      %v2660 = vsel %vm1191, %v2635, 0
      %v2663 = vsel %vm1191, %v2636, 0
      %v2666 = vsel %vm1191, %v2637, 0
      %v2669 = vsel %vm1191, %v2638, 0
      %v2672 = vsel %vm1191, %v2639, 0
      %2674 = vmatprep.subr.mxu0 0.0
      %2675 = vmatpush1.msra.mxu0 0.0
      %2676 = vmatprep.subr.mxu0 0.0
      %2677 = vmatpush1.msra.mxu0 0.0
      %2678 = vmatprep.subr.mxu0 0.0
      %2679 = vmatpush1.msra.mxu0 0.0
      %2680 = vmatprep.subr.mxu0 0.0
      %2681 = vmatpush1.msra.mxu0 0.0
      %2682 = vmatprep.subr.mxu0 0.0
      %2683 = vmatpush1.msra.mxu0 0.0
      %2684 = vmatprep.subr.mxu0 0.0
      %2685 = vmatpush1.msra.mxu0 0.0
      %2686 = vmatprep.subr.mxu0 0.0
      %2687 = vmatpush1.msra.mxu0 0.0
      %2688 = vmatprep.subr.mxu0 0.0
      %2689 = vmatpush1.msra.mxu0 0.0
      %2690 = vmatprep.subr.mxu0 0.0
      %2691 = vmatpush1.msra.mxu0 0.0
      %2692 = vmatprep.subr.mxu0 0.0
      %2693 = vmatpush1.msra.mxu0 0.0
      %2694 = vmatprep.subr.mxu0 0.0
      %2695 = vmatpush1.msra.mxu0 0.0
      %2696 = vmatprep.subr.mxu0 0.0
      %2697 = vmatpush1.msra.mxu0 0.0
      %2698 = vmatprep.subr.mxu0 0.0
      %2699 = vmatpush1.msra.mxu0 %v2644
      %2700 = vmatprep.subr.mxu0 0.0
      %2701 = vmatpush1.msra.mxu0 %v2643
      %2702 = vmatprep.subr.mxu0 0.0
      %2703 = vmatpush1.msra.mxu0 %v2642
      %2704 = vmatprep.subr.mxu0 0.0
      %2705 = vmatpush1.msra.mxu0 %v2641
      %2706 = vmatprep.subr.mxu0 0.0
      %2707 = vmatpush2.msra.mxu0 0.0
      %2708 = vmatprep.subr.mxu0 0.0
      %2709 = vmatpush2.msra.mxu0 0.0
      %2710 = vmatprep.subr.mxu0 0.0
      %2711 = vmatpush2.msra.mxu0 0.0
      %2712 = vmatprep.subr.mxu0 0.0
      %2713 = vmatpush2.msra.mxu0 0.0
      %2714 = vmatprep.subr.mxu0 0.0
      %2715 = vmatpush2.msra.mxu0 0.0
      %2716 = vmatprep.subr.mxu0 0.0
      %2717 = vmatpush2.msra.mxu0 0.0
      %2718 = vmatprep.subr.mxu0 0.0
      %2719 = vmatpush2.msra.mxu0 0.0
      %2720 = vmatprep.subr.mxu0 0.0
      %2721 = vmatpush2.msra.mxu0 0.0
      %2722 = vmatprep.subr.mxu0 0.0
      %2723 = vmatpush2.msra.mxu0 0.0
      %2724 = vmatprep.subr.mxu0 0.0
      %2725 = vmatpush2.msra.mxu0 0.0
      %2726 = vmatprep.subr.mxu0 0.0
      %2727 = vmatpush2.msra.mxu0 0.0
      %2728 = vmatprep.subr.mxu0 0.0
      %2729 = vmatpush2.msra.mxu0 0.0
      %2730 = vmatprep.subr.mxu0 0.0
      %2731 = vmatpush2.msra.mxu0 0.0
      %2732 = vmatprep.subr.mxu0 0.0
      %2733 = vmatpush2.msra.mxu0 0.0
      %2734 = vmatprep.subr.mxu0 0.0
      %2735 = vmatpush2.msra.mxu0 0.0
      %2736 = vmatprep.subr.mxu0 0.0
      %2737 = vmatpush2.msra.mxu0 0.0
      %2738 = vmatprep.mubr.f32.mxu0 0.0
      %2739 = vmatmul.mubr.f32.gmra.mxu0 %v2654
      %v2740 = vpop.f32.mrf.mxu0
      %v2741 = vadd.f32 %v2651, %v2740
      %v2742 = vpop.f32.mrf.mxu0
      %2743 = vmatprep.mubr.f32.mxu0 0.0
      %2744 = vmatmul.mubr.f32.gmra.mxu0 %v2657
      %v2745 = vpop.f32.mrf.mxu0
      %v2746 = vadd.f32 %v2651, %v2745
      %v2747 = vpop.f32.mrf.mxu0
      %2748 = vmatprep.mubr.f32.mxu0 0.0
      %2749 = vmatmul.mubr.f32.gmra.mxu0 %v2660
      %v2750 = vpop.f32.mrf.mxu0
      %v2751 = vadd.f32 %v2651, %v2750
      %v2752 = vpop.f32.mrf.mxu0
      %2753 = vmatprep.mubr.f32.mxu0 0.0
      %2754 = vmatmul.mubr.f32.gmra.mxu0 %v2663
      %v2755 = vpop.f32.mrf.mxu0
      %v2756 = vadd.f32 %v2651, %v2755
      %v2757 = vpop.f32.mrf.mxu0
      %2758 = vmatprep.mubr.f32.mxu0 0.0
      %2759 = vmatmul.mubr.f32.gmra.mxu0 %v2666
      %v2760 = vpop.f32.mrf.mxu0
      %v2761 = vadd.f32 %v2651, %v2760
      %v2762 = vpop.f32.mrf.mxu0
      %2763 = vmatprep.mubr.f32.mxu0 0.0
      %2764 = vmatmul.mubr.f32.gmra.mxu0 %v2669
      %v2765 = vpop.f32.mrf.mxu0
      %v2766 = vadd.f32 %v2651, %v2765
      %v2767 = vpop.f32.mrf.mxu0
      %2768 = vmatprep.mubr.f32.mxu0 0.0
      %2769 = vmatmul.mubr.f32.gmra.mxu0 %v2672
      %v2770 = vpop.f32.mrf.mxu0
      %v2771 = vadd.f32 %v2651, %v2770
      %v2772 = vpop.f32.mrf.mxu0
      %2773 = vdwg.mxu0
      %v2774 = vxor.u32 %v2741, 2147483648
      %v2775 = vxor.u32 %v2746, 2147483648
      %v2776 = vxor.u32 %v2751, 2147483648
      %v2777 = vxor.u32 %v2756, 2147483648
      %v2778 = vxor.u32 %v2761, 2147483648
      %v2779 = vxor.u32 %v2766, 2147483648
      %v2780 = vxor.u32 %v2771, 2147483648
      %v2781 = vmul.f32 %v2774, 1.442695
      %v2782 = vpow.pop %v2781
      %v2783 = vmul.f32 %v2775, 1.442695
      %v2784 = vpow.pop %v2783
      %v2785 = vmul.f32 %v2776, 1.442695
      %v2786 = vpow.pop %v2785
      %v2787 = vmul.f32 %v2777, 1.442695
      %v2788 = vpow.pop %v2787
      %v2789 = vmul.f32 %v2778, 1.442695
      %v2790 = vpow.pop %v2789
      %v2791 = vmul.f32 %v2779, 1.442695
      %v2792 = vpow.pop %v2791
      %v2793 = vmul.f32 %v2780, 1.442695
      %v2794 = vpow.pop %v2793
      %v2795 = vadd.f32 %v2782, 1.0
      %v2796 = vadd.f32 %v2784, 1.0
      %v2797 = vadd.f32 %v2786, 1.0
      %v2798 = vadd.f32 %v2788, 1.0
      %v2799 = vadd.f32 %v2790, 1.0
      %v2800 = vadd.f32 %v2792, 1.0
      %v2801 = vadd.f32 %v2794, 1.0
      %v2802 = vrcp.pop %v2795
      %v2803 = vmul.f32 1.0, %v2802
      %v2804 = vrcp.pop %v2796
      %v2805 = vmul.f32 1.0, %v2804
      %v2806 = vrcp.pop %v2797
      %v2807 = vmul.f32 1.0, %v2806
      %v2808 = vrcp.pop %v2798
      %v2809 = vmul.f32 1.0, %v2808
      %v2810 = vrcp.pop %v2799
      %v2811 = vmul.f32 1.0, %v2810
      %v2812 = vrcp.pop %v2800
      %v2813 = vmul.f32 1.0, %v2812
      %v2814 = vrcp.pop %v2801
      %v2815 = vmul.f32 1.0, %v2814
      %v2816 = vmul.f32 %v2741, %v2803
      %v2817 = vmul.f32 %v2746, %v2805
      %v2818 = vmul.f32 %v2751, %v2807
      %v2819 = vmul.f32 %v2756, %v2809
      %v2820 = vmul.f32 %v2761, %v2811
      %v2821 = vmul.f32 %v2766, %v2813
      %v2822 = vmul.f32 %v2771, %v2815
      %v2823 = vmul.f32 %v2816, %v1906
      %v2824 = vmul.f32 %v2817, %v1911
      %v2825 = vmul.f32 %v2818, %v1916
      %v2826 = vmul.f32 %v2819, %v1921
      %v2827 = vmul.f32 %v2820, %v1926
      %v2828 = vmul.f32 %v2821, %v1931
      %v2829 = vmul.f32 %v2822, %v1936
      %v2830 = vpack.c.bf16 %v2824, %v2823
      %v2831 = vpack.c.bf16 %v2826, %v2825
      %v2832 = vpack.c.bf16 %v2828, %v2827
      %v2833 = vpack.c.bf16 %v2829, %v2829
      %v2835 = vsel %vm1113, %v2833, 0
      %2837 = vmatprep.subr.bf16.mxu0 0
      %2838 = vmatpush1.bf16.msra.mxu0 0
      %2839 = vmatprep.subr.bf16.mxu0 0
      %2840 = vmatpush1.bf16.msra.mxu0 0
      %2841 = vmatprep.subr.bf16.mxu0 0
      %2842 = vmatpush1.bf16.msra.mxu0 0
      %2843 = vmatprep.subr.bf16.mxu0 0
      %2844 = vmatpush1.bf16.msra.mxu0 0
      %2845 = vmatprep.subr.bf16.mxu0 0
      %2846 = vmatpush1.bf16.msra.mxu0 %v2835
      %2847 = vmatprep.subr.bf16.mxu0 0
      %2848 = vmatpush1.bf16.msra.mxu0 %v2832
      %2849 = vmatprep.subr.bf16.mxu0 0
      %2850 = vmatpush1.bf16.msra.mxu0 %v2831
      %2851 = vmatprep.subr.bf16.mxu0 0
      %2852 = vmatpush1.bf16.msra.mxu0 %v2830
      %2853 = vmatprep.subr.bf16.mxu0 0
      %2854 = vmatpush2.bf16.msra.mxu0 0
      %2855 = vmatprep.subr.bf16.mxu0 0
      %2856 = vmatpush2.bf16.msra.mxu0 0
      %2857 = vmatprep.subr.bf16.mxu0 0
      %2858 = vmatpush2.bf16.msra.mxu0 0
      %2859 = vmatprep.subr.bf16.mxu0 0
      %2860 = vmatpush2.bf16.msra.mxu0 0
      %2861 = vmatprep.subr.bf16.mxu0 0
      %2862 = vmatpush2.bf16.msra.mxu0 0
      %2863 = vmatprep.subr.bf16.mxu0 0
      %2864 = vmatpush2.bf16.msra.mxu0 0
      %2865 = vmatprep.subr.bf16.mxu0 0
      %2866 = vmatpush2.bf16.msra.mxu0 0
      %2867 = vmatprep.subr.bf16.mxu0 0
      %2868 = vmatpush2.bf16.msra.mxu0 0
      %2869 = vmatprep.mubr.bf16.mxu0 0
      %2870 = vmatmul.mubr.bf16.gmra.mxu0 %v1971
      %v2871 = vpop.f32.mrf.mxu0
      %v2872 = vadd.f32 0.0, %v2871
      %v2873 = vpop.f32.mrf.mxu0
      %v2874 = vpop.f32.mrf.mxu0
      %v2875 = vpop.f32.mrf.mxu0
      %2876 = vdwg.mxu0
      %2878 = vrot.lane.b32.xlu0 %v2872, 32
      %v2879 = vpop.permute.xlu0 %2878
      %v2881 = vsel %vm1191, %v2202, %v2879
      %s2882 = scalar_lea.vmem %s29, 64
      %v2883 = vld [vmem:[%s2882] sm:$0xff]
      %v2884 = vld [vmem:[%s2882 + $0x8] sm:$0xff]
      %v2885 = vld [vmem:[%s2882 + $0x10] sm:$0xff]
      %v2886 = vld [vmem:[%s2882 + $0x18] sm:$0xff]
      %v2887 = vld [vmem:[%s2882 + $0x20] sm:$0xff]
      %v2888 = vld [vmem:[%s2882 + $0x28] sm:$0xff]
      %v2889 = vld [vmem:[%s2882 + $0x30] sm:$0xff]
      %v2890 = vld [vmem:[%s2882 + $0x38] sm:$0xff]
      %s2891 = scalar_lea.vmem %s31, 1
      %v2892 = vld [vmem:[%s2891] sm:$0x1]
      %v2894 = vlaneseq
      %v2895 = vshrl.u32 %v2894, 7
      %v2896 = vsub.s32 0, %v2895
      %v2897 = vrot.slane %v2892, %v2896
      %v2900 = vsel %vm2036, %v2881, 0
      %2902 = vmatprep.subr.mxu0 0.0
      %2903 = vmatpush1.msra.mxu0 0.0
      %2904 = vmatprep.subr.mxu0 0.0
      %2905 = vmatpush1.msra.mxu0 0.0
      %2906 = vmatprep.subr.mxu0 0.0
      %2907 = vmatpush1.msra.mxu0 0.0
      %2908 = vmatprep.subr.mxu0 0.0
      %2909 = vmatpush1.msra.mxu0 0.0
      %2910 = vmatprep.subr.mxu0 0.0
      %2911 = vmatpush1.msra.mxu0 0.0
      %2912 = vmatprep.subr.mxu0 0.0
      %2913 = vmatpush1.msra.mxu0 0.0
      %2914 = vmatprep.subr.mxu0 0.0
      %2915 = vmatpush1.msra.mxu0 0.0
      %2916 = vmatprep.subr.mxu0 0.0
      %2917 = vmatpush1.msra.mxu0 0.0
      %2918 = vmatprep.subr.mxu0 0.0
      %2919 = vmatpush1.msra.mxu0 %v2890
      %2920 = vmatprep.subr.mxu0 0.0
      %2921 = vmatpush1.msra.mxu0 %v2889
      %2922 = vmatprep.subr.mxu0 0.0
      %2923 = vmatpush1.msra.mxu0 %v2888
      %2924 = vmatprep.subr.mxu0 0.0
      %2925 = vmatpush1.msra.mxu0 %v2887
      %2926 = vmatprep.subr.mxu0 0.0
      %2927 = vmatpush1.msra.mxu0 %v2886
      %2928 = vmatprep.subr.mxu0 0.0
      %2929 = vmatpush1.msra.mxu0 %v2885
      %2930 = vmatprep.subr.mxu0 0.0
      %2931 = vmatpush1.msra.mxu0 %v2884
      %2932 = vmatprep.subr.mxu0 0.0
      %2933 = vmatpush1.msra.mxu0 %v2883
      %2934 = vmatprep.subr.mxu0 0.0
      %2935 = vmatpush2.msra.mxu0 0.0
      %2936 = vmatprep.subr.mxu0 0.0
      %2937 = vmatpush2.msra.mxu0 0.0
      %2938 = vmatprep.subr.mxu0 0.0
      %2939 = vmatpush2.msra.mxu0 0.0
      %2940 = vmatprep.subr.mxu0 0.0
      %2941 = vmatpush2.msra.mxu0 0.0
      %2942 = vmatprep.subr.mxu0 0.0
      %2943 = vmatpush2.msra.mxu0 0.0
      %2944 = vmatprep.subr.mxu0 0.0
      %2945 = vmatpush2.msra.mxu0 0.0
      %2946 = vmatprep.subr.mxu0 0.0
      %2947 = vmatpush2.msra.mxu0 0.0
      %2948 = vmatprep.subr.mxu0 0.0
      %2949 = vmatpush2.msra.mxu0 0.0
      %2950 = vmatprep.subr.mxu0 0.0
      %2951 = vmatpush2.msra.mxu0 0.0
      %2952 = vmatprep.subr.mxu0 0.0
      %2953 = vmatpush2.msra.mxu0 0.0
      %2954 = vmatprep.subr.mxu0 0.0
      %2955 = vmatpush2.msra.mxu0 0.0
      %2956 = vmatprep.subr.mxu0 0.0
      %2957 = vmatpush2.msra.mxu0 0.0
      %2958 = vmatprep.subr.mxu0 0.0
      %2959 = vmatpush2.msra.mxu0 0.0
      %2960 = vmatprep.subr.mxu0 0.0
      %2961 = vmatpush2.msra.mxu0 0.0
      %2962 = vmatprep.subr.mxu0 0.0
      %2963 = vmatpush2.msra.mxu0 0.0
      %2964 = vmatprep.subr.mxu0 0.0
      %2965 = vmatpush2.msra.mxu0 0.0
      %2966 = vmatprep.mubr.f32.mxu0 0.0
      %2967 = vmatmul.mubr.f32.gmra.mxu0 %v2900
      %v2968 = vpop.f32.mrf.mxu0
      %v2969 = vadd.f32 %v2897, %v2968
      %v2970 = vpop.f32.mrf.mxu0
      %2971 = vdwg.mxu0
      %v2972 = vxor.u32 %v2969, 2147483648
      %v2973 = vmul.f32 %v2972, 1.442695
      %v2974 = vpow.pop %v2973
      %v2975 = vadd.f32 %v2974, 1.0
      %v2976 = vrcp.pop %v2975
      %v2977 = vmul.f32 1.0, %v2976
      %v2978 = vmul.f32 %v2969, %v2977
      %s2979 = scalar_lea.vmem %s33, 32
      %v2980 = vld [vmem:[%s2979] sm:$0xff]
      %v2981 = vld [vmem:[%s2979 + $0x8] sm:$0xff]
      %v2982 = vld [vmem:[%s2979 + $0x10] sm:$0xff]
      %v2983 = vld [vmem:[%s2979 + $0x18] sm:$0xff]
      %v2985 = vsel %vm1191, %v2978, 0
      %2987 = vmatprep.subr.mxu0 0.0
      %2988 = vmatpush1.msra.mxu0 0.0
      %2989 = vmatprep.subr.mxu0 0.0
      %2990 = vmatpush1.msra.mxu0 0.0
      %2991 = vmatprep.subr.mxu0 0.0
      %2992 = vmatpush1.msra.mxu0 0.0
      %2993 = vmatprep.subr.mxu0 0.0
      %2994 = vmatpush1.msra.mxu0 0.0
      %2995 = vmatprep.subr.mxu0 0.0
      %2996 = vmatpush1.msra.mxu0 0.0
      %2997 = vmatprep.subr.mxu0 0.0
      %2998 = vmatpush1.msra.mxu0 0.0
      %2999 = vmatprep.subr.mxu0 0.0
      %3000 = vmatpush1.msra.mxu0 0.0
      %3001 = vmatprep.subr.mxu0 0.0
      %3002 = vmatpush1.msra.mxu0 0.0
      %3003 = vmatprep.subr.mxu0 0.0
      %3004 = vmatpush1.msra.mxu0 0.0
      %3005 = vmatprep.subr.mxu0 0.0
      %3006 = vmatpush1.msra.mxu0 0.0
      %3007 = vmatprep.subr.mxu0 0.0
      %3008 = vmatpush1.msra.mxu0 0.0
      %3009 = vmatprep.subr.mxu0 0.0
      %3010 = vmatpush1.msra.mxu0 0.0
      %3011 = vmatprep.subr.mxu0 0.0
      %3012 = vmatpush1.msra.mxu0 %v2983
      %3013 = vmatprep.subr.mxu0 0.0
      %3014 = vmatpush1.msra.mxu0 %v2982
      %3015 = vmatprep.subr.mxu0 0.0
      %3016 = vmatpush1.msra.mxu0 %v2981
      %3017 = vmatprep.subr.mxu0 0.0
      %3018 = vmatpush1.msra.mxu0 %v2980
      %3019 = vmatprep.subr.mxu0 0.0
      %3020 = vmatpush2.msra.mxu0 0.0
      %3021 = vmatprep.subr.mxu0 0.0
      %3022 = vmatpush2.msra.mxu0 0.0
      %3023 = vmatprep.subr.mxu0 0.0
      %3024 = vmatpush2.msra.mxu0 0.0
      %3025 = vmatprep.subr.mxu0 0.0
      %3026 = vmatpush2.msra.mxu0 0.0
      %3027 = vmatprep.subr.mxu0 0.0
      %3028 = vmatpush2.msra.mxu0 0.0
      %3029 = vmatprep.subr.mxu0 0.0
      %3030 = vmatpush2.msra.mxu0 0.0
      %3031 = vmatprep.subr.mxu0 0.0
      %3032 = vmatpush2.msra.mxu0 0.0
      %3033 = vmatprep.subr.mxu0 0.0
      %3034 = vmatpush2.msra.mxu0 0.0
      %3035 = vmatprep.subr.mxu0 0.0
      %3036 = vmatpush2.msra.mxu0 0.0
      %3037 = vmatprep.subr.mxu0 0.0
      %3038 = vmatpush2.msra.mxu0 0.0
      %3039 = vmatprep.subr.mxu0 0.0
      %3040 = vmatpush2.msra.mxu0 0.0
      %3041 = vmatprep.subr.mxu0 0.0
      %3042 = vmatpush2.msra.mxu0 0.0
      %3043 = vmatprep.subr.mxu0 0.0
      %3044 = vmatpush2.msra.mxu0 0.0
      %3045 = vmatprep.subr.mxu0 0.0
      %3046 = vmatpush2.msra.mxu0 0.0
      %3047 = vmatprep.subr.mxu0 0.0
      %3048 = vmatpush2.msra.mxu0 0.0
      %3049 = vmatprep.subr.mxu0 0.0
      %3050 = vmatpush2.msra.mxu0 0.0
      %3051 = vmatprep.mubr.f32.mxu0 0.0
      %3052 = vmatmul.mubr.f32.gmra.mxu0 %v2985
      %v3053 = vpop.f32.mrf.mxu0
      %v3054 = vadd.f32 0.0, %v3053
      %v3055 = vpop.f32.mrf.mxu0
      %3056 = vdwg.mxu0
      %v3057 = vadd.f32 %v2202, %v3054
      %s3058 = scalar_lea.vmem %s35, 1
      %v3059 = vld [vmem:[%s3058] sm:$0x1]
      %v3061 = vlaneseq
      %v3062 = vshrl.u32 %v3061, 7
      %v3063 = vsub.s32 0, %v3062
      %v3064 = vrot.slane %v3059, %v3063
      %v3066 = vadd.f32 %v3057, %v3064
      %v3067 = vsel %vm1191, %v3066, %v1189
      %v3068 = vpack.c.bf16 %v3067, %v3067
      %v3070 = vsel %vm1113, %v3068, 0
      %3072 = vmatprep.subr.bf16.mxu0 0
      %3073 = vmatpush1.bf16.msra.mxu0 0
      %3074 = vmatprep.subr.bf16.mxu0 0
      %3075 = vmatpush1.bf16.msra.mxu0 0
      %3076 = vmatprep.subr.bf16.mxu0 0
      %3077 = vmatpush1.bf16.msra.mxu0 0
      %3078 = vmatprep.subr.bf16.mxu0 0
      %3079 = vmatpush1.bf16.msra.mxu0 0
      %3080 = vmatprep.subr.bf16.mxu0 0
      %3081 = vmatpush1.bf16.msra.mxu0 0
      %3082 = vmatprep.subr.bf16.mxu0 0
      %3083 = vmatpush1.bf16.msra.mxu0 0
      %3084 = vmatprep.subr.bf16.mxu0 0
      %3085 = vmatpush1.bf16.msra.mxu0 0
      %3086 = vmatprep.subr.bf16.mxu0 0
      %3087 = vmatpush1.bf16.msra.mxu0 %v3070
      %3088 = vmatprep.subr.bf16.mxu0 0
      %3089 = vmatpush2.bf16.msra.mxu0 0
      %3090 = vmatprep.subr.bf16.mxu0 0
      %3091 = vmatpush2.bf16.msra.mxu0 0
      %3092 = vmatprep.subr.bf16.mxu0 0
      %3093 = vmatpush2.bf16.msra.mxu0 0
      %3094 = vmatprep.subr.bf16.mxu0 0
      %3095 = vmatpush2.bf16.msra.mxu0 0
      %3096 = vmatprep.subr.bf16.mxu0 0
      %3097 = vmatpush2.bf16.msra.mxu0 0
      %3098 = vmatprep.subr.bf16.mxu0 0
      %3099 = vmatpush2.bf16.msra.mxu0 0
      %3100 = vmatprep.subr.bf16.mxu0 0
      %3101 = vmatpush2.bf16.msra.mxu0 0
      %3102 = vmatprep.subr.bf16.mxu0 0
      %3103 = vmatpush2.bf16.msra.mxu0 0
      %3104 = vmatprep.mubr.bf16.mxu0 0
      %3105 = vmatmul.mubr.bf16.gmra.mxu0 %v1214
      %v3106 = vpop.f32.mrf.mxu0
      %v3107 = vadd.f32 0.0, %v3106
      %v3108 = vpop.f32.mrf.mxu0
      %v3109 = vpop.f32.mrf.mxu0
      %v3110 = vadd.f32 0.0, %v3109
      %v3111 = vpop.f32.mrf.mxu0
      %3112 = vmatprep.mubr.bf16.mxu0 0
      %3113 = vmatmul.mubr.bf16.gmra.mxu0 %v1217
      %v3114 = vpop.f32.mrf.mxu0
      %v3115 = vadd.f32 0.0, %v3114
      %v3116 = vpop.f32.mrf.mxu0
      %v3117 = vpop.f32.mrf.mxu0
      %v3118 = vadd.f32 0.0, %v3117
      %v3119 = vpop.f32.mrf.mxu0
      %3120 = vmatprep.mubr.bf16.mxu0 0
      %3121 = vmatmul.mubr.bf16.gmra.mxu0 %v1220
      %v3122 = vpop.f32.mrf.mxu0
      %v3123 = vadd.f32 0.0, %v3122
      %v3124 = vpop.f32.mrf.mxu0
      %v3125 = vpop.f32.mrf.mxu0
      %v3126 = vadd.f32 0.0, %v3125
      %v3127 = vpop.f32.mrf.mxu0
      %3128 = vmatprep.mubr.bf16.mxu0 0
      %3129 = vmatmul.mubr.bf16.gmra.mxu0 %v1223
      %v3130 = vpop.f32.mrf.mxu0
      %v3131 = vadd.f32 0.0, %v3130
      %v3132 = vpop.f32.mrf.mxu0
      %v3133 = vpop.f32.mrf.mxu0
      %v3134 = vpop.f32.mrf.mxu0
      %3135 = vdwg.mxu0
      %3136 = vmatprep.subr.bf16.mxu0 0
      %3137 = vmatpush1.bf16.msra.mxu0 0
      %3138 = vmatprep.subr.bf16.mxu0 0
      %3139 = vmatpush1.bf16.msra.mxu0 0
      %3140 = vmatprep.subr.bf16.mxu0 0
      %3141 = vmatpush1.bf16.msra.mxu0 0
      %3142 = vmatprep.subr.bf16.mxu0 0
      %3143 = vmatpush1.bf16.msra.mxu0 0
      %3144 = vmatprep.subr.bf16.mxu0 0
      %3145 = vmatpush1.bf16.msra.mxu0 0
      %3146 = vmatprep.subr.bf16.mxu0 0
      %3147 = vmatpush1.bf16.msra.mxu0 0
      %3148 = vmatprep.subr.bf16.mxu0 0
      %3149 = vmatpush1.bf16.msra.mxu0 0
      %3150 = vmatprep.subr.bf16.mxu0 0
      %3151 = vmatpush1.bf16.msra.mxu0 %v3070
      %3152 = vmatprep.subr.bf16.mxu0 0
      %3153 = vmatpush2.bf16.msra.mxu0 0
      %3154 = vmatprep.subr.bf16.mxu0 0
      %3155 = vmatpush2.bf16.msra.mxu0 0
      %3156 = vmatprep.subr.bf16.mxu0 0
      %3157 = vmatpush2.bf16.msra.mxu0 0
      %3158 = vmatprep.subr.bf16.mxu0 0
      %3159 = vmatpush2.bf16.msra.mxu0 0
      %3160 = vmatprep.subr.bf16.mxu0 0
      %3161 = vmatpush2.bf16.msra.mxu0 0
      %3162 = vmatprep.subr.bf16.mxu0 0
      %3163 = vmatpush2.bf16.msra.mxu0 0
      %3164 = vmatprep.subr.bf16.mxu0 0
      %3165 = vmatpush2.bf16.msra.mxu0 0
      %3166 = vmatprep.subr.bf16.mxu0 0
      %3167 = vmatpush2.bf16.msra.mxu0 0
      %3168 = vmatprep.mubr.bf16.mxu0 0
      %3169 = vmatmul.mubr.bf16.gmra.mxu0 %v1311
      %v3170 = vpop.f32.mrf.mxu0
      %v3171 = vadd.f32 0.0, %v3170
      %v3172 = vpop.f32.mrf.mxu0
      %v3173 = vpop.f32.mrf.mxu0
      %v3174 = vadd.f32 0.0, %v3173
      %v3175 = vpop.f32.mrf.mxu0
      %3176 = vmatprep.mubr.bf16.mxu0 0
      %3177 = vmatmul.mubr.bf16.gmra.mxu0 %v1314
      %v3178 = vpop.f32.mrf.mxu0
      %v3179 = vadd.f32 0.0, %v3178
      %v3180 = vpop.f32.mrf.mxu0
      %v3181 = vpop.f32.mrf.mxu0
      %v3182 = vadd.f32 0.0, %v3181
      %v3183 = vpop.f32.mrf.mxu0
      %3184 = vmatprep.mubr.bf16.mxu0 0
      %3185 = vmatmul.mubr.bf16.gmra.mxu0 %v1317
      %v3186 = vpop.f32.mrf.mxu0
      %v3187 = vadd.f32 0.0, %v3186
      %v3188 = vpop.f32.mrf.mxu0
      %v3189 = vpop.f32.mrf.mxu0
      %v3190 = vadd.f32 0.0, %v3189
      %v3191 = vpop.f32.mrf.mxu0
      %3192 = vmatprep.mubr.bf16.mxu0 0
      %3193 = vmatmul.mubr.bf16.gmra.mxu0 %v1320
      %v3194 = vpop.f32.mrf.mxu0
      %v3195 = vadd.f32 0.0, %v3194
      %v3196 = vpop.f32.mrf.mxu0
      %v3197 = vpop.f32.mrf.mxu0
      %v3198 = vpop.f32.mrf.mxu0
      %3199 = vdwg.mxu0
      %v3200 = vsub.f32 %v3107, %v3171
      %v3201 = vsub.f32 %v3110, %v3174
      %v3202 = vsub.f32 %v3115, %v3179
      %v3203 = vsub.f32 %v3118, %v3182
      %v3204 = vsub.f32 %v3123, %v3187
      %v3205 = vsub.f32 %v3126, %v3190
      %v3206 = vsub.f32 %v3131, %v3195
      %v3207 = vmul.f32 %v3200, %v3200
      %v3208 = vmul.f32 %v3201, %v3201
      %v3209 = vmul.f32 %v3202, %v3202
      %v3210 = vmul.f32 %v3203, %v3203
      %v3211 = vmul.f32 %v3204, %v3204
      %v3212 = vmul.f32 %v3205, %v3205
      %v3213 = vmul.f32 %v3206, %v3206
      %3221 = vrot.lane.b32.xlu0 %v3207, 96
      %v3222 = vpop.permute.xlu0 %3221
      %3223 = vrot.lane.b32.xlu0 %v3208, 96
      %v3224 = vpop.permute.xlu0 %3223
      %3225 = vrot.lane.b32.xlu0 %v3209, 96
      %v3226 = vpop.permute.xlu0 %3225
      %3227 = vrot.lane.b32.xlu0 %v3210, 96
      %v3228 = vpop.permute.xlu0 %3227
      %3229 = vrot.lane.b32.xlu0 %v3211, 96
      %v3230 = vpop.permute.xlu0 %3229
      %3231 = vrot.lane.b32.xlu0 %v3212, 96
      %v3232 = vpop.permute.xlu0 %3231
      %3233 = vrot.lane.b32.xlu0 %v3213, 96
      %v3234 = vpop.permute.xlu0 %3233
      %v3242 = vsel %vm1428, %v3222, 0.0
      %3243 = vadd.xlane.f32.xlu0 %v3242
      %v3244 = vpop.xlane.xlu0 %3243
      %v3245 = vsel %vm1428, %v3224, 0.0
      %3246 = vadd.xlane.f32.xlu0 %v3245
      %v3247 = vpop.xlane.xlu0 %3246
      %v3248 = vsel %vm1428, %v3226, 0.0
      %3249 = vadd.xlane.f32.xlu0 %v3248
      %v3250 = vpop.xlane.xlu0 %3249
      %v3251 = vsel %vm1428, %v3228, 0.0
      %3252 = vadd.xlane.f32.xlu0 %v3251
      %v3253 = vpop.xlane.xlu0 %3252
      %v3254 = vsel %vm1428, %v3230, 0.0
      %3255 = vadd.xlane.f32.xlu0 %v3254
      %v3256 = vpop.xlane.xlu0 %3255
      %v3257 = vsel %vm1428, %v3232, 0.0
      %3258 = vadd.xlane.f32.xlu0 %v3257
      %v3259 = vpop.xlane.xlu0 %3258
      %v3260 = vsel %vm1428, %v3234, 0.0
      %3261 = vadd.xlane.f32.xlu0 %v3260
      %v3262 = vpop.xlane.xlu0 %3261
      %3270 = vrot.lane.b32.xlu0 %v3171, 35
      %v3271 = vpop.permute.xlu0 %3270
      %3272 = vrot.lane.b32.xlu0 %v3174, 35
      %v3273 = vpop.permute.xlu0 %3272
      %3274 = vrot.lane.b32.xlu0 %v3179, 35
      %v3275 = vpop.permute.xlu0 %3274
      %3276 = vrot.lane.b32.xlu0 %v3182, 35
      %v3277 = vpop.permute.xlu0 %3276
      %3278 = vrot.lane.b32.xlu0 %v3187, 35
      %v3279 = vpop.permute.xlu0 %3278
      %3280 = vrot.lane.b32.xlu0 %v3190, 35
      %v3281 = vpop.permute.xlu0 %3280
      %3282 = vrot.lane.b32.xlu0 %v3195, 35
      %v3283 = vpop.permute.xlu0 %3282
      %v3291 = vsel %vm1506, %v3107, %v3271
      %v3292 = vsel %vm1506, %v3110, %v3273
      %v3293 = vsel %vm1506, %v3115, %v3275
      %v3294 = vsel %vm1506, %v3118, %v3277
      %v3295 = vsel %vm1506, %v3123, %v3279
      %v3296 = vsel %vm1506, %v3126, %v3281
      %v3297 = vsel %vm1506, %v3131, %v3283
      %v3298 = vsel %vm1514, %v3291, %v3244
      %v3299 = vsel %vm1514, %v3292, %v3247
      %v3300 = vsel %vm1514, %v3293, %v3250
      %v3301 = vsel %vm1514, %v3294, %v3253
      %v3302 = vsel %vm1514, %v3295, %v3256
      %v3303 = vsel %vm1514, %v3296, %v3259
      %v3304 = vsel %vm1514, %v3297, %v3262
      %v3305 = vsel %vm1522, %v3298, %v1486
      %v3306 = vsel %vm1522, %v3299, %v1488
      %v3307 = vsel %vm1522, %v3300, %v1490
      %v3308 = vsel %vm1522, %v3301, %v1492
      %v3309 = vsel %vm1522, %v3302, %v1494
      %v3310 = vsel %vm1522, %v3303, %v1496
      %v3311 = vsel %vm1522, %v3304, %v1498
      %s3312 = scalar_lea.vmem %s21, 160
      %v3313 = vld [vmem:[%s3312] sm:$0xff]
      %v3314 = vld [vmem:[%s3312 + $0x8] sm:$0xff]
      %v3315 = vld [vmem:[%s3312 + $0x10] sm:$0xff]
      %v3316 = vld [vmem:[%s3312 + $0x18] sm:$0xff]
      %v3317 = vld [vmem:[%s3312 + $0x20] sm:$0xff]
      %v3318 = vld [vmem:[%s3312 + $0x28] sm:$0xff]
      %v3319 = vld [vmem:[%s3312 + $0x30] sm:$0xff]
      %v3320 = vld [vmem:[%s3312 + $0x38] sm:$0xff]
      %v3321 = vld [vmem:[%s3312 + $0x40] sm:$0xff]
      %v3322 = vld [vmem:[%s3312 + $0x48] sm:$0x1]
      %s3323 = scalar_lea.vmem %s23, 2
      %v3324 = vld [vmem:[%s3323] sm:$0x1]
      %v3326 = vlaneseq
      %v3327 = vshrl.u32 %v3326, 7
      %v3328 = vsub.s32 0, %v3327
      %v3329 = vrot.slane %v3324, %v3328
      %v3332 = vsel %vm1547, %v3305, 0
      %v3335 = vsel %vm1547, %v3306, 0
      %v3338 = vsel %vm1547, %v3307, 0
      %v3341 = vsel %vm1547, %v3308, 0
      %v3344 = vsel %vm1547, %v3309, 0
      %v3347 = vsel %vm1547, %v3310, 0
      %v3350 = vsel %vm1547, %v3311, 0
      %v3353 = vsel %vm1569, %v3322, 0
      %3355 = vmatprep.subr.mxu0 0.0
      %3356 = vmatpush1.msra.mxu0 0.0
      %3357 = vmatprep.subr.mxu0 0.0
      %3358 = vmatpush1.msra.mxu0 0.0
      %3359 = vmatprep.subr.mxu0 0.0
      %3360 = vmatpush1.msra.mxu0 0.0
      %3361 = vmatprep.subr.mxu0 0.0
      %3362 = vmatpush1.msra.mxu0 0.0
      %3363 = vmatprep.subr.mxu0 0.0
      %3364 = vmatpush1.msra.mxu0 0.0
      %3365 = vmatprep.subr.mxu0 0.0
      %3366 = vmatpush1.msra.mxu0 0.0
      %3367 = vmatprep.subr.mxu0 0.0
      %3368 = vmatpush1.msra.mxu0 %v3353
      %3369 = vmatprep.subr.mxu0 0.0
      %3370 = vmatpush1.msra.mxu0 %v3321
      %3371 = vmatprep.subr.mxu0 0.0
      %3372 = vmatpush1.msra.mxu0 %v3320
      %3373 = vmatprep.subr.mxu0 0.0
      %3374 = vmatpush1.msra.mxu0 %v3319
      %3375 = vmatprep.subr.mxu0 0.0
      %3376 = vmatpush1.msra.mxu0 %v3318
      %3377 = vmatprep.subr.mxu0 0.0
      %3378 = vmatpush1.msra.mxu0 %v3317
      %3379 = vmatprep.subr.mxu0 0.0
      %3380 = vmatpush1.msra.mxu0 %v3316
      %3381 = vmatprep.subr.mxu0 0.0
      %3382 = vmatpush1.msra.mxu0 %v3315
      %3383 = vmatprep.subr.mxu0 0.0
      %3384 = vmatpush1.msra.mxu0 %v3314
      %3385 = vmatprep.subr.mxu0 0.0
      %3386 = vmatpush1.msra.mxu0 %v3313
      %3387 = vmatprep.subr.mxu0 0.0
      %3388 = vmatpush2.msra.mxu0 0.0
      %3389 = vmatprep.subr.mxu0 0.0
      %3390 = vmatpush2.msra.mxu0 0.0
      %3391 = vmatprep.subr.mxu0 0.0
      %3392 = vmatpush2.msra.mxu0 0.0
      %3393 = vmatprep.subr.mxu0 0.0
      %3394 = vmatpush2.msra.mxu0 0.0
      %3395 = vmatprep.subr.mxu0 0.0
      %3396 = vmatpush2.msra.mxu0 0.0
      %3397 = vmatprep.subr.mxu0 0.0
      %3398 = vmatpush2.msra.mxu0 0.0
      %3399 = vmatprep.subr.mxu0 0.0
      %3400 = vmatpush2.msra.mxu0 0.0
      %3401 = vmatprep.subr.mxu0 0.0
      %3402 = vmatpush2.msra.mxu0 0.0
      %3403 = vmatprep.subr.mxu0 0.0
      %3404 = vmatpush2.msra.mxu0 0.0
      %3405 = vmatprep.subr.mxu0 0.0
      %3406 = vmatpush2.msra.mxu0 0.0
      %3407 = vmatprep.subr.mxu0 0.0
      %3408 = vmatpush2.msra.mxu0 0.0
      %3409 = vmatprep.subr.mxu0 0.0
      %3410 = vmatpush2.msra.mxu0 0.0
      %3411 = vmatprep.subr.mxu0 0.0
      %3412 = vmatpush2.msra.mxu0 0.0
      %3413 = vmatprep.subr.mxu0 0.0
      %3414 = vmatpush2.msra.mxu0 0.0
      %3415 = vmatprep.subr.mxu0 0.0
      %3416 = vmatpush2.msra.mxu0 0.0
      %3417 = vmatprep.subr.mxu0 0.0
      %3418 = vmatpush2.msra.mxu0 0.0
      %3419 = vmatprep.mubr.f32.mxu0 0.0
      %3420 = vmatmul.mubr.f32.gmra.mxu0 %v3332
      %v3421 = vpop.f32.mrf.mxu0
      %v3422 = vadd.f32 %v3329, %v3421
      %v3423 = vpop.f32.mrf.mxu0
      %3424 = vmatprep.mubr.f32.mxu0 0.0
      %3425 = vmatmul.mubr.f32.gmra.mxu0 %v3335
      %v3426 = vpop.f32.mrf.mxu0
      %v3427 = vadd.f32 %v3329, %v3426
      %v3428 = vpop.f32.mrf.mxu0
      %3429 = vmatprep.mubr.f32.mxu0 0.0
      %3430 = vmatmul.mubr.f32.gmra.mxu0 %v3338
      %v3431 = vpop.f32.mrf.mxu0
      %v3432 = vadd.f32 %v3329, %v3431
      %v3433 = vpop.f32.mrf.mxu0
      %3434 = vmatprep.mubr.f32.mxu0 0.0
      %3435 = vmatmul.mubr.f32.gmra.mxu0 %v3341
      %v3436 = vpop.f32.mrf.mxu0
      %v3437 = vadd.f32 %v3329, %v3436
      %v3438 = vpop.f32.mrf.mxu0
      %3439 = vmatprep.mubr.f32.mxu0 0.0
      %3440 = vmatmul.mubr.f32.gmra.mxu0 %v3344
      %v3441 = vpop.f32.mrf.mxu0
      %v3442 = vadd.f32 %v3329, %v3441
      %v3443 = vpop.f32.mrf.mxu0
      %3444 = vmatprep.mubr.f32.mxu0 0.0
      %3445 = vmatmul.mubr.f32.gmra.mxu0 %v3347
      %v3446 = vpop.f32.mrf.mxu0
      %v3447 = vadd.f32 %v3329, %v3446
      %v3448 = vpop.f32.mrf.mxu0
      %3449 = vmatprep.mubr.f32.mxu0 0.0
      %3450 = vmatmul.mubr.f32.gmra.mxu0 %v3350
      %v3451 = vpop.f32.mrf.mxu0
      %v3452 = vadd.f32 %v3329, %v3451
      %v3453 = vpop.f32.mrf.mxu0
      %3454 = vdwg.mxu0
      %v3455 = vxor.u32 %v3422, 2147483648
      %v3456 = vxor.u32 %v3427, 2147483648
      %v3457 = vxor.u32 %v3432, 2147483648
      %v3458 = vxor.u32 %v3437, 2147483648
      %v3459 = vxor.u32 %v3442, 2147483648
      %v3460 = vxor.u32 %v3447, 2147483648
      %v3461 = vxor.u32 %v3452, 2147483648
      %v3462 = vmul.f32 %v3455, 1.442695
      %v3463 = vpow.pop %v3462
      %v3464 = vmul.f32 %v3456, 1.442695
      %v3465 = vpow.pop %v3464
      %v3466 = vmul.f32 %v3457, 1.442695
      %v3467 = vpow.pop %v3466
      %v3468 = vmul.f32 %v3458, 1.442695
      %v3469 = vpow.pop %v3468
      %v3470 = vmul.f32 %v3459, 1.442695
      %v3471 = vpow.pop %v3470
      %v3472 = vmul.f32 %v3460, 1.442695
      %v3473 = vpow.pop %v3472
      %v3474 = vmul.f32 %v3461, 1.442695
      %v3475 = vpow.pop %v3474
      %v3476 = vadd.f32 %v3463, 1.0
      %v3477 = vadd.f32 %v3465, 1.0
      %v3478 = vadd.f32 %v3467, 1.0
      %v3479 = vadd.f32 %v3469, 1.0
      %v3480 = vadd.f32 %v3471, 1.0
      %v3481 = vadd.f32 %v3473, 1.0
      %v3482 = vadd.f32 %v3475, 1.0
      %v3483 = vrcp.pop %v3476
      %v3484 = vmul.f32 1.0, %v3483
      %v3485 = vrcp.pop %v3477
      %v3486 = vmul.f32 1.0, %v3485
      %v3487 = vrcp.pop %v3478
      %v3488 = vmul.f32 1.0, %v3487
      %v3489 = vrcp.pop %v3479
      %v3490 = vmul.f32 1.0, %v3489
      %v3491 = vrcp.pop %v3480
      %v3492 = vmul.f32 1.0, %v3491
      %v3493 = vrcp.pop %v3481
      %v3494 = vmul.f32 1.0, %v3493
      %v3495 = vrcp.pop %v3482
      %v3496 = vmul.f32 1.0, %v3495
      %v3497 = vmul.f32 %v3422, %v3484
      %v3498 = vmul.f32 %v3427, %v3486
      %v3499 = vmul.f32 %v3432, %v3488
      %v3500 = vmul.f32 %v3437, %v3490
      %v3501 = vmul.f32 %v3442, %v3492
      %v3502 = vmul.f32 %v3447, %v3494
      %v3503 = vmul.f32 %v3452, %v3496
      %s3504 = scalar_lea.vmem %s25, 64
      %v3505 = vld [vmem:[%s3504] sm:$0xff]
      %v3506 = vld [vmem:[%s3504 + $0x8] sm:$0xff]
      %v3507 = vld [vmem:[%s3504 + $0x10] sm:$0xff]
      %v3508 = vld [vmem:[%s3504 + $0x18] sm:$0xff]
      %s3509 = scalar_lea.vmem %s27, 2
      %v3510 = vld [vmem:[%s3509] sm:$0x1]
      %v3512 = vlaneseq
      %v3513 = vshrl.u32 %v3512, 7
      %v3514 = vsub.s32 0, %v3513
      %v3515 = vrot.slane %v3510, %v3514
      %v3518 = vsel %vm1191, %v3497, 0
      %v3521 = vsel %vm1191, %v3498, 0
      %v3524 = vsel %vm1191, %v3499, 0
      %v3527 = vsel %vm1191, %v3500, 0
      %v3530 = vsel %vm1191, %v3501, 0
      %v3533 = vsel %vm1191, %v3502, 0
      %v3536 = vsel %vm1191, %v3503, 0
      %3538 = vmatprep.subr.mxu0 0.0
      %3539 = vmatpush1.msra.mxu0 0.0
      %3540 = vmatprep.subr.mxu0 0.0
      %3541 = vmatpush1.msra.mxu0 0.0
      %3542 = vmatprep.subr.mxu0 0.0
      %3543 = vmatpush1.msra.mxu0 0.0
      %3544 = vmatprep.subr.mxu0 0.0
      %3545 = vmatpush1.msra.mxu0 0.0
      %3546 = vmatprep.subr.mxu0 0.0
      %3547 = vmatpush1.msra.mxu0 0.0
      %3548 = vmatprep.subr.mxu0 0.0
      %3549 = vmatpush1.msra.mxu0 0.0
      %3550 = vmatprep.subr.mxu0 0.0
      %3551 = vmatpush1.msra.mxu0 0.0
      %3552 = vmatprep.subr.mxu0 0.0
      %3553 = vmatpush1.msra.mxu0 0.0
      %3554 = vmatprep.subr.mxu0 0.0
      %3555 = vmatpush1.msra.mxu0 0.0
      %3556 = vmatprep.subr.mxu0 0.0
      %3557 = vmatpush1.msra.mxu0 0.0
      %3558 = vmatprep.subr.mxu0 0.0
      %3559 = vmatpush1.msra.mxu0 0.0
      %3560 = vmatprep.subr.mxu0 0.0
      %3561 = vmatpush1.msra.mxu0 0.0
      %3562 = vmatprep.subr.mxu0 0.0
      %3563 = vmatpush1.msra.mxu0 %v3508
      %3564 = vmatprep.subr.mxu0 0.0
      %3565 = vmatpush1.msra.mxu0 %v3507
      %3566 = vmatprep.subr.mxu0 0.0
      %3567 = vmatpush1.msra.mxu0 %v3506
      %3568 = vmatprep.subr.mxu0 0.0
      %3569 = vmatpush1.msra.mxu0 %v3505
      %3570 = vmatprep.subr.mxu0 0.0
      %3571 = vmatpush2.msra.mxu0 0.0
      %3572 = vmatprep.subr.mxu0 0.0
      %3573 = vmatpush2.msra.mxu0 0.0
      %3574 = vmatprep.subr.mxu0 0.0
      %3575 = vmatpush2.msra.mxu0 0.0
      %3576 = vmatprep.subr.mxu0 0.0
      %3577 = vmatpush2.msra.mxu0 0.0
      %3578 = vmatprep.subr.mxu0 0.0
      %3579 = vmatpush2.msra.mxu0 0.0
      %3580 = vmatprep.subr.mxu0 0.0
      %3581 = vmatpush2.msra.mxu0 0.0
      %3582 = vmatprep.subr.mxu0 0.0
      %3583 = vmatpush2.msra.mxu0 0.0
      %3584 = vmatprep.subr.mxu0 0.0
      %3585 = vmatpush2.msra.mxu0 0.0
      %3586 = vmatprep.subr.mxu0 0.0
      %3587 = vmatpush2.msra.mxu0 0.0
      %3588 = vmatprep.subr.mxu0 0.0
      %3589 = vmatpush2.msra.mxu0 0.0
      %3590 = vmatprep.subr.mxu0 0.0
      %3591 = vmatpush2.msra.mxu0 0.0
      %3592 = vmatprep.subr.mxu0 0.0
      %3593 = vmatpush2.msra.mxu0 0.0
      %3594 = vmatprep.subr.mxu0 0.0
      %3595 = vmatpush2.msra.mxu0 0.0
      %3596 = vmatprep.subr.mxu0 0.0
      %3597 = vmatpush2.msra.mxu0 0.0
      %3598 = vmatprep.subr.mxu0 0.0
      %3599 = vmatpush2.msra.mxu0 0.0
      %3600 = vmatprep.subr.mxu0 0.0
      %3601 = vmatpush2.msra.mxu0 0.0
      %3602 = vmatprep.mubr.f32.mxu0 0.0
      %3603 = vmatmul.mubr.f32.gmra.mxu0 %v3518
      %v3604 = vpop.f32.mrf.mxu0
      %v3605 = vadd.f32 %v3515, %v3604
      %v3606 = vpop.f32.mrf.mxu0
      %3607 = vmatprep.mubr.f32.mxu0 0.0
      %3608 = vmatmul.mubr.f32.gmra.mxu0 %v3521
      %v3609 = vpop.f32.mrf.mxu0
      %v3610 = vadd.f32 %v3515, %v3609
      %v3611 = vpop.f32.mrf.mxu0
      %3612 = vmatprep.mubr.f32.mxu0 0.0
      %3613 = vmatmul.mubr.f32.gmra.mxu0 %v3524
      %v3614 = vpop.f32.mrf.mxu0
      %v3615 = vadd.f32 %v3515, %v3614
      %v3616 = vpop.f32.mrf.mxu0
      %3617 = vmatprep.mubr.f32.mxu0 0.0
      %3618 = vmatmul.mubr.f32.gmra.mxu0 %v3527
      %v3619 = vpop.f32.mrf.mxu0
      %v3620 = vadd.f32 %v3515, %v3619
      %v3621 = vpop.f32.mrf.mxu0
      %3622 = vmatprep.mubr.f32.mxu0 0.0
      %3623 = vmatmul.mubr.f32.gmra.mxu0 %v3530
      %v3624 = vpop.f32.mrf.mxu0
      %v3625 = vadd.f32 %v3515, %v3624
      %v3626 = vpop.f32.mrf.mxu0
      %3627 = vmatprep.mubr.f32.mxu0 0.0
      %3628 = vmatmul.mubr.f32.gmra.mxu0 %v3533
      %v3629 = vpop.f32.mrf.mxu0
      %v3630 = vadd.f32 %v3515, %v3629
      %v3631 = vpop.f32.mrf.mxu0
      %3632 = vmatprep.mubr.f32.mxu0 0.0
      %3633 = vmatmul.mubr.f32.gmra.mxu0 %v3536
      %v3634 = vpop.f32.mrf.mxu0
      %v3635 = vadd.f32 %v3515, %v3634
      %v3636 = vpop.f32.mrf.mxu0
      %3637 = vdwg.mxu0
      %v3638 = vxor.u32 %v3605, 2147483648
      %v3639 = vxor.u32 %v3610, 2147483648
      %v3640 = vxor.u32 %v3615, 2147483648
      %v3641 = vxor.u32 %v3620, 2147483648
      %v3642 = vxor.u32 %v3625, 2147483648
      %v3643 = vxor.u32 %v3630, 2147483648
      %v3644 = vxor.u32 %v3635, 2147483648
      %v3645 = vmul.f32 %v3638, 1.442695
      %v3646 = vpow.pop %v3645
      %v3647 = vmul.f32 %v3639, 1.442695
      %v3648 = vpow.pop %v3647
      %v3649 = vmul.f32 %v3640, 1.442695
      %v3650 = vpow.pop %v3649
      %v3651 = vmul.f32 %v3641, 1.442695
      %v3652 = vpow.pop %v3651
      %v3653 = vmul.f32 %v3642, 1.442695
      %v3654 = vpow.pop %v3653
      %v3655 = vmul.f32 %v3643, 1.442695
      %v3656 = vpow.pop %v3655
      %v3657 = vmul.f32 %v3644, 1.442695
      %v3658 = vpow.pop %v3657
      %v3659 = vadd.f32 %v3646, 1.0
      %v3660 = vadd.f32 %v3648, 1.0
      %v3661 = vadd.f32 %v3650, 1.0
      %v3662 = vadd.f32 %v3652, 1.0
      %v3663 = vadd.f32 %v3654, 1.0
      %v3664 = vadd.f32 %v3656, 1.0
      %v3665 = vadd.f32 %v3658, 1.0
      %v3666 = vrcp.pop %v3659
      %v3667 = vmul.f32 1.0, %v3666
      %v3668 = vrcp.pop %v3660
      %v3669 = vmul.f32 1.0, %v3668
      %v3670 = vrcp.pop %v3661
      %v3671 = vmul.f32 1.0, %v3670
      %v3672 = vrcp.pop %v3662
      %v3673 = vmul.f32 1.0, %v3672
      %v3674 = vrcp.pop %v3663
      %v3675 = vmul.f32 1.0, %v3674
      %v3676 = vrcp.pop %v3664
      %v3677 = vmul.f32 1.0, %v3676
      %v3678 = vrcp.pop %v3665
      %v3679 = vmul.f32 1.0, %v3678
      %v3680 = vmul.f32 %v3605, %v3667
      %v3681 = vmul.f32 %v3610, %v3669
      %v3682 = vmul.f32 %v3615, %v3671
      %v3683 = vmul.f32 %v3620, %v3673
      %v3684 = vmul.f32 %v3625, %v3675
      %v3685 = vmul.f32 %v3630, %v3677
      %v3686 = vmul.f32 %v3635, %v3679
      %v3687 = vmul.f32 %v3680, %v1906
      %v3688 = vmul.f32 %v3681, %v1911
      %v3689 = vmul.f32 %v3682, %v1916
      %v3690 = vmul.f32 %v3683, %v1921
      %v3691 = vmul.f32 %v3684, %v1926
      %v3692 = vmul.f32 %v3685, %v1931
      %v3693 = vmul.f32 %v3686, %v1936
      %v3694 = vpack.c.bf16 %v3688, %v3687
      %v3695 = vpack.c.bf16 %v3690, %v3689
      %v3696 = vpack.c.bf16 %v3692, %v3691
      %v3697 = vpack.c.bf16 %v3693, %v3693
      %v3699 = vsel %vm1113, %v3697, 0
      %3701 = vmatprep.subr.bf16.mxu0 0
      %3702 = vmatpush1.bf16.msra.mxu0 0
      %3703 = vmatprep.subr.bf16.mxu0 0
      %3704 = vmatpush1.bf16.msra.mxu0 0
      %3705 = vmatprep.subr.bf16.mxu0 0
      %3706 = vmatpush1.bf16.msra.mxu0 0
      %3707 = vmatprep.subr.bf16.mxu0 0
      %3708 = vmatpush1.bf16.msra.mxu0 0
      %3709 = vmatprep.subr.bf16.mxu0 0
      %3710 = vmatpush1.bf16.msra.mxu0 %v3699
      %3711 = vmatprep.subr.bf16.mxu0 0
      %3712 = vmatpush1.bf16.msra.mxu0 %v3696
      %3713 = vmatprep.subr.bf16.mxu0 0
      %3714 = vmatpush1.bf16.msra.mxu0 %v3695
      %3715 = vmatprep.subr.bf16.mxu0 0
      %3716 = vmatpush1.bf16.msra.mxu0 %v3694
      %3717 = vmatprep.subr.bf16.mxu0 0
      %3718 = vmatpush2.bf16.msra.mxu0 0
      %3719 = vmatprep.subr.bf16.mxu0 0
      %3720 = vmatpush2.bf16.msra.mxu0 0
      %3721 = vmatprep.subr.bf16.mxu0 0
      %3722 = vmatpush2.bf16.msra.mxu0 0
      %3723 = vmatprep.subr.bf16.mxu0 0
      %3724 = vmatpush2.bf16.msra.mxu0 0
      %3725 = vmatprep.subr.bf16.mxu0 0
      %3726 = vmatpush2.bf16.msra.mxu0 0
      %3727 = vmatprep.subr.bf16.mxu0 0
      %3728 = vmatpush2.bf16.msra.mxu0 0
      %3729 = vmatprep.subr.bf16.mxu0 0
      %3730 = vmatpush2.bf16.msra.mxu0 0
      %3731 = vmatprep.subr.bf16.mxu0 0
      %3732 = vmatpush2.bf16.msra.mxu0 0
      %3733 = vmatprep.mubr.bf16.mxu0 0
      %3734 = vmatmul.mubr.bf16.gmra.mxu0 %v1971
      %v3735 = vpop.f32.mrf.mxu0
      %v3736 = vadd.f32 0.0, %v3735
      %v3737 = vpop.f32.mrf.mxu0
      %v3738 = vpop.f32.mrf.mxu0
      %v3739 = vpop.f32.mrf.mxu0
      %3740 = vdwg.mxu0
      %3742 = vrot.lane.b32.xlu0 %v3736, 32
      %v3743 = vpop.permute.xlu0 %3742
      %v3745 = vsel %vm1191, %v3066, %v3743
      %s3746 = scalar_lea.vmem %s29, 128
      %v3747 = vld [vmem:[%s3746] sm:$0xff]
      %v3748 = vld [vmem:[%s3746 + $0x8] sm:$0xff]
      %v3749 = vld [vmem:[%s3746 + $0x10] sm:$0xff]
      %v3750 = vld [vmem:[%s3746 + $0x18] sm:$0xff]
      %v3751 = vld [vmem:[%s3746 + $0x20] sm:$0xff]
      %v3752 = vld [vmem:[%s3746 + $0x28] sm:$0xff]
      %v3753 = vld [vmem:[%s3746 + $0x30] sm:$0xff]
      %v3754 = vld [vmem:[%s3746 + $0x38] sm:$0xff]
      %s3755 = scalar_lea.vmem %s31, 2
      %v3756 = vld [vmem:[%s3755] sm:$0x1]
      %v3758 = vlaneseq
      %v3759 = vshrl.u32 %v3758, 7
      %v3760 = vsub.s32 0, %v3759
      %v3761 = vrot.slane %v3756, %v3760
      %v3764 = vsel %vm2036, %v3745, 0
      %3766 = vmatprep.subr.mxu0 0.0
      %3767 = vmatpush1.msra.mxu0 0.0
      %3768 = vmatprep.subr.mxu0 0.0
      %3769 = vmatpush1.msra.mxu0 0.0
      %3770 = vmatprep.subr.mxu0 0.0
      %3771 = vmatpush1.msra.mxu0 0.0
      %3772 = vmatprep.subr.mxu0 0.0
      %3773 = vmatpush1.msra.mxu0 0.0
      %3774 = vmatprep.subr.mxu0 0.0
      %3775 = vmatpush1.msra.mxu0 0.0
      %3776 = vmatprep.subr.mxu0 0.0
      %3777 = vmatpush1.msra.mxu0 0.0
      %3778 = vmatprep.subr.mxu0 0.0
      %3779 = vmatpush1.msra.mxu0 0.0
      %3780 = vmatprep.subr.mxu0 0.0
      %3781 = vmatpush1.msra.mxu0 0.0
      %3782 = vmatprep.subr.mxu0 0.0
      %3783 = vmatpush1.msra.mxu0 %v3754
      %3784 = vmatprep.subr.mxu0 0.0
      %3785 = vmatpush1.msra.mxu0 %v3753
      %3786 = vmatprep.subr.mxu0 0.0
      %3787 = vmatpush1.msra.mxu0 %v3752
      %3788 = vmatprep.subr.mxu0 0.0
      %3789 = vmatpush1.msra.mxu0 %v3751
      %3790 = vmatprep.subr.mxu0 0.0
      %3791 = vmatpush1.msra.mxu0 %v3750
      %3792 = vmatprep.subr.mxu0 0.0
      %3793 = vmatpush1.msra.mxu0 %v3749
      %3794 = vmatprep.subr.mxu0 0.0
      %3795 = vmatpush1.msra.mxu0 %v3748
      %3796 = vmatprep.subr.mxu0 0.0
      %3797 = vmatpush1.msra.mxu0 %v3747
      %3798 = vmatprep.subr.mxu0 0.0
      %3799 = vmatpush2.msra.mxu0 0.0
      %3800 = vmatprep.subr.mxu0 0.0
      %3801 = vmatpush2.msra.mxu0 0.0
      %3802 = vmatprep.subr.mxu0 0.0
      %3803 = vmatpush2.msra.mxu0 0.0
      %3804 = vmatprep.subr.mxu0 0.0
      %3805 = vmatpush2.msra.mxu0 0.0
      %3806 = vmatprep.subr.mxu0 0.0
      %3807 = vmatpush2.msra.mxu0 0.0
      %3808 = vmatprep.subr.mxu0 0.0
      %3809 = vmatpush2.msra.mxu0 0.0
      %3810 = vmatprep.subr.mxu0 0.0
      %3811 = vmatpush2.msra.mxu0 0.0
      %3812 = vmatprep.subr.mxu0 0.0
      %3813 = vmatpush2.msra.mxu0 0.0
      %3814 = vmatprep.subr.mxu0 0.0
      %3815 = vmatpush2.msra.mxu0 0.0
      %3816 = vmatprep.subr.mxu0 0.0
      %3817 = vmatpush2.msra.mxu0 0.0
      %3818 = vmatprep.subr.mxu0 0.0
      %3819 = vmatpush2.msra.mxu0 0.0
      %3820 = vmatprep.subr.mxu0 0.0
      %3821 = vmatpush2.msra.mxu0 0.0
      %3822 = vmatprep.subr.mxu0 0.0
      %3823 = vmatpush2.msra.mxu0 0.0
      %3824 = vmatprep.subr.mxu0 0.0
      %3825 = vmatpush2.msra.mxu0 0.0
      %3826 = vmatprep.subr.mxu0 0.0
      %3827 = vmatpush2.msra.mxu0 0.0
      %3828 = vmatprep.subr.mxu0 0.0
      %3829 = vmatpush2.msra.mxu0 0.0
      %3830 = vmatprep.mubr.f32.mxu0 0.0
      %3831 = vmatmul.mubr.f32.gmra.mxu0 %v3764
      %v3832 = vpop.f32.mrf.mxu0
      %v3833 = vadd.f32 %v3761, %v3832
      %v3834 = vpop.f32.mrf.mxu0
      %3835 = vdwg.mxu0
      %v3836 = vxor.u32 %v3833, 2147483648
      %v3837 = vmul.f32 %v3836, 1.442695
      %v3838 = vpow.pop %v3837
      %v3839 = vadd.f32 %v3838, 1.0
      %v3840 = vrcp.pop %v3839
      %v3841 = vmul.f32 1.0, %v3840
      %v3842 = vmul.f32 %v3833, %v3841
      %s3843 = scalar_lea.vmem %s33, 64
      %v3844 = vld [vmem:[%s3843] sm:$0xff]
      %v3845 = vld [vmem:[%s3843 + $0x8] sm:$0xff]
      %v3846 = vld [vmem:[%s3843 + $0x10] sm:$0xff]
      %v3847 = vld [vmem:[%s3843 + $0x18] sm:$0xff]
      %v3849 = vsel %vm1191, %v3842, 0
      %3851 = vmatprep.subr.mxu0 0.0
      %3852 = vmatpush1.msra.mxu0 0.0
      %3853 = vmatprep.subr.mxu0 0.0
      %3854 = vmatpush1.msra.mxu0 0.0
      %3855 = vmatprep.subr.mxu0 0.0
      %3856 = vmatpush1.msra.mxu0 0.0
      %3857 = vmatprep.subr.mxu0 0.0
      %3858 = vmatpush1.msra.mxu0 0.0
      %3859 = vmatprep.subr.mxu0 0.0
      %3860 = vmatpush1.msra.mxu0 0.0
      %3861 = vmatprep.subr.mxu0 0.0
      %3862 = vmatpush1.msra.mxu0 0.0
      %3863 = vmatprep.subr.mxu0 0.0
      %3864 = vmatpush1.msra.mxu0 0.0
      %3865 = vmatprep.subr.mxu0 0.0
      %3866 = vmatpush1.msra.mxu0 0.0
      %3867 = vmatprep.subr.mxu0 0.0
      %3868 = vmatpush1.msra.mxu0 0.0
      %3869 = vmatprep.subr.mxu0 0.0
      %3870 = vmatpush1.msra.mxu0 0.0
      %3871 = vmatprep.subr.mxu0 0.0
      %3872 = vmatpush1.msra.mxu0 0.0
      %3873 = vmatprep.subr.mxu0 0.0
      %3874 = vmatpush1.msra.mxu0 0.0
      %3875 = vmatprep.subr.mxu0 0.0
      %3876 = vmatpush1.msra.mxu0 %v3847
      %3877 = vmatprep.subr.mxu0 0.0
      %3878 = vmatpush1.msra.mxu0 %v3846
      %3879 = vmatprep.subr.mxu0 0.0
      %3880 = vmatpush1.msra.mxu0 %v3845
      %3881 = vmatprep.subr.mxu0 0.0
      %3882 = vmatpush1.msra.mxu0 %v3844
      %3883 = vmatprep.subr.mxu0 0.0
      %3884 = vmatpush2.msra.mxu0 0.0
      %3885 = vmatprep.subr.mxu0 0.0
      %3886 = vmatpush2.msra.mxu0 0.0
      %3887 = vmatprep.subr.mxu0 0.0
      %3888 = vmatpush2.msra.mxu0 0.0
      %3889 = vmatprep.subr.mxu0 0.0
      %3890 = vmatpush2.msra.mxu0 0.0
      %3891 = vmatprep.subr.mxu0 0.0
      %3892 = vmatpush2.msra.mxu0 0.0
      %3893 = vmatprep.subr.mxu0 0.0
      %3894 = vmatpush2.msra.mxu0 0.0
      %3895 = vmatprep.subr.mxu0 0.0
      %3896 = vmatpush2.msra.mxu0 0.0
      %3897 = vmatprep.subr.mxu0 0.0
      %3898 = vmatpush2.msra.mxu0 0.0
      %3899 = vmatprep.subr.mxu0 0.0
      %3900 = vmatpush2.msra.mxu0 0.0
      %3901 = vmatprep.subr.mxu0 0.0
      %3902 = vmatpush2.msra.mxu0 0.0
      %3903 = vmatprep.subr.mxu0 0.0
      %3904 = vmatpush2.msra.mxu0 0.0
      %3905 = vmatprep.subr.mxu0 0.0
      %3906 = vmatpush2.msra.mxu0 0.0
      %3907 = vmatprep.subr.mxu0 0.0
      %3908 = vmatpush2.msra.mxu0 0.0
      %3909 = vmatprep.subr.mxu0 0.0
      %3910 = vmatpush2.msra.mxu0 0.0
      %3911 = vmatprep.subr.mxu0 0.0
      %3912 = vmatpush2.msra.mxu0 0.0
      %3913 = vmatprep.subr.mxu0 0.0
      %3914 = vmatpush2.msra.mxu0 0.0
      %3915 = vmatprep.mubr.f32.mxu0 0.0
      %3916 = vmatmul.mubr.f32.gmra.mxu0 %v3849
      %v3917 = vpop.f32.mrf.mxu0
      %v3918 = vadd.f32 0.0, %v3917
      %v3919 = vpop.f32.mrf.mxu0
      %3920 = vdwg.mxu0
      %v3921 = vadd.f32 %v3066, %v3918
      %s3922 = scalar_lea.vmem %s35, 2
      %v3923 = vld [vmem:[%s3922] sm:$0x1]
      %v3925 = vlaneseq
      %v3926 = vshrl.u32 %v3925, 7
      %v3927 = vsub.s32 0, %v3926
      %v3928 = vrot.slane %v3923, %v3927
      %v3930 = vadd.f32 %v3921, %v3928
      %v3931 = vsel %vm1191, %v3930, %v1189
      %v3932 = vpack.c.bf16 %v3931, %v3931
      %v3934 = vsel %vm1113, %v3932, 0
      %3936 = vmatprep.subr.bf16.mxu0 0
      %3937 = vmatpush1.bf16.msra.mxu0 0
      %3938 = vmatprep.subr.bf16.mxu0 0
      %3939 = vmatpush1.bf16.msra.mxu0 0
      %3940 = vmatprep.subr.bf16.mxu0 0
      %3941 = vmatpush1.bf16.msra.mxu0 0
      %3942 = vmatprep.subr.bf16.mxu0 0
      %3943 = vmatpush1.bf16.msra.mxu0 0
      %3944 = vmatprep.subr.bf16.mxu0 0
      %3945 = vmatpush1.bf16.msra.mxu0 0
      %3946 = vmatprep.subr.bf16.mxu0 0
      %3947 = vmatpush1.bf16.msra.mxu0 0
      %3948 = vmatprep.subr.bf16.mxu0 0
      %3949 = vmatpush1.bf16.msra.mxu0 0
      %3950 = vmatprep.subr.bf16.mxu0 0
      %3951 = vmatpush1.bf16.msra.mxu0 %v3934
      %3952 = vmatprep.subr.bf16.mxu0 0
      %3953 = vmatpush2.bf16.msra.mxu0 0
      %3954 = vmatprep.subr.bf16.mxu0 0
      %3955 = vmatpush2.bf16.msra.mxu0 0
      %3956 = vmatprep.subr.bf16.mxu0 0
      %3957 = vmatpush2.bf16.msra.mxu0 0
      %3958 = vmatprep.subr.bf16.mxu0 0
      %3959 = vmatpush2.bf16.msra.mxu0 0
      %3960 = vmatprep.subr.bf16.mxu0 0
      %3961 = vmatpush2.bf16.msra.mxu0 0
      %3962 = vmatprep.subr.bf16.mxu0 0
      %3963 = vmatpush2.bf16.msra.mxu0 0
      %3964 = vmatprep.subr.bf16.mxu0 0
      %3965 = vmatpush2.bf16.msra.mxu0 0
      %3966 = vmatprep.subr.bf16.mxu0 0
      %3967 = vmatpush2.bf16.msra.mxu0 0
      %3968 = vmatprep.mubr.bf16.mxu0 0
      %3969 = vmatmul.mubr.bf16.gmra.mxu0 %v1214
      %v3970 = vpop.f32.mrf.mxu0
      %v3971 = vadd.f32 0.0, %v3970
      %v3972 = vpop.f32.mrf.mxu0
      %v3973 = vpop.f32.mrf.mxu0
      %v3974 = vadd.f32 0.0, %v3973
      %v3975 = vpop.f32.mrf.mxu0
      %3976 = vmatprep.mubr.bf16.mxu0 0
      %3977 = vmatmul.mubr.bf16.gmra.mxu0 %v1217
      %v3978 = vpop.f32.mrf.mxu0
      %v3979 = vadd.f32 0.0, %v3978
      %v3980 = vpop.f32.mrf.mxu0
      %v3981 = vpop.f32.mrf.mxu0
      %v3982 = vadd.f32 0.0, %v3981
      %v3983 = vpop.f32.mrf.mxu0
      %3984 = vmatprep.mubr.bf16.mxu0 0
      %3985 = vmatmul.mubr.bf16.gmra.mxu0 %v1220
      %v3986 = vpop.f32.mrf.mxu0
      %v3987 = vadd.f32 0.0, %v3986
      %v3988 = vpop.f32.mrf.mxu0
      %v3989 = vpop.f32.mrf.mxu0
      %v3990 = vadd.f32 0.0, %v3989
      %v3991 = vpop.f32.mrf.mxu0
      %3992 = vmatprep.mubr.bf16.mxu0 0
      %3993 = vmatmul.mubr.bf16.gmra.mxu0 %v1223
      %v3994 = vpop.f32.mrf.mxu0
      %v3995 = vadd.f32 0.0, %v3994
      %v3996 = vpop.f32.mrf.mxu0
      %v3997 = vpop.f32.mrf.mxu0
      %v3998 = vpop.f32.mrf.mxu0
      %3999 = vdwg.mxu0
      %4000 = vmatprep.subr.bf16.mxu0 0
      %4001 = vmatpush1.bf16.msra.mxu0 0
      %4002 = vmatprep.subr.bf16.mxu0 0
      %4003 = vmatpush1.bf16.msra.mxu0 0
      %4004 = vmatprep.subr.bf16.mxu0 0
      %4005 = vmatpush1.bf16.msra.mxu0 0
      %4006 = vmatprep.subr.bf16.mxu0 0
      %4007 = vmatpush1.bf16.msra.mxu0 0
      %4008 = vmatprep.subr.bf16.mxu0 0
      %4009 = vmatpush1.bf16.msra.mxu0 0
      %4010 = vmatprep.subr.bf16.mxu0 0
      %4011 = vmatpush1.bf16.msra.mxu0 0
      %4012 = vmatprep.subr.bf16.mxu0 0
      %4013 = vmatpush1.bf16.msra.mxu0 0
      %4014 = vmatprep.subr.bf16.mxu0 0
      %4015 = vmatpush1.bf16.msra.mxu0 %v3934
      %4016 = vmatprep.subr.bf16.mxu0 0
      %4017 = vmatpush2.bf16.msra.mxu0 0
      %4018 = vmatprep.subr.bf16.mxu0 0
      %4019 = vmatpush2.bf16.msra.mxu0 0
      %4020 = vmatprep.subr.bf16.mxu0 0
      %4021 = vmatpush2.bf16.msra.mxu0 0
      %4022 = vmatprep.subr.bf16.mxu0 0
      %4023 = vmatpush2.bf16.msra.mxu0 0
      %4024 = vmatprep.subr.bf16.mxu0 0
      %4025 = vmatpush2.bf16.msra.mxu0 0
      %4026 = vmatprep.subr.bf16.mxu0 0
      %4027 = vmatpush2.bf16.msra.mxu0 0
      %4028 = vmatprep.subr.bf16.mxu0 0
      %4029 = vmatpush2.bf16.msra.mxu0 0
      %4030 = vmatprep.subr.bf16.mxu0 0
      %4031 = vmatpush2.bf16.msra.mxu0 0
      %4032 = vmatprep.mubr.bf16.mxu0 0
      %4033 = vmatmul.mubr.bf16.gmra.mxu0 %v1311
      %v4034 = vpop.f32.mrf.mxu0
      %v4035 = vadd.f32 0.0, %v4034
      %v4036 = vpop.f32.mrf.mxu0
      %v4037 = vpop.f32.mrf.mxu0
      %v4038 = vadd.f32 0.0, %v4037
      %v4039 = vpop.f32.mrf.mxu0
      %4040 = vmatprep.mubr.bf16.mxu0 0
      %4041 = vmatmul.mubr.bf16.gmra.mxu0 %v1314
      %v4042 = vpop.f32.mrf.mxu0
      %v4043 = vadd.f32 0.0, %v4042
      %v4044 = vpop.f32.mrf.mxu0
      %v4045 = vpop.f32.mrf.mxu0
      %v4046 = vadd.f32 0.0, %v4045
      %v4047 = vpop.f32.mrf.mxu0
      %4048 = vmatprep.mubr.bf16.mxu0 0
      %4049 = vmatmul.mubr.bf16.gmra.mxu0 %v1317
      %v4050 = vpop.f32.mrf.mxu0
      %v4051 = vadd.f32 0.0, %v4050
      %v4052 = vpop.f32.mrf.mxu0
      %v4053 = vpop.f32.mrf.mxu0
      %v4054 = vadd.f32 0.0, %v4053
      %v4055 = vpop.f32.mrf.mxu0
      %4056 = vmatprep.mubr.bf16.mxu0 0
      %4057 = vmatmul.mubr.bf16.gmra.mxu0 %v1320
      %v4058 = vpop.f32.mrf.mxu0
      %v4059 = vadd.f32 0.0, %v4058
      %v4060 = vpop.f32.mrf.mxu0
      %v4061 = vpop.f32.mrf.mxu0
      %v4062 = vpop.f32.mrf.mxu0
      %4063 = vdwg.mxu0
      %v4064 = vsub.f32 %v3971, %v4035
      %v4065 = vsub.f32 %v3974, %v4038
      %v4066 = vsub.f32 %v3979, %v4043
      %v4067 = vsub.f32 %v3982, %v4046
      %v4068 = vsub.f32 %v3987, %v4051
      %v4069 = vsub.f32 %v3990, %v4054
      %v4070 = vsub.f32 %v3995, %v4059
      %v4071 = vmul.f32 %v4064, %v4064
      %v4072 = vmul.f32 %v4065, %v4065
      %v4073 = vmul.f32 %v4066, %v4066
      %v4074 = vmul.f32 %v4067, %v4067
      %v4075 = vmul.f32 %v4068, %v4068
      %v4076 = vmul.f32 %v4069, %v4069
      %v4077 = vmul.f32 %v4070, %v4070
      %4085 = vrot.lane.b32.xlu0 %v4071, 96
      %v4086 = vpop.permute.xlu0 %4085
      %4087 = vrot.lane.b32.xlu0 %v4072, 96
      %v4088 = vpop.permute.xlu0 %4087
      %4089 = vrot.lane.b32.xlu0 %v4073, 96
      %v4090 = vpop.permute.xlu0 %4089
      %4091 = vrot.lane.b32.xlu0 %v4074, 96
      %v4092 = vpop.permute.xlu0 %4091
      %4093 = vrot.lane.b32.xlu0 %v4075, 96
      %v4094 = vpop.permute.xlu0 %4093
      %4095 = vrot.lane.b32.xlu0 %v4076, 96
      %v4096 = vpop.permute.xlu0 %4095
      %4097 = vrot.lane.b32.xlu0 %v4077, 96
      %v4098 = vpop.permute.xlu0 %4097
      %v4106 = vsel %vm1428, %v4086, 0.0
      %4107 = vadd.xlane.f32.xlu0 %v4106
      %v4108 = vpop.xlane.xlu0 %4107
      %v4109 = vsel %vm1428, %v4088, 0.0
      %4110 = vadd.xlane.f32.xlu0 %v4109
      %v4111 = vpop.xlane.xlu0 %4110
      %v4112 = vsel %vm1428, %v4090, 0.0
      %4113 = vadd.xlane.f32.xlu0 %v4112
      %v4114 = vpop.xlane.xlu0 %4113
      %v4115 = vsel %vm1428, %v4092, 0.0
      %4116 = vadd.xlane.f32.xlu0 %v4115
      %v4117 = vpop.xlane.xlu0 %4116
      %v4118 = vsel %vm1428, %v4094, 0.0
      %4119 = vadd.xlane.f32.xlu0 %v4118
      %v4120 = vpop.xlane.xlu0 %4119
      %v4121 = vsel %vm1428, %v4096, 0.0
      %4122 = vadd.xlane.f32.xlu0 %v4121
      %v4123 = vpop.xlane.xlu0 %4122
      %v4124 = vsel %vm1428, %v4098, 0.0
      %4125 = vadd.xlane.f32.xlu0 %v4124
      %v4126 = vpop.xlane.xlu0 %4125
      %4134 = vrot.lane.b32.xlu0 %v4035, 35
      %v4135 = vpop.permute.xlu0 %4134
      %4136 = vrot.lane.b32.xlu0 %v4038, 35
      %v4137 = vpop.permute.xlu0 %4136
      %4138 = vrot.lane.b32.xlu0 %v4043, 35
      %v4139 = vpop.permute.xlu0 %4138
      %4140 = vrot.lane.b32.xlu0 %v4046, 35
      %v4141 = vpop.permute.xlu0 %4140
      %4142 = vrot.lane.b32.xlu0 %v4051, 35
      %v4143 = vpop.permute.xlu0 %4142
      %4144 = vrot.lane.b32.xlu0 %v4054, 35
      %v4145 = vpop.permute.xlu0 %4144
      %4146 = vrot.lane.b32.xlu0 %v4059, 35
      %v4147 = vpop.permute.xlu0 %4146
      %v4155 = vsel %vm1506, %v3971, %v4135
      %v4156 = vsel %vm1506, %v3974, %v4137
      %v4157 = vsel %vm1506, %v3979, %v4139
      %v4158 = vsel %vm1506, %v3982, %v4141
      %v4159 = vsel %vm1506, %v3987, %v4143
      %v4160 = vsel %vm1506, %v3990, %v4145
      %v4161 = vsel %vm1506, %v3995, %v4147
      %v4162 = vsel %vm1514, %v4155, %v4108
      %v4163 = vsel %vm1514, %v4156, %v4111
      %v4164 = vsel %vm1514, %v4157, %v4114
      %v4165 = vsel %vm1514, %v4158, %v4117
      %v4166 = vsel %vm1514, %v4159, %v4120
      %v4167 = vsel %vm1514, %v4160, %v4123
      %v4168 = vsel %vm1514, %v4161, %v4126
      %v4169 = vsel %vm1522, %v4162, %v1486
      %v4170 = vsel %vm1522, %v4163, %v1488
      %v4171 = vsel %vm1522, %v4164, %v1490
      %v4172 = vsel %vm1522, %v4165, %v1492
      %v4173 = vsel %vm1522, %v4166, %v1494
      %v4174 = vsel %vm1522, %v4167, %v1496
      %v4175 = vsel %vm1522, %v4168, %v1498
      %s4176 = scalar_lea.vmem %s21, 240
      %v4177 = vld [vmem:[%s4176] sm:$0xff]
      %v4178 = vld [vmem:[%s4176 + $0x8] sm:$0xff]
      %v4179 = vld [vmem:[%s4176 + $0x10] sm:$0xff]
      %v4180 = vld [vmem:[%s4176 + $0x18] sm:$0xff]
      %v4181 = vld [vmem:[%s4176 + $0x20] sm:$0xff]
      %v4182 = vld [vmem:[%s4176 + $0x28] sm:$0xff]
      %v4183 = vld [vmem:[%s4176 + $0x30] sm:$0xff]
      %v4184 = vld [vmem:[%s4176 + $0x38] sm:$0xff]
      %v4185 = vld [vmem:[%s4176 + $0x40] sm:$0xff]
      %v4186 = vld [vmem:[%s4176 + $0x48] sm:$0x1]
      %s4187 = scalar_lea.vmem %s23, 3
      %v4188 = vld [vmem:[%s4187] sm:$0x1]
      %v4190 = vlaneseq
      %v4191 = vshrl.u32 %v4190, 7
      %v4192 = vsub.s32 0, %v4191
      %v4193 = vrot.slane %v4188, %v4192
      %v4196 = vsel %vm1547, %v4169, 0
      %v4199 = vsel %vm1547, %v4170, 0
      %v4202 = vsel %vm1547, %v4171, 0
      %v4205 = vsel %vm1547, %v4172, 0
      %v4208 = vsel %vm1547, %v4173, 0
      %v4211 = vsel %vm1547, %v4174, 0
      %v4214 = vsel %vm1547, %v4175, 0
      %v4217 = vsel %vm1569, %v4186, 0
      %4219 = vmatprep.subr.mxu0 0.0
      %4220 = vmatpush1.msra.mxu0 0.0
      %4221 = vmatprep.subr.mxu0 0.0
      %4222 = vmatpush1.msra.mxu0 0.0
      %4223 = vmatprep.subr.mxu0 0.0
      %4224 = vmatpush1.msra.mxu0 0.0
      %4225 = vmatprep.subr.mxu0 0.0
      %4226 = vmatpush1.msra.mxu0 0.0
      %4227 = vmatprep.subr.mxu0 0.0
      %4228 = vmatpush1.msra.mxu0 0.0
      %4229 = vmatprep.subr.mxu0 0.0
      %4230 = vmatpush1.msra.mxu0 0.0
      %4231 = vmatprep.subr.mxu0 0.0
      %4232 = vmatpush1.msra.mxu0 %v4217
      %4233 = vmatprep.subr.mxu0 0.0
      %4234 = vmatpush1.msra.mxu0 %v4185
      %4235 = vmatprep.subr.mxu0 0.0
      %4236 = vmatpush1.msra.mxu0 %v4184
      %4237 = vmatprep.subr.mxu0 0.0
      %4238 = vmatpush1.msra.mxu0 %v4183
      %4239 = vmatprep.subr.mxu0 0.0
      %4240 = vmatpush1.msra.mxu0 %v4182
      %4241 = vmatprep.subr.mxu0 0.0
      %4242 = vmatpush1.msra.mxu0 %v4181
      %4243 = vmatprep.subr.mxu0 0.0
      %4244 = vmatpush1.msra.mxu0 %v4180
      %4245 = vmatprep.subr.mxu0 0.0
      %4246 = vmatpush1.msra.mxu0 %v4179
      %4247 = vmatprep.subr.mxu0 0.0
      %4248 = vmatpush1.msra.mxu0 %v4178
      %4249 = vmatprep.subr.mxu0 0.0
      %4250 = vmatpush1.msra.mxu0 %v4177
      %4251 = vmatprep.subr.mxu0 0.0
      %4252 = vmatpush2.msra.mxu0 0.0
      %4253 = vmatprep.subr.mxu0 0.0
      %4254 = vmatpush2.msra.mxu0 0.0
      %4255 = vmatprep.subr.mxu0 0.0
      %4256 = vmatpush2.msra.mxu0 0.0
      %4257 = vmatprep.subr.mxu0 0.0
      %4258 = vmatpush2.msra.mxu0 0.0
      %4259 = vmatprep.subr.mxu0 0.0
      %4260 = vmatpush2.msra.mxu0 0.0
      %4261 = vmatprep.subr.mxu0 0.0
      %4262 = vmatpush2.msra.mxu0 0.0
      %4263 = vmatprep.subr.mxu0 0.0
      %4264 = vmatpush2.msra.mxu0 0.0
      %4265 = vmatprep.subr.mxu0 0.0
      %4266 = vmatpush2.msra.mxu0 0.0
      %4267 = vmatprep.subr.mxu0 0.0
      %4268 = vmatpush2.msra.mxu0 0.0
      %4269 = vmatprep.subr.mxu0 0.0
      %4270 = vmatpush2.msra.mxu0 0.0
      %4271 = vmatprep.subr.mxu0 0.0
      %4272 = vmatpush2.msra.mxu0 0.0
      %4273 = vmatprep.subr.mxu0 0.0
      %4274 = vmatpush2.msra.mxu0 0.0
      %4275 = vmatprep.subr.mxu0 0.0
      %4276 = vmatpush2.msra.mxu0 0.0
      %4277 = vmatprep.subr.mxu0 0.0
      %4278 = vmatpush2.msra.mxu0 0.0
      %4279 = vmatprep.subr.mxu0 0.0
      %4280 = vmatpush2.msra.mxu0 0.0
      %4281 = vmatprep.subr.mxu0 0.0
      %4282 = vmatpush2.msra.mxu0 0.0
      %4283 = vmatprep.mubr.f32.mxu0 0.0
      %4284 = vmatmul.mubr.f32.gmra.mxu0 %v4196
      %v4285 = vpop.f32.mrf.mxu0
      %v4286 = vadd.f32 %v4193, %v4285
      %v4287 = vpop.f32.mrf.mxu0
      %4288 = vmatprep.mubr.f32.mxu0 0.0
      %4289 = vmatmul.mubr.f32.gmra.mxu0 %v4199
      %v4290 = vpop.f32.mrf.mxu0
      %v4291 = vadd.f32 %v4193, %v4290
      %v4292 = vpop.f32.mrf.mxu0
      %4293 = vmatprep.mubr.f32.mxu0 0.0
      %4294 = vmatmul.mubr.f32.gmra.mxu0 %v4202
      %v4295 = vpop.f32.mrf.mxu0
      %v4296 = vadd.f32 %v4193, %v4295
      %v4297 = vpop.f32.mrf.mxu0
      %4298 = vmatprep.mubr.f32.mxu0 0.0
      %4299 = vmatmul.mubr.f32.gmra.mxu0 %v4205
      %v4300 = vpop.f32.mrf.mxu0
      %v4301 = vadd.f32 %v4193, %v4300
      %v4302 = vpop.f32.mrf.mxu0
      %4303 = vmatprep.mubr.f32.mxu0 0.0
      %4304 = vmatmul.mubr.f32.gmra.mxu0 %v4208
      %v4305 = vpop.f32.mrf.mxu0
      %v4306 = vadd.f32 %v4193, %v4305
      %v4307 = vpop.f32.mrf.mxu0
      %4308 = vmatprep.mubr.f32.mxu0 0.0
      %4309 = vmatmul.mubr.f32.gmra.mxu0 %v4211
      %v4310 = vpop.f32.mrf.mxu0
      %v4311 = vadd.f32 %v4193, %v4310
      %v4312 = vpop.f32.mrf.mxu0
      %4313 = vmatprep.mubr.f32.mxu0 0.0
      %4314 = vmatmul.mubr.f32.gmra.mxu0 %v4214
      %v4315 = vpop.f32.mrf.mxu0
      %v4316 = vadd.f32 %v4193, %v4315
      %v4317 = vpop.f32.mrf.mxu0
      %4318 = vdwg.mxu0
      %v4319 = vxor.u32 %v4286, 2147483648
      %v4320 = vxor.u32 %v4291, 2147483648
      %v4321 = vxor.u32 %v4296, 2147483648
      %v4322 = vxor.u32 %v4301, 2147483648
      %v4323 = vxor.u32 %v4306, 2147483648
      %v4324 = vxor.u32 %v4311, 2147483648
      %v4325 = vxor.u32 %v4316, 2147483648
      %v4326 = vmul.f32 %v4319, 1.442695
      %v4327 = vpow.pop %v4326
      %v4328 = vmul.f32 %v4320, 1.442695
      %v4329 = vpow.pop %v4328
      %v4330 = vmul.f32 %v4321, 1.442695
      %v4331 = vpow.pop %v4330
      %v4332 = vmul.f32 %v4322, 1.442695
      %v4333 = vpow.pop %v4332
      %v4334 = vmul.f32 %v4323, 1.442695
      %v4335 = vpow.pop %v4334
      %v4336 = vmul.f32 %v4324, 1.442695
      %v4337 = vpow.pop %v4336
      %v4338 = vmul.f32 %v4325, 1.442695
      %v4339 = vpow.pop %v4338
      %v4340 = vadd.f32 %v4327, 1.0
      %v4341 = vadd.f32 %v4329, 1.0
      %v4342 = vadd.f32 %v4331, 1.0
      %v4343 = vadd.f32 %v4333, 1.0
      %v4344 = vadd.f32 %v4335, 1.0
      %v4345 = vadd.f32 %v4337, 1.0
      %v4346 = vadd.f32 %v4339, 1.0
      %v4347 = vrcp.pop %v4340
      %v4348 = vmul.f32 1.0, %v4347
      %v4349 = vrcp.pop %v4341
      %v4350 = vmul.f32 1.0, %v4349
      %v4351 = vrcp.pop %v4342
      %v4352 = vmul.f32 1.0, %v4351
      %v4353 = vrcp.pop %v4343
      %v4354 = vmul.f32 1.0, %v4353
      %v4355 = vrcp.pop %v4344
      %v4356 = vmul.f32 1.0, %v4355
      %v4357 = vrcp.pop %v4345
      %v4358 = vmul.f32 1.0, %v4357
      %v4359 = vrcp.pop %v4346
      %v4360 = vmul.f32 1.0, %v4359
      %v4361 = vmul.f32 %v4286, %v4348
      %v4362 = vmul.f32 %v4291, %v4350
      %v4363 = vmul.f32 %v4296, %v4352
      %v4364 = vmul.f32 %v4301, %v4354
      %v4365 = vmul.f32 %v4306, %v4356
      %v4366 = vmul.f32 %v4311, %v4358
      %v4367 = vmul.f32 %v4316, %v4360
      %s4368 = scalar_lea.vmem %s25, 96
      %v4369 = vld [vmem:[%s4368] sm:$0xff]
      %v4370 = vld [vmem:[%s4368 + $0x8] sm:$0xff]
      %v4371 = vld [vmem:[%s4368 + $0x10] sm:$0xff]
      %v4372 = vld [vmem:[%s4368 + $0x18] sm:$0xff]
      %s4373 = scalar_lea.vmem %s27, 3
      %v4374 = vld [vmem:[%s4373] sm:$0x1]
      %v4376 = vlaneseq
      %v4377 = vshrl.u32 %v4376, 7
      %v4378 = vsub.s32 0, %v4377
      %v4379 = vrot.slane %v4374, %v4378
      %v4382 = vsel %vm1191, %v4361, 0
      %v4385 = vsel %vm1191, %v4362, 0
      %v4388 = vsel %vm1191, %v4363, 0
      %v4391 = vsel %vm1191, %v4364, 0
      %v4394 = vsel %vm1191, %v4365, 0
      %v4397 = vsel %vm1191, %v4366, 0
      %v4400 = vsel %vm1191, %v4367, 0
      %4402 = vmatprep.subr.mxu0 0.0
      %4403 = vmatpush1.msra.mxu0 0.0
      %4404 = vmatprep.subr.mxu0 0.0
      %4405 = vmatpush1.msra.mxu0 0.0
      %4406 = vmatprep.subr.mxu0 0.0
      %4407 = vmatpush1.msra.mxu0 0.0
      %4408 = vmatprep.subr.mxu0 0.0
      %4409 = vmatpush1.msra.mxu0 0.0
      %4410 = vmatprep.subr.mxu0 0.0
      %4411 = vmatpush1.msra.mxu0 0.0
      %4412 = vmatprep.subr.mxu0 0.0
      %4413 = vmatpush1.msra.mxu0 0.0
      %4414 = vmatprep.subr.mxu0 0.0
      %4415 = vmatpush1.msra.mxu0 0.0
      %4416 = vmatprep.subr.mxu0 0.0
      %4417 = vmatpush1.msra.mxu0 0.0
      %4418 = vmatprep.subr.mxu0 0.0
      %4419 = vmatpush1.msra.mxu0 0.0
      %4420 = vmatprep.subr.mxu0 0.0
      %4421 = vmatpush1.msra.mxu0 0.0
      %4422 = vmatprep.subr.mxu0 0.0
      %4423 = vmatpush1.msra.mxu0 0.0
      %4424 = vmatprep.subr.mxu0 0.0
      %4425 = vmatpush1.msra.mxu0 0.0
      %4426 = vmatprep.subr.mxu0 0.0
      %4427 = vmatpush1.msra.mxu0 %v4372
      %4428 = vmatprep.subr.mxu0 0.0
      %4429 = vmatpush1.msra.mxu0 %v4371
      %4430 = vmatprep.subr.mxu0 0.0
      %4431 = vmatpush1.msra.mxu0 %v4370
      %4432 = vmatprep.subr.mxu0 0.0
      %4433 = vmatpush1.msra.mxu0 %v4369
      %4434 = vmatprep.subr.mxu0 0.0
      %4435 = vmatpush2.msra.mxu0 0.0
      %4436 = vmatprep.subr.mxu0 0.0
      %4437 = vmatpush2.msra.mxu0 0.0
      %4438 = vmatprep.subr.mxu0 0.0
      %4439 = vmatpush2.msra.mxu0 0.0
      %4440 = vmatprep.subr.mxu0 0.0
      %4441 = vmatpush2.msra.mxu0 0.0
      %4442 = vmatprep.subr.mxu0 0.0
      %4443 = vmatpush2.msra.mxu0 0.0
      %4444 = vmatprep.subr.mxu0 0.0
      %4445 = vmatpush2.msra.mxu0 0.0
      %4446 = vmatprep.subr.mxu0 0.0
      %4447 = vmatpush2.msra.mxu0 0.0
      %4448 = vmatprep.subr.mxu0 0.0
      %4449 = vmatpush2.msra.mxu0 0.0
      %4450 = vmatprep.subr.mxu0 0.0
      %4451 = vmatpush2.msra.mxu0 0.0
      %4452 = vmatprep.subr.mxu0 0.0
      %4453 = vmatpush2.msra.mxu0 0.0
      %4454 = vmatprep.subr.mxu0 0.0
      %4455 = vmatpush2.msra.mxu0 0.0
      %4456 = vmatprep.subr.mxu0 0.0
      %4457 = vmatpush2.msra.mxu0 0.0
      %4458 = vmatprep.subr.mxu0 0.0
      %4459 = vmatpush2.msra.mxu0 0.0
      %4460 = vmatprep.subr.mxu0 0.0
      %4461 = vmatpush2.msra.mxu0 0.0
      %4462 = vmatprep.subr.mxu0 0.0
      %4463 = vmatpush2.msra.mxu0 0.0
      %4464 = vmatprep.subr.mxu0 0.0
      %4465 = vmatpush2.msra.mxu0 0.0
      %4466 = vmatprep.mubr.f32.mxu0 0.0
      %4467 = vmatmul.mubr.f32.gmra.mxu0 %v4382
      %v4468 = vpop.f32.mrf.mxu0
      %v4469 = vadd.f32 %v4379, %v4468
      %v4470 = vpop.f32.mrf.mxu0
      %4471 = vmatprep.mubr.f32.mxu0 0.0
      %4472 = vmatmul.mubr.f32.gmra.mxu0 %v4385
      %v4473 = vpop.f32.mrf.mxu0
      %v4474 = vadd.f32 %v4379, %v4473
      %v4475 = vpop.f32.mrf.mxu0
      %4476 = vmatprep.mubr.f32.mxu0 0.0
      %4477 = vmatmul.mubr.f32.gmra.mxu0 %v4388
      %v4478 = vpop.f32.mrf.mxu0
      %v4479 = vadd.f32 %v4379, %v4478
      %v4480 = vpop.f32.mrf.mxu0
      %4481 = vmatprep.mubr.f32.mxu0 0.0
      %4482 = vmatmul.mubr.f32.gmra.mxu0 %v4391
      %v4483 = vpop.f32.mrf.mxu0
      %v4484 = vadd.f32 %v4379, %v4483
      %v4485 = vpop.f32.mrf.mxu0
      %4486 = vmatprep.mubr.f32.mxu0 0.0
      %4487 = vmatmul.mubr.f32.gmra.mxu0 %v4394
      %v4488 = vpop.f32.mrf.mxu0
      %v4489 = vadd.f32 %v4379, %v4488
      %v4490 = vpop.f32.mrf.mxu0
      %4491 = vmatprep.mubr.f32.mxu0 0.0
      %4492 = vmatmul.mubr.f32.gmra.mxu0 %v4397
      %v4493 = vpop.f32.mrf.mxu0
      %v4494 = vadd.f32 %v4379, %v4493
      %v4495 = vpop.f32.mrf.mxu0
      %4496 = vmatprep.mubr.f32.mxu0 0.0
      %4497 = vmatmul.mubr.f32.gmra.mxu0 %v4400
      %v4498 = vpop.f32.mrf.mxu0
      %v4499 = vadd.f32 %v4379, %v4498
      %v4500 = vpop.f32.mrf.mxu0
      %4501 = vdwg.mxu0
      %v4502 = vxor.u32 %v4469, 2147483648
      %v4503 = vxor.u32 %v4474, 2147483648
      %v4504 = vxor.u32 %v4479, 2147483648
      %v4505 = vxor.u32 %v4484, 2147483648
      %v4506 = vxor.u32 %v4489, 2147483648
      %v4507 = vxor.u32 %v4494, 2147483648
      %v4508 = vxor.u32 %v4499, 2147483648
      %v4509 = vmul.f32 %v4502, 1.442695
      %v4510 = vpow.pop %v4509
      %v4511 = vmul.f32 %v4503, 1.442695
      %v4512 = vpow.pop %v4511
      %v4513 = vmul.f32 %v4504, 1.442695
      %v4514 = vpow.pop %v4513
      %v4515 = vmul.f32 %v4505, 1.442695
      %v4516 = vpow.pop %v4515
      %v4517 = vmul.f32 %v4506, 1.442695
      %v4518 = vpow.pop %v4517
      %v4519 = vmul.f32 %v4507, 1.442695
      %v4520 = vpow.pop %v4519
      %v4521 = vmul.f32 %v4508, 1.442695
      %v4522 = vpow.pop %v4521
      %v4523 = vadd.f32 %v4510, 1.0
      %v4524 = vadd.f32 %v4512, 1.0
      %v4525 = vadd.f32 %v4514, 1.0
      %v4526 = vadd.f32 %v4516, 1.0
      %v4527 = vadd.f32 %v4518, 1.0
      %v4528 = vadd.f32 %v4520, 1.0
      %v4529 = vadd.f32 %v4522, 1.0
      %v4530 = vrcp.pop %v4523
      %v4531 = vmul.f32 1.0, %v4530
      %v4532 = vrcp.pop %v4524
      %v4533 = vmul.f32 1.0, %v4532
      %v4534 = vrcp.pop %v4525
      %v4535 = vmul.f32 1.0, %v4534
      %v4536 = vrcp.pop %v4526
      %v4537 = vmul.f32 1.0, %v4536
      %v4538 = vrcp.pop %v4527
      %v4539 = vmul.f32 1.0, %v4538
      %v4540 = vrcp.pop %v4528
      %v4541 = vmul.f32 1.0, %v4540
      %v4542 = vrcp.pop %v4529
      %v4543 = vmul.f32 1.0, %v4542
      %v4544 = vmul.f32 %v4469, %v4531
      %v4545 = vmul.f32 %v4474, %v4533
      %v4546 = vmul.f32 %v4479, %v4535
      %v4547 = vmul.f32 %v4484, %v4537
      %v4548 = vmul.f32 %v4489, %v4539
      %v4549 = vmul.f32 %v4494, %v4541
      %v4550 = vmul.f32 %v4499, %v4543
      %v4551 = vmul.f32 %v4544, %v1906
      %v4552 = vmul.f32 %v4545, %v1911
      %v4553 = vmul.f32 %v4546, %v1916
      %v4554 = vmul.f32 %v4547, %v1921
      %v4555 = vmul.f32 %v4548, %v1926
      %v4556 = vmul.f32 %v4549, %v1931
      %v4557 = vmul.f32 %v4550, %v1936
      %v4558 = vpack.c.bf16 %v4552, %v4551
      %v4559 = vpack.c.bf16 %v4554, %v4553
      %v4560 = vpack.c.bf16 %v4556, %v4555
      %v4561 = vpack.c.bf16 %v4557, %v4557
      %v4563 = vsel %vm1113, %v4561, 0
      %4565 = vmatprep.subr.bf16.mxu0 0
      %4566 = vmatpush1.bf16.msra.mxu0 0
      %4567 = vmatprep.subr.bf16.mxu0 0
      %4568 = vmatpush1.bf16.msra.mxu0 0
      %4569 = vmatprep.subr.bf16.mxu0 0
      %4570 = vmatpush1.bf16.msra.mxu0 0
      %4571 = vmatprep.subr.bf16.mxu0 0
      %4572 = vmatpush1.bf16.msra.mxu0 0
      %4573 = vmatprep.subr.bf16.mxu0 0
      %4574 = vmatpush1.bf16.msra.mxu0 %v4563
      %4575 = vmatprep.subr.bf16.mxu0 0
      %4576 = vmatpush1.bf16.msra.mxu0 %v4560
      %4577 = vmatprep.subr.bf16.mxu0 0
      %4578 = vmatpush1.bf16.msra.mxu0 %v4559
      %4579 = vmatprep.subr.bf16.mxu0 0
      %4580 = vmatpush1.bf16.msra.mxu0 %v4558
      %4581 = vmatprep.subr.bf16.mxu0 0
      %4582 = vmatpush2.bf16.msra.mxu0 0
      %4583 = vmatprep.subr.bf16.mxu0 0
      %4584 = vmatpush2.bf16.msra.mxu0 0
      %4585 = vmatprep.subr.bf16.mxu0 0
      %4586 = vmatpush2.bf16.msra.mxu0 0
      %4587 = vmatprep.subr.bf16.mxu0 0
      %4588 = vmatpush2.bf16.msra.mxu0 0
      %4589 = vmatprep.subr.bf16.mxu0 0
      %4590 = vmatpush2.bf16.msra.mxu0 0
      %4591 = vmatprep.subr.bf16.mxu0 0
      %4592 = vmatpush2.bf16.msra.mxu0 0
      %4593 = vmatprep.subr.bf16.mxu0 0
      %4594 = vmatpush2.bf16.msra.mxu0 0
      %4595 = vmatprep.subr.bf16.mxu0 0
      %4596 = vmatpush2.bf16.msra.mxu0 0
      %4597 = vmatprep.mubr.bf16.mxu0 0
      %4598 = vmatmul.mubr.bf16.gmra.mxu0 %v1971
      %v4599 = vpop.f32.mrf.mxu0
      %v4600 = vadd.f32 0.0, %v4599
      %v4601 = vpop.f32.mrf.mxu0
      %v4602 = vpop.f32.mrf.mxu0
      %v4603 = vpop.f32.mrf.mxu0
      %4604 = vdwg.mxu0
      %v4605 = vld [vmem:[%s37] sm:$0xff]
      %v4606 = vld [vmem:[%s37 + $0x8] sm:$0xff]
      %v4607 = vld [vmem:[%s37 + $0x10] sm:$0xff]
      %v4608 = vld [vmem:[%s37 + $0x18] sm:$0xff]
      %v4609 = vld [vmem:[%s39] sm:$0x1]
      %v4611 = vlaneseq
      %v4612 = vshrl.u32 %v4611, 7
      %v4613 = vsub.s32 0, %v4612
      %v4614 = vrot.slane %v4609, %v4613
      %v4617 = vsel %vm1191, %v4551, 0
      %v4620 = vsel %vm1191, %v4552, 0
      %v4623 = vsel %vm1191, %v4553, 0
      %v4626 = vsel %vm1191, %v4554, 0
      %v4629 = vsel %vm1191, %v4555, 0
      %v4632 = vsel %vm1191, %v4556, 0
      %v4635 = vsel %vm1191, %v4557, 0
      %4637 = vmatprep.subr.mxu0 0.0
      %4638 = vmatpush1.msra.mxu0 0.0
      %4639 = vmatprep.subr.mxu0 0.0
      %4640 = vmatpush1.msra.mxu0 0.0
      %4641 = vmatprep.subr.mxu0 0.0
      %4642 = vmatpush1.msra.mxu0 0.0
      %4643 = vmatprep.subr.mxu0 0.0
      %4644 = vmatpush1.msra.mxu0 0.0
      %4645 = vmatprep.subr.mxu0 0.0
      %4646 = vmatpush1.msra.mxu0 0.0
      %4647 = vmatprep.subr.mxu0 0.0
      %4648 = vmatpush1.msra.mxu0 0.0
      %4649 = vmatprep.subr.mxu0 0.0
      %4650 = vmatpush1.msra.mxu0 0.0
      %4651 = vmatprep.subr.mxu0 0.0
      %4652 = vmatpush1.msra.mxu0 0.0
      %4653 = vmatprep.subr.mxu0 0.0
      %4654 = vmatpush1.msra.mxu0 0.0
      %4655 = vmatprep.subr.mxu0 0.0
      %4656 = vmatpush1.msra.mxu0 0.0
      %4657 = vmatprep.subr.mxu0 0.0
      %4658 = vmatpush1.msra.mxu0 0.0
      %4659 = vmatprep.subr.mxu0 0.0
      %4660 = vmatpush1.msra.mxu0 0.0
      %4661 = vmatprep.subr.mxu0 0.0
      %4662 = vmatpush1.msra.mxu0 %v4608
      %4663 = vmatprep.subr.mxu0 0.0
      %4664 = vmatpush1.msra.mxu0 %v4607
      %4665 = vmatprep.subr.mxu0 0.0
      %4666 = vmatpush1.msra.mxu0 %v4606
      %4667 = vmatprep.subr.mxu0 0.0
      %4668 = vmatpush1.msra.mxu0 %v4605
      %4669 = vmatprep.subr.mxu0 0.0
      %4670 = vmatpush2.msra.mxu0 0.0
      %4671 = vmatprep.subr.mxu0 0.0
      %4672 = vmatpush2.msra.mxu0 0.0
      %4673 = vmatprep.subr.mxu0 0.0
      %4674 = vmatpush2.msra.mxu0 0.0
      %4675 = vmatprep.subr.mxu0 0.0
      %4676 = vmatpush2.msra.mxu0 0.0
      %4677 = vmatprep.subr.mxu0 0.0
      %4678 = vmatpush2.msra.mxu0 0.0
      %4679 = vmatprep.subr.mxu0 0.0
      %4680 = vmatpush2.msra.mxu0 0.0
      %4681 = vmatprep.subr.mxu0 0.0
      %4682 = vmatpush2.msra.mxu0 0.0
      %4683 = vmatprep.subr.mxu0 0.0
      %4684 = vmatpush2.msra.mxu0 0.0
      %4685 = vmatprep.subr.mxu0 0.0
      %4686 = vmatpush2.msra.mxu0 0.0
      %4687 = vmatprep.subr.mxu0 0.0
      %4688 = vmatpush2.msra.mxu0 0.0
      %4689 = vmatprep.subr.mxu0 0.0
      %4690 = vmatpush2.msra.mxu0 0.0
      %4691 = vmatprep.subr.mxu0 0.0
      %4692 = vmatpush2.msra.mxu0 0.0
      %4693 = vmatprep.subr.mxu0 0.0
      %4694 = vmatpush2.msra.mxu0 0.0
      %4695 = vmatprep.subr.mxu0 0.0
      %4696 = vmatpush2.msra.mxu0 0.0
      %4697 = vmatprep.subr.mxu0 0.0
      %4698 = vmatpush2.msra.mxu0 0.0
      %4699 = vmatprep.subr.mxu0 0.0
      %4700 = vmatpush2.msra.mxu0 0.0
      %4701 = vmatprep.mubr.f32.mxu0 0.0
      %4702 = vmatmul.mubr.f32.gmra.mxu0 %v4617
      %v4703 = vpop.f32.mrf.mxu0
      %v4704 = vadd.f32 %v4614, %v4703
      %v4705 = vpop.f32.mrf.mxu0
      %4706 = vmatprep.mubr.f32.mxu0 0.0
      %4707 = vmatmul.mubr.f32.gmra.mxu0 %v4620
      %v4708 = vpop.f32.mrf.mxu0
      %v4709 = vadd.f32 %v4614, %v4708
      %v4710 = vpop.f32.mrf.mxu0
      %4711 = vmatprep.mubr.f32.mxu0 0.0
      %4712 = vmatmul.mubr.f32.gmra.mxu0 %v4623
      %v4713 = vpop.f32.mrf.mxu0
      %v4714 = vadd.f32 %v4614, %v4713
      %v4715 = vpop.f32.mrf.mxu0
      %4716 = vmatprep.mubr.f32.mxu0 0.0
      %4717 = vmatmul.mubr.f32.gmra.mxu0 %v4626
      %v4718 = vpop.f32.mrf.mxu0
      %v4719 = vadd.f32 %v4614, %v4718
      %v4720 = vpop.f32.mrf.mxu0
      %4721 = vmatprep.mubr.f32.mxu0 0.0
      %4722 = vmatmul.mubr.f32.gmra.mxu0 %v4629
      %v4723 = vpop.f32.mrf.mxu0
      %v4724 = vadd.f32 %v4614, %v4723
      %v4725 = vpop.f32.mrf.mxu0
      %4726 = vmatprep.mubr.f32.mxu0 0.0
      %4727 = vmatmul.mubr.f32.gmra.mxu0 %v4632
      %v4728 = vpop.f32.mrf.mxu0
      %v4729 = vadd.f32 %v4614, %v4728
      %v4730 = vpop.f32.mrf.mxu0
      %4731 = vmatprep.mubr.f32.mxu0 0.0
      %4732 = vmatmul.mubr.f32.gmra.mxu0 %v4635
      %v4733 = vpop.f32.mrf.mxu0
      %v4734 = vadd.f32 %v4614, %v4733
      %v4735 = vpop.f32.mrf.mxu0
      %4736 = vdwg.mxu0
      %v4737 = vxor.u32 %v4704, 2147483648
      %v4738 = vxor.u32 %v4709, 2147483648
      %v4739 = vxor.u32 %v4714, 2147483648
      %v4740 = vxor.u32 %v4719, 2147483648
      %v4741 = vxor.u32 %v4724, 2147483648
      %v4742 = vxor.u32 %v4729, 2147483648
      %v4743 = vxor.u32 %v4734, 2147483648
      %v4744 = vmul.f32 %v4737, 1.442695
      %v4745 = vpow.pop %v4744
      %v4746 = vmul.f32 %v4738, 1.442695
      %v4747 = vpow.pop %v4746
      %v4748 = vmul.f32 %v4739, 1.442695
      %v4749 = vpow.pop %v4748
      %v4750 = vmul.f32 %v4740, 1.442695
      %v4751 = vpow.pop %v4750
      %v4752 = vmul.f32 %v4741, 1.442695
      %v4753 = vpow.pop %v4752
      %v4754 = vmul.f32 %v4742, 1.442695
      %v4755 = vpow.pop %v4754
      %v4756 = vmul.f32 %v4743, 1.442695
      %v4757 = vpow.pop %v4756
      %v4758 = vadd.f32 %v4745, 1.0
      %v4759 = vadd.f32 %v4747, 1.0
      %v4760 = vadd.f32 %v4749, 1.0
      %v4761 = vadd.f32 %v4751, 1.0
      %v4762 = vadd.f32 %v4753, 1.0
      %v4763 = vadd.f32 %v4755, 1.0
      %v4764 = vadd.f32 %v4757, 1.0
      %v4765 = vrcp.pop %v4758
      %v4766 = vmul.f32 1.0, %v4765
      %v4767 = vrcp.pop %v4759
      %v4768 = vmul.f32 1.0, %v4767
      %v4769 = vrcp.pop %v4760
      %v4770 = vmul.f32 1.0, %v4769
      %v4771 = vrcp.pop %v4761
      %v4772 = vmul.f32 1.0, %v4771
      %v4773 = vrcp.pop %v4762
      %v4774 = vmul.f32 1.0, %v4773
      %v4775 = vrcp.pop %v4763
      %v4776 = vmul.f32 1.0, %v4775
      %v4777 = vrcp.pop %v4764
      %v4778 = vmul.f32 1.0, %v4777
      %v4779 = vmul.f32 %v4704, %v4766
      %v4780 = vmul.f32 %v4709, %v4768
      %v4781 = vmul.f32 %v4714, %v4770
      %v4782 = vmul.f32 %v4719, %v4772
      %v4783 = vmul.f32 %v4724, %v4774
      %v4784 = vmul.f32 %v4729, %v4776
      %v4785 = vmul.f32 %v4734, %v4778
      %v4786 = vld [vmem:[%s41] sm:$0xff]
      %v4787 = vld [vmem:[%s41 + $0x8] sm:$0xff]
      %v4788 = vld [vmem:[%s41 + $0x10] sm:$0xff]
      %v4789 = vld [vmem:[%s41 + $0x18] sm:$0xff]
      %v4791 = vsel %vm1191, %v4779, 0
      %v4794 = vsel %vm1191, %v4780, 0
      %v4797 = vsel %vm1191, %v4781, 0
      %v4800 = vsel %vm1191, %v4782, 0
      %v4803 = vsel %vm1191, %v4783, 0
      %v4806 = vsel %vm1191, %v4784, 0
      %v4809 = vsel %vm1191, %v4785, 0
      %4811 = vmatprep.subr.mxu0 0.0
      %4812 = vmatpush1.msra.mxu0 0.0
      %4813 = vmatprep.subr.mxu0 0.0
      %4814 = vmatpush1.msra.mxu0 0.0
      %4815 = vmatprep.subr.mxu0 0.0
      %4816 = vmatpush1.msra.mxu0 0.0
      %4817 = vmatprep.subr.mxu0 0.0
      %4818 = vmatpush1.msra.mxu0 0.0
      %4819 = vmatprep.subr.mxu0 0.0
      %4820 = vmatpush1.msra.mxu0 0.0
      %4821 = vmatprep.subr.mxu0 0.0
      %4822 = vmatpush1.msra.mxu0 0.0
      %4823 = vmatprep.subr.mxu0 0.0
      %4824 = vmatpush1.msra.mxu0 0.0
      %4825 = vmatprep.subr.mxu0 0.0
      %4826 = vmatpush1.msra.mxu0 0.0
      %4827 = vmatprep.subr.mxu0 0.0
      %4828 = vmatpush1.msra.mxu0 0.0
      %4829 = vmatprep.subr.mxu0 0.0
      %4830 = vmatpush1.msra.mxu0 0.0
      %4831 = vmatprep.subr.mxu0 0.0
      %4832 = vmatpush1.msra.mxu0 0.0
      %4833 = vmatprep.subr.mxu0 0.0
      %4834 = vmatpush1.msra.mxu0 0.0
      %4835 = vmatprep.subr.mxu0 0.0
      %4836 = vmatpush1.msra.mxu0 %v4789
      %4837 = vmatprep.subr.mxu0 0.0
      %4838 = vmatpush1.msra.mxu0 %v4788
      %4839 = vmatprep.subr.mxu0 0.0
      %4840 = vmatpush1.msra.mxu0 %v4787
      %4841 = vmatprep.subr.mxu0 0.0
      %4842 = vmatpush1.msra.mxu0 %v4786
      %4843 = vmatprep.subr.mxu0 0.0
      %4844 = vmatpush2.msra.mxu0 0.0
      %4845 = vmatprep.subr.mxu0 0.0
      %4846 = vmatpush2.msra.mxu0 0.0
      %4847 = vmatprep.subr.mxu0 0.0
      %4848 = vmatpush2.msra.mxu0 0.0
      %4849 = vmatprep.subr.mxu0 0.0
      %4850 = vmatpush2.msra.mxu0 0.0
      %4851 = vmatprep.subr.mxu0 0.0
      %4852 = vmatpush2.msra.mxu0 0.0
      %4853 = vmatprep.subr.mxu0 0.0
      %4854 = vmatpush2.msra.mxu0 0.0
      %4855 = vmatprep.subr.mxu0 0.0
      %4856 = vmatpush2.msra.mxu0 0.0
      %4857 = vmatprep.subr.mxu0 0.0
      %4858 = vmatpush2.msra.mxu0 0.0
      %4859 = vmatprep.subr.mxu0 0.0
      %4860 = vmatpush2.msra.mxu0 0.0
      %4861 = vmatprep.subr.mxu0 0.0
      %4862 = vmatpush2.msra.mxu0 0.0
      %4863 = vmatprep.subr.mxu0 0.0
      %4864 = vmatpush2.msra.mxu0 0.0
      %4865 = vmatprep.subr.mxu0 0.0
      %4866 = vmatpush2.msra.mxu0 0.0
      %4867 = vmatprep.subr.mxu0 0.0
      %4868 = vmatpush2.msra.mxu0 0.0
      %4869 = vmatprep.subr.mxu0 0.0
      %4870 = vmatpush2.msra.mxu0 0.0
      %4871 = vmatprep.subr.mxu0 0.0
      %4872 = vmatpush2.msra.mxu0 0.0
      %4873 = vmatprep.subr.mxu0 0.0
      %4874 = vmatpush2.msra.mxu0 0.0
      %4875 = vmatprep.mubr.f32.mxu0 0.0
      %4876 = vmatmul.mubr.f32.gmra.mxu0 %v4791
      %v4877 = vpop.f32.mrf.mxu0
      %v4878 = vadd.f32 0.0, %v4877
      %v4879 = vpop.f32.mrf.mxu0
      %4880 = vmatprep.mubr.f32.mxu0 0.0
      %4881 = vmatmul.mubr.f32.gmra.mxu0 %v4794
      %v4882 = vpop.f32.mrf.mxu0
      %v4883 = vadd.f32 0.0, %v4882
      %v4884 = vpop.f32.mrf.mxu0
      %4885 = vmatprep.mubr.f32.mxu0 0.0
      %4886 = vmatmul.mubr.f32.gmra.mxu0 %v4797
      %v4887 = vpop.f32.mrf.mxu0
      %v4888 = vadd.f32 0.0, %v4887
      %v4889 = vpop.f32.mrf.mxu0
      %4890 = vmatprep.mubr.f32.mxu0 0.0
      %4891 = vmatmul.mubr.f32.gmra.mxu0 %v4800
      %v4892 = vpop.f32.mrf.mxu0
      %v4893 = vadd.f32 0.0, %v4892
      %v4894 = vpop.f32.mrf.mxu0
      %4895 = vmatprep.mubr.f32.mxu0 0.0
      %4896 = vmatmul.mubr.f32.gmra.mxu0 %v4803
      %v4897 = vpop.f32.mrf.mxu0
      %v4898 = vadd.f32 0.0, %v4897
      %v4899 = vpop.f32.mrf.mxu0
      %4900 = vmatprep.mubr.f32.mxu0 0.0
      %4901 = vmatmul.mubr.f32.gmra.mxu0 %v4806
      %v4902 = vpop.f32.mrf.mxu0
      %v4903 = vadd.f32 0.0, %v4902
      %v4904 = vpop.f32.mrf.mxu0
      %4905 = vmatprep.mubr.f32.mxu0 0.0
      %4906 = vmatmul.mubr.f32.gmra.mxu0 %v4809
      %v4907 = vpop.f32.mrf.mxu0
      %v4908 = vadd.f32 0.0, %v4907
      %v4909 = vpop.f32.mrf.mxu0
      %4910 = vdwg.mxu0
      %4912 = vset.pattern.permute.xlu0 0
      %4913 = vperm.xlu0 %4912, %v4878
      %v4914 = vpop.permute.xlu0 %4913
      %4917 = vset.pattern.permute.xlu0 0
      %4918 = vperm.xlu0 %4917, %v4883
      %v4919 = vpop.permute.xlu0 %4918
      %4922 = vset.pattern.permute.xlu0 0
      %4923 = vperm.xlu0 %4922, %v4888
      %v4924 = vpop.permute.xlu0 %4923
      %4927 = vset.pattern.permute.xlu0 0
      %4928 = vperm.xlu0 %4927, %v4893
      %v4929 = vpop.permute.xlu0 %4928
      %4932 = vset.pattern.permute.xlu0 0
      %4933 = vperm.xlu0 %4932, %v4898
      %v4934 = vpop.permute.xlu0 %4933
      %4937 = vset.pattern.permute.xlu0 0
      %4938 = vperm.xlu0 %4937, %v4903
      %v4939 = vpop.permute.xlu0 %4938
      %4942 = vset.pattern.permute.xlu0 0
      %4943 = vperm.xlu0 %4942, %v4908
      %v4944 = vpop.permute.xlu0 %4943
      %v4946 = vmul.f32 %v4064, %v4914
      %v4947 = vmul.f32 %v4065, %v4919
      %v4948 = vmul.f32 %v4066, %v4924
      %v4949 = vmul.f32 %v4067, %v4929
      %v4950 = vmul.f32 %v4068, %v4934
      %v4951 = vmul.f32 %v4069, %v4939
      %v4952 = vmul.f32 %v4070, %v4944
      %v4953 = vpack.c.bf16 %v4947, %v4946
      %v4954 = vpack.c.bf16 %v4949, %v4948
      %v4955 = vpack.c.bf16 %v4951, %v4950
      %v4956 = vpack.c.bf16 %v4952, %v4952
      %4961 = vrot.lane.b32.xlu0 %v4953, 96
      %v4962 = vpop.permute.xlu0 %4961
      %4963 = vrot.lane.b32.xlu0 %v4954, 96
      %v4964 = vpop.permute.xlu0 %4963
      %4965 = vrot.lane.b32.xlu0 %v4955, 96
      %v4966 = vpop.permute.xlu0 %4965
      %4967 = vrot.lane.b32.xlu0 %v4956, 96
      %v4968 = vpop.permute.xlu0 %4967
      %v4973 = vsel %vm1113, %v4968, 0
      %4975 = vmatprep.subr.bf16.mxu0 0
      %4976 = vmatpush1.bf16.msra.mxu0 0
      %4977 = vmatprep.subr.bf16.mxu0 0
      %4978 = vmatpush1.bf16.msra.mxu0 0
      %4979 = vmatprep.subr.bf16.mxu0 0
      %4980 = vmatpush1.bf16.msra.mxu0 0
      %4981 = vmatprep.subr.bf16.mxu0 0
      %4982 = vmatpush1.bf16.msra.mxu0 0
      %4983 = vmatprep.subr.bf16.mxu0 0
      %4984 = vmatpush1.bf16.msra.mxu0 %v4973
      %4985 = vmatprep.subr.bf16.mxu0 0
      %4986 = vmatpush1.bf16.msra.mxu0 %v4966
      %4987 = vmatprep.subr.bf16.mxu0 0
      %4988 = vmatpush1.bf16.msra.mxu0 %v4964
      %4989 = vmatprep.subr.bf16.mxu0 0
      %4990 = vmatpush1.bf16.msra.mxu0 %v4962
      %4991 = vmatprep.subr.bf16.mxu0 0
      %4992 = vmatpush2.bf16.msra.mxu0 0
      %4993 = vmatprep.subr.bf16.mxu0 0
      %4994 = vmatpush2.bf16.msra.mxu0 0
      %4995 = vmatprep.subr.bf16.mxu0 0
      %4996 = vmatpush2.bf16.msra.mxu0 0
      %4997 = vmatprep.subr.bf16.mxu0 0
      %4998 = vmatpush2.bf16.msra.mxu0 0
      %4999 = vmatprep.subr.bf16.mxu0 0
      %5000 = vmatpush2.bf16.msra.mxu0 0
      %5001 = vmatprep.subr.bf16.mxu0 0
      %5002 = vmatpush2.bf16.msra.mxu0 0
      %5003 = vmatprep.subr.bf16.mxu0 0
      %5004 = vmatpush2.bf16.msra.mxu0 0
      %5005 = vmatprep.subr.bf16.mxu0 0
      %5006 = vmatpush2.bf16.msra.mxu0 0
      %5007 = vmatprep.mubr.bf16.mxu0 0
      %5008 = vmatmul.mubr.bf16.gmra.mxu0 %v1971
      %v5009 = vpop.f32.mrf.mxu0
      %v5010 = vadd.f32 0.0, %v5009
      %v5011 = vpop.f32.mrf.mxu0
      %v5012 = vpop.f32.mrf.mxu0
      %v5013 = vpop.f32.mrf.mxu0
      %5014 = vdwg.mxu0
      %5016 = vset.pattern.permute.xlu0 0
      %5017 = vperm.xlu0 %5016, %v1099
      %v5018 = vpop.permute.xlu0 %5017
      %v5020 = vmul.f32 %v5010, %v5018
      %v5021 = vadd.f32 %v1083, %v5020
      %5023 = vrot.lane.b32.xlu0 %v4600, 32
      %v5024 = vpop.permute.xlu0 %5023
      %v5026 = vsel %vm1191, %v3930, %v5024
      %s5027 = scalar_lea.vmem %s29, 192
      %v5028 = vld [vmem:[%s5027] sm:$0xff]
      %v5029 = vld [vmem:[%s5027 + $0x8] sm:$0xff]
      %v5030 = vld [vmem:[%s5027 + $0x10] sm:$0xff]
      %v5031 = vld [vmem:[%s5027 + $0x18] sm:$0xff]
      %v5032 = vld [vmem:[%s5027 + $0x20] sm:$0xff]
      %v5033 = vld [vmem:[%s5027 + $0x28] sm:$0xff]
      %v5034 = vld [vmem:[%s5027 + $0x30] sm:$0xff]
      %v5035 = vld [vmem:[%s5027 + $0x38] sm:$0xff]
      %s5036 = scalar_lea.vmem %s31, 3
      %v5037 = vld [vmem:[%s5036] sm:$0x1]
      %v5039 = vlaneseq
      %v5040 = vshrl.u32 %v5039, 7
      %v5041 = vsub.s32 0, %v5040
      %v5042 = vrot.slane %v5037, %v5041
      %v5045 = vsel %vm2036, %v5026, 0
      %5047 = vmatprep.subr.mxu0 0.0
      %5048 = vmatpush1.msra.mxu0 0.0
      %5049 = vmatprep.subr.mxu0 0.0
      %5050 = vmatpush1.msra.mxu0 0.0
      %5051 = vmatprep.subr.mxu0 0.0
      %5052 = vmatpush1.msra.mxu0 0.0
      %5053 = vmatprep.subr.mxu0 0.0
      %5054 = vmatpush1.msra.mxu0 0.0
      %5055 = vmatprep.subr.mxu0 0.0
      %5056 = vmatpush1.msra.mxu0 0.0
      %5057 = vmatprep.subr.mxu0 0.0
      %5058 = vmatpush1.msra.mxu0 0.0
      %5059 = vmatprep.subr.mxu0 0.0
      %5060 = vmatpush1.msra.mxu0 0.0
      %5061 = vmatprep.subr.mxu0 0.0
      %5062 = vmatpush1.msra.mxu0 0.0
      %5063 = vmatprep.subr.mxu0 0.0
      %5064 = vmatpush1.msra.mxu0 %v5035
      %5065 = vmatprep.subr.mxu0 0.0
      %5066 = vmatpush1.msra.mxu0 %v5034
      %5067 = vmatprep.subr.mxu0 0.0
      %5068 = vmatpush1.msra.mxu0 %v5033
      %5069 = vmatprep.subr.mxu0 0.0
      %5070 = vmatpush1.msra.mxu0 %v5032
      %5071 = vmatprep.subr.mxu0 0.0
      %5072 = vmatpush1.msra.mxu0 %v5031
      %5073 = vmatprep.subr.mxu0 0.0
      %5074 = vmatpush1.msra.mxu0 %v5030
      %5075 = vmatprep.subr.mxu0 0.0
      %5076 = vmatpush1.msra.mxu0 %v5029
      %5077 = vmatprep.subr.mxu0 0.0
      %5078 = vmatpush1.msra.mxu0 %v5028
      %5079 = vmatprep.subr.mxu0 0.0
      %5080 = vmatpush2.msra.mxu0 0.0
      %5081 = vmatprep.subr.mxu0 0.0
      %5082 = vmatpush2.msra.mxu0 0.0
      %5083 = vmatprep.subr.mxu0 0.0
      %5084 = vmatpush2.msra.mxu0 0.0
      %5085 = vmatprep.subr.mxu0 0.0
      %5086 = vmatpush2.msra.mxu0 0.0
      %5087 = vmatprep.subr.mxu0 0.0
      %5088 = vmatpush2.msra.mxu0 0.0
      %5089 = vmatprep.subr.mxu0 0.0
      %5090 = vmatpush2.msra.mxu0 0.0
      %5091 = vmatprep.subr.mxu0 0.0
      %5092 = vmatpush2.msra.mxu0 0.0
      %5093 = vmatprep.subr.mxu0 0.0
      %5094 = vmatpush2.msra.mxu0 0.0
      %5095 = vmatprep.subr.mxu0 0.0
      %5096 = vmatpush2.msra.mxu0 0.0
      %5097 = vmatprep.subr.mxu0 0.0
      %5098 = vmatpush2.msra.mxu0 0.0
      %5099 = vmatprep.subr.mxu0 0.0
      %5100 = vmatpush2.msra.mxu0 0.0
      %5101 = vmatprep.subr.mxu0 0.0
      %5102 = vmatpush2.msra.mxu0 0.0
      %5103 = vmatprep.subr.mxu0 0.0
      %5104 = vmatpush2.msra.mxu0 0.0
      %5105 = vmatprep.subr.mxu0 0.0
      %5106 = vmatpush2.msra.mxu0 0.0
      %5107 = vmatprep.subr.mxu0 0.0
      %5108 = vmatpush2.msra.mxu0 0.0
      %5109 = vmatprep.subr.mxu0 0.0
      %5110 = vmatpush2.msra.mxu0 0.0
      %5111 = vmatprep.mubr.f32.mxu0 0.0
      %5112 = vmatmul.mubr.f32.gmra.mxu0 %v5045
      %v5113 = vpop.f32.mrf.mxu0
      %v5114 = vadd.f32 %v5042, %v5113
      %v5115 = vpop.f32.mrf.mxu0
      %5116 = vdwg.mxu0
      %v5117 = vxor.u32 %v5114, 2147483648
      %v5118 = vmul.f32 %v5117, 1.442695
      %v5119 = vpow.pop %v5118
      %v5120 = vadd.f32 %v5119, 1.0
      %v5121 = vrcp.pop %v5120
      %v5122 = vmul.f32 1.0, %v5121
      %v5123 = vmul.f32 %v5114, %v5122
      %s5124 = scalar_lea.vmem %s33, 96
      %v5125 = vld [vmem:[%s5124] sm:$0xff]
      %v5126 = vld [vmem:[%s5124 + $0x8] sm:$0xff]
      %v5127 = vld [vmem:[%s5124 + $0x10] sm:$0xff]
      %v5128 = vld [vmem:[%s5124 + $0x18] sm:$0xff]
      %v5130 = vsel %vm1191, %v5123, 0
      %5132 = vmatprep.subr.mxu0 0.0
      %5133 = vmatpush1.msra.mxu0 0.0
      %5134 = vmatprep.subr.mxu0 0.0
      %5135 = vmatpush1.msra.mxu0 0.0
      %5136 = vmatprep.subr.mxu0 0.0
      %5137 = vmatpush1.msra.mxu0 0.0
      %5138 = vmatprep.subr.mxu0 0.0
      %5139 = vmatpush1.msra.mxu0 0.0
      %5140 = vmatprep.subr.mxu0 0.0
      %5141 = vmatpush1.msra.mxu0 0.0
      %5142 = vmatprep.subr.mxu0 0.0
      %5143 = vmatpush1.msra.mxu0 0.0
      %5144 = vmatprep.subr.mxu0 0.0
      %5145 = vmatpush1.msra.mxu0 0.0
      %5146 = vmatprep.subr.mxu0 0.0
      %5147 = vmatpush1.msra.mxu0 0.0
      %5148 = vmatprep.subr.mxu0 0.0
      %5149 = vmatpush1.msra.mxu0 0.0
      %5150 = vmatprep.subr.mxu0 0.0
      %5151 = vmatpush1.msra.mxu0 0.0
      %5152 = vmatprep.subr.mxu0 0.0
      %5153 = vmatpush1.msra.mxu0 0.0
      %5154 = vmatprep.subr.mxu0 0.0
      %5155 = vmatpush1.msra.mxu0 0.0
      %5156 = vmatprep.subr.mxu0 0.0
      %5157 = vmatpush1.msra.mxu0 %v5128
      %5158 = vmatprep.subr.mxu0 0.0
      %5159 = vmatpush1.msra.mxu0 %v5127
      %5160 = vmatprep.subr.mxu0 0.0
      %5161 = vmatpush1.msra.mxu0 %v5126
      %5162 = vmatprep.subr.mxu0 0.0
      %5163 = vmatpush1.msra.mxu0 %v5125
      %5164 = vmatprep.subr.mxu0 0.0
      %5165 = vmatpush2.msra.mxu0 0.0
      %5166 = vmatprep.subr.mxu0 0.0
      %5167 = vmatpush2.msra.mxu0 0.0
      %5168 = vmatprep.subr.mxu0 0.0
      %5169 = vmatpush2.msra.mxu0 0.0
      %5170 = vmatprep.subr.mxu0 0.0
      %5171 = vmatpush2.msra.mxu0 0.0
      %5172 = vmatprep.subr.mxu0 0.0
      %5173 = vmatpush2.msra.mxu0 0.0
      %5174 = vmatprep.subr.mxu0 0.0
      %5175 = vmatpush2.msra.mxu0 0.0
      %5176 = vmatprep.subr.mxu0 0.0
      %5177 = vmatpush2.msra.mxu0 0.0
      %5178 = vmatprep.subr.mxu0 0.0
      %5179 = vmatpush2.msra.mxu0 0.0
      %5180 = vmatprep.subr.mxu0 0.0
      %5181 = vmatpush2.msra.mxu0 0.0
      %5182 = vmatprep.subr.mxu0 0.0
      %5183 = vmatpush2.msra.mxu0 0.0
      %5184 = vmatprep.subr.mxu0 0.0
      %5185 = vmatpush2.msra.mxu0 0.0
      %5186 = vmatprep.subr.mxu0 0.0
      %5187 = vmatpush2.msra.mxu0 0.0
      %5188 = vmatprep.subr.mxu0 0.0
      %5189 = vmatpush2.msra.mxu0 0.0
      %5190 = vmatprep.subr.mxu0 0.0
      %5191 = vmatpush2.msra.mxu0 0.0
      %5192 = vmatprep.subr.mxu0 0.0
      %5193 = vmatpush2.msra.mxu0 0.0
      %5194 = vmatprep.subr.mxu0 0.0
      %5195 = vmatpush2.msra.mxu0 0.0
      %5196 = vmatprep.mubr.f32.mxu0 0.0
      %5197 = vmatmul.mubr.f32.gmra.mxu0 %v5130
      %v5198 = vpop.f32.mrf.mxu0
      %v5199 = vadd.f32 0.0, %v5198
      %v5200 = vpop.f32.mrf.mxu0
      %5201 = vdwg.mxu0
      %v5202 = vadd.f32 %v3930, %v5199
      %s5203 = scalar_lea.vmem %s35, 3
      %v5204 = vld [vmem:[%s5203] sm:$0x1]
      %v5206 = vlaneseq
      %v5207 = vshrl.u32 %v5206, 7
      %v5208 = vsub.s32 0, %v5207
      %v5209 = vrot.slane %v5204, %v5208
      %v5211 = vadd.f32 %v5202, %v5209
      %v5212 = vld [vmem:[%s43] sm:$0xff]
      %v5213 = vld [vmem:[%s43 + $0x8] sm:$0xff]
      %v5214 = vld [vmem:[%s43 + $0x10] sm:$0xff]
      %v5215 = vld [vmem:[%s43 + $0x18] sm:$0xff]
      %v5216 = vld [vmem:[%s45] sm:$0x1]
      %v5218 = vlaneseq
      %v5219 = vshrl.u32 %v5218, 7
      %v5220 = vsub.s32 0, %v5219
      %v5221 = vrot.slane %v5216, %v5220
      %v5224 = vsel %vm1191, %v5211, 0
      %5226 = vmatprep.subr.mxu0 0.0
      %5227 = vmatpush1.msra.mxu0 0.0
      %5228 = vmatprep.subr.mxu0 0.0
      %5229 = vmatpush1.msra.mxu0 0.0
      %5230 = vmatprep.subr.mxu0 0.0
      %5231 = vmatpush1.msra.mxu0 0.0
      %5232 = vmatprep.subr.mxu0 0.0
      %5233 = vmatpush1.msra.mxu0 0.0
      %5234 = vmatprep.subr.mxu0 0.0
      %5235 = vmatpush1.msra.mxu0 0.0
      %5236 = vmatprep.subr.mxu0 0.0
      %5237 = vmatpush1.msra.mxu0 0.0
      %5238 = vmatprep.subr.mxu0 0.0
      %5239 = vmatpush1.msra.mxu0 0.0
      %5240 = vmatprep.subr.mxu0 0.0
      %5241 = vmatpush1.msra.mxu0 0.0
      %5242 = vmatprep.subr.mxu0 0.0
      %5243 = vmatpush1.msra.mxu0 0.0
      %5244 = vmatprep.subr.mxu0 0.0
      %5245 = vmatpush1.msra.mxu0 0.0
      %5246 = vmatprep.subr.mxu0 0.0
      %5247 = vmatpush1.msra.mxu0 0.0
      %5248 = vmatprep.subr.mxu0 0.0
      %5249 = vmatpush1.msra.mxu0 0.0
      %5250 = vmatprep.subr.mxu0 0.0
      %5251 = vmatpush1.msra.mxu0 %v5215
      %5252 = vmatprep.subr.mxu0 0.0
      %5253 = vmatpush1.msra.mxu0 %v5214
      %5254 = vmatprep.subr.mxu0 0.0
      %5255 = vmatpush1.msra.mxu0 %v5213
      %5256 = vmatprep.subr.mxu0 0.0
      %5257 = vmatpush1.msra.mxu0 %v5212
      %5258 = vmatprep.subr.mxu0 0.0
      %5259 = vmatpush2.msra.mxu0 0.0
      %5260 = vmatprep.subr.mxu0 0.0
      %5261 = vmatpush2.msra.mxu0 0.0
      %5262 = vmatprep.subr.mxu0 0.0
      %5263 = vmatpush2.msra.mxu0 0.0
      %5264 = vmatprep.subr.mxu0 0.0
      %5265 = vmatpush2.msra.mxu0 0.0
      %5266 = vmatprep.subr.mxu0 0.0
      %5267 = vmatpush2.msra.mxu0 0.0
      %5268 = vmatprep.subr.mxu0 0.0
      %5269 = vmatpush2.msra.mxu0 0.0
      %5270 = vmatprep.subr.mxu0 0.0
      %5271 = vmatpush2.msra.mxu0 0.0
      %5272 = vmatprep.subr.mxu0 0.0
      %5273 = vmatpush2.msra.mxu0 0.0
      %5274 = vmatprep.subr.mxu0 0.0
      %5275 = vmatpush2.msra.mxu0 0.0
      %5276 = vmatprep.subr.mxu0 0.0
      %5277 = vmatpush2.msra.mxu0 0.0
      %5278 = vmatprep.subr.mxu0 0.0
      %5279 = vmatpush2.msra.mxu0 0.0
      %5280 = vmatprep.subr.mxu0 0.0
      %5281 = vmatpush2.msra.mxu0 0.0
      %5282 = vmatprep.subr.mxu0 0.0
      %5283 = vmatpush2.msra.mxu0 0.0
      %5284 = vmatprep.subr.mxu0 0.0
      %5285 = vmatpush2.msra.mxu0 0.0
      %5286 = vmatprep.subr.mxu0 0.0
      %5287 = vmatpush2.msra.mxu0 0.0
      %5288 = vmatprep.subr.mxu0 0.0
      %5289 = vmatpush2.msra.mxu0 0.0
      %5290 = vmatprep.mubr.f32.mxu0 0.0
      %5291 = vmatmul.mubr.f32.gmra.mxu0 %v5224
      %v5292 = vpop.f32.mrf.mxu0
      %v5293 = vadd.f32 %v5221, %v5292
      %v5294 = vpop.f32.mrf.mxu0
      %5295 = vdwg.mxu0
      %v5296 = vxor.u32 %v5293, 2147483648
      %v5297 = vmul.f32 %v5296, 1.442695
      %v5298 = vpow.pop %v5297
      %v5299 = vadd.f32 %v5298, 1.0
      %v5300 = vrcp.pop %v5299
      %v5301 = vmul.f32 1.0, %v5300
      %v5302 = vmul.f32 %v5293, %v5301
      %v5303 = vld [vmem:[%s47] sm:$0xff]
      %v5304 = vld [vmem:[%s47 + $0x8] sm:$0xff]
      %v5305 = vld [vmem:[%s47 + $0x10] sm:$0xff]
      %v5306 = vld [vmem:[%s47 + $0x18] sm:$0xff]
      %v5307 = vld [vmem:[%s49] sm:$0x1]
      %v5309 = vlaneseq
      %v5310 = vshrl.u32 %v5309, 7
      %v5311 = vsub.s32 0, %v5310
      %v5312 = vrot.slane %v5307, %v5311
      %v5315 = vsel %vm1191, %v5302, 0
      %5317 = vmatprep.subr.mxu0 0.0
      %5318 = vmatpush1.msra.mxu0 0.0
      %5319 = vmatprep.subr.mxu0 0.0
      %5320 = vmatpush1.msra.mxu0 0.0
      %5321 = vmatprep.subr.mxu0 0.0
      %5322 = vmatpush1.msra.mxu0 0.0
      %5323 = vmatprep.subr.mxu0 0.0
      %5324 = vmatpush1.msra.mxu0 0.0
      %5325 = vmatprep.subr.mxu0 0.0
      %5326 = vmatpush1.msra.mxu0 0.0
      %5327 = vmatprep.subr.mxu0 0.0
      %5328 = vmatpush1.msra.mxu0 0.0
      %5329 = vmatprep.subr.mxu0 0.0
      %5330 = vmatpush1.msra.mxu0 0.0
      %5331 = vmatprep.subr.mxu0 0.0
      %5332 = vmatpush1.msra.mxu0 0.0
      %5333 = vmatprep.subr.mxu0 0.0
      %5334 = vmatpush1.msra.mxu0 0.0
      %5335 = vmatprep.subr.mxu0 0.0
      %5336 = vmatpush1.msra.mxu0 0.0
      %5337 = vmatprep.subr.mxu0 0.0
      %5338 = vmatpush1.msra.mxu0 0.0
      %5339 = vmatprep.subr.mxu0 0.0
      %5340 = vmatpush1.msra.mxu0 0.0
      %5341 = vmatprep.subr.mxu0 0.0
      %5342 = vmatpush1.msra.mxu0 %v5306
      %5343 = vmatprep.subr.mxu0 0.0
      %5344 = vmatpush1.msra.mxu0 %v5305
      %5345 = vmatprep.subr.mxu0 0.0
      %5346 = vmatpush1.msra.mxu0 %v5304
      %5347 = vmatprep.subr.mxu0 0.0
      %5348 = vmatpush1.msra.mxu0 %v5303
      %5349 = vmatprep.subr.mxu0 0.0
      %5350 = vmatpush2.msra.mxu0 0.0
      %5351 = vmatprep.subr.mxu0 0.0
      %5352 = vmatpush2.msra.mxu0 0.0
      %5353 = vmatprep.subr.mxu0 0.0
      %5354 = vmatpush2.msra.mxu0 0.0
      %5355 = vmatprep.subr.mxu0 0.0
      %5356 = vmatpush2.msra.mxu0 0.0
      %5357 = vmatprep.subr.mxu0 0.0
      %5358 = vmatpush2.msra.mxu0 0.0
      %5359 = vmatprep.subr.mxu0 0.0
      %5360 = vmatpush2.msra.mxu0 0.0
      %5361 = vmatprep.subr.mxu0 0.0
      %5362 = vmatpush2.msra.mxu0 0.0
      %5363 = vmatprep.subr.mxu0 0.0
      %5364 = vmatpush2.msra.mxu0 0.0
      %5365 = vmatprep.subr.mxu0 0.0
      %5366 = vmatpush2.msra.mxu0 0.0
      %5367 = vmatprep.subr.mxu0 0.0
      %5368 = vmatpush2.msra.mxu0 0.0
      %5369 = vmatprep.subr.mxu0 0.0
      %5370 = vmatpush2.msra.mxu0 0.0
      %5371 = vmatprep.subr.mxu0 0.0
      %5372 = vmatpush2.msra.mxu0 0.0
      %5373 = vmatprep.subr.mxu0 0.0
      %5374 = vmatpush2.msra.mxu0 0.0
      %5375 = vmatprep.subr.mxu0 0.0
      %5376 = vmatpush2.msra.mxu0 0.0
      %5377 = vmatprep.subr.mxu0 0.0
      %5378 = vmatpush2.msra.mxu0 0.0
      %5379 = vmatprep.subr.mxu0 0.0
      %5380 = vmatpush2.msra.mxu0 0.0
      %5381 = vmatprep.mubr.f32.mxu0 0.0
      %5382 = vmatmul.mubr.f32.gmra.mxu0 %v5315
      %v5383 = vpop.f32.mrf.mxu0
      %v5384 = vadd.f32 %v5312, %v5383
      %v5385 = vpop.f32.mrf.mxu0
      %5386 = vdwg.mxu0
      %v5387 = vld [vmem:[%s1056] sm:$0xff]
      %5389 = vset.pattern.permute.xlu0 0
      %5390 = vperm.xlu0 %5389, %v5387
      %v5391 = vpop.permute.xlu0 %5390
      %v5393 = vmul.f32 %v5384, %v5391
      %v5394 = vsel %vm1191, %v5393, 0.0
      %v5395 = vrot.slane %v5394, 4
      %v5396 = vadd.f32 %v5394, %v5395
      %v5397 = vrot.slane %v5396, 2
      %v5398 = vadd.f32 %v5396, %v5397
      %v5399 = vrot.slane %v5398, 1
      %v5400 = vadd.f32 %v5398, %v5399
      %v5401 = vld [vmem:[%s51] sm:$0xff]
      %v5402 = vld [vmem:[%s51 + $0x8] sm:$0xff]
      %v5403 = vld [vmem:[%s51 + $0x10] sm:$0xff]
      %v5404 = vld [vmem:[%s51 + $0x18] sm:$0xff]
      %v5405 = vld [vmem:[%s53] sm:$0x1]
      %v5407 = vsel %vm1191, %v5400, 0
      %5409 = vmatprep.subr.mxu0 0.0
      %5410 = vmatpush1.msra.mxu0 0.0
      %5411 = vmatprep.subr.mxu0 0.0
      %5412 = vmatpush1.msra.mxu0 0.0
      %5413 = vmatprep.subr.mxu0 0.0
      %5414 = vmatpush1.msra.mxu0 0.0
      %5415 = vmatprep.subr.mxu0 0.0
      %5416 = vmatpush1.msra.mxu0 0.0
      %5417 = vmatprep.subr.mxu0 0.0
      %5418 = vmatpush1.msra.mxu0 0.0
      %5419 = vmatprep.subr.mxu0 0.0
      %5420 = vmatpush1.msra.mxu0 0.0
      %5421 = vmatprep.subr.mxu0 0.0
      %5422 = vmatpush1.msra.mxu0 0.0
      %5423 = vmatprep.subr.mxu0 0.0
      %5424 = vmatpush1.msra.mxu0 0.0
      %5425 = vmatprep.subr.mxu0 0.0
      %5426 = vmatpush1.msra.mxu0 0.0
      %5427 = vmatprep.subr.mxu0 0.0
      %5428 = vmatpush1.msra.mxu0 0.0
      %5429 = vmatprep.subr.mxu0 0.0
      %5430 = vmatpush1.msra.mxu0 0.0
      %5431 = vmatprep.subr.mxu0 0.0
      %5432 = vmatpush1.msra.mxu0 0.0
      %5433 = vmatprep.subr.mxu0 0.0
      %5434 = vmatpush1.msra.mxu0 %v5404
      %5435 = vmatprep.subr.mxu0 0.0
      %5436 = vmatpush1.msra.mxu0 %v5403
      %5437 = vmatprep.subr.mxu0 0.0
      %5438 = vmatpush1.msra.mxu0 %v5402
      %5439 = vmatprep.subr.mxu0 0.0
      %5440 = vmatpush1.msra.mxu0 %v5401
      %5441 = vmatprep.subr.mxu0 0.0
      %5442 = vmatpush2.msra.mxu0 0.0
      %5443 = vmatprep.subr.mxu0 0.0
      %5444 = vmatpush2.msra.mxu0 0.0
      %5445 = vmatprep.subr.mxu0 0.0
      %5446 = vmatpush2.msra.mxu0 0.0
      %5447 = vmatprep.subr.mxu0 0.0
      %5448 = vmatpush2.msra.mxu0 0.0
      %5449 = vmatprep.subr.mxu0 0.0
      %5450 = vmatpush2.msra.mxu0 0.0
      %5451 = vmatprep.subr.mxu0 0.0
      %5452 = vmatpush2.msra.mxu0 0.0
      %5453 = vmatprep.subr.mxu0 0.0
      %5454 = vmatpush2.msra.mxu0 0.0
      %5455 = vmatprep.subr.mxu0 0.0
      %5456 = vmatpush2.msra.mxu0 0.0
      %5457 = vmatprep.subr.mxu0 0.0
      %5458 = vmatpush2.msra.mxu0 0.0
      %5459 = vmatprep.subr.mxu0 0.0
      %5460 = vmatpush2.msra.mxu0 0.0
      %5461 = vmatprep.subr.mxu0 0.0
      %5462 = vmatpush2.msra.mxu0 0.0
      %5463 = vmatprep.subr.mxu0 0.0
      %5464 = vmatpush2.msra.mxu0 0.0
      %5465 = vmatprep.subr.mxu0 0.0
      %5466 = vmatpush2.msra.mxu0 0.0
      %5467 = vmatprep.subr.mxu0 0.0
      %5468 = vmatpush2.msra.mxu0 0.0
      %5469 = vmatprep.subr.mxu0 0.0
      %5470 = vmatpush2.msra.mxu0 0.0
      %5471 = vmatprep.subr.mxu0 0.0
      %5472 = vmatpush2.msra.mxu0 0.0
      %5473 = vmatprep.mubr.f32.mxu0 0.0
      %5474 = vmatmul.mubr.f32.gmra.mxu0 %v5407
      %v5475 = vpop.f32.mrf.mxu0
      %v5476 = vadd.f32 %v5405, %v5475
      %v5477 = vpop.f32.mrf.mxu0
      %5478 = vdwg.mxu0
      %v5479 = vxor.u32 %v5476, 2147483648
      %v5480 = vmul.f32 %v5479, 1.442695
      %v5481 = vpow.pop %v5480
      %v5482 = vadd.f32 %v5481, 1.0
      %v5483 = vrcp.pop %v5482
      %v5484 = vmul.f32 1.0, %v5483
      %v5485 = vmul.f32 %v5476, %v5484
      %v5486 = vld [vmem:[%s55] sm:$0xff]
      %v5487 = vld [vmem:[%s55 + $0x8] sm:$0xff]
      %v5488 = vld [vmem:[%s55 + $0x10] sm:$0xff]
      %v5489 = vld [vmem:[%s55 + $0x18] sm:$0xff]
      %v5490 = vld [vmem:[#allocation2] sm:$0x1]
      %v5492 = vsel %vm1191, %v5485, 0
      %5494 = vmatprep.subr.mxu0 0.0
      %5495 = vmatpush1.msra.mxu0 0.0
      %5496 = vmatprep.subr.mxu0 0.0
      %5497 = vmatpush1.msra.mxu0 0.0
      %5498 = vmatprep.subr.mxu0 0.0
      %5499 = vmatpush1.msra.mxu0 0.0
      %5500 = vmatprep.subr.mxu0 0.0
      %5501 = vmatpush1.msra.mxu0 0.0
      %5502 = vmatprep.subr.mxu0 0.0
      %5503 = vmatpush1.msra.mxu0 0.0
      %5504 = vmatprep.subr.mxu0 0.0
      %5505 = vmatpush1.msra.mxu0 0.0
      %5506 = vmatprep.subr.mxu0 0.0
      %5507 = vmatpush1.msra.mxu0 0.0
      %5508 = vmatprep.subr.mxu0 0.0
      %5509 = vmatpush1.msra.mxu0 0.0
      %5510 = vmatprep.subr.mxu0 0.0
      %5511 = vmatpush1.msra.mxu0 0.0
      %5512 = vmatprep.subr.mxu0 0.0
      %5513 = vmatpush1.msra.mxu0 0.0
      %5514 = vmatprep.subr.mxu0 0.0
      %5515 = vmatpush1.msra.mxu0 0.0
      %5516 = vmatprep.subr.mxu0 0.0
      %5517 = vmatpush1.msra.mxu0 0.0
      %5518 = vmatprep.subr.mxu0 0.0
      %5519 = vmatpush1.msra.mxu0 %v5489
      %5520 = vmatprep.subr.mxu0 0.0
      %5521 = vmatpush1.msra.mxu0 %v5488
      %5522 = vmatprep.subr.mxu0 0.0
      %5523 = vmatpush1.msra.mxu0 %v5487
      %5524 = vmatprep.subr.mxu0 0.0
      %5525 = vmatpush1.msra.mxu0 %v5486
      %5526 = vmatprep.subr.mxu0 0.0
      %5527 = vmatpush2.msra.mxu0 0.0
      %5528 = vmatprep.subr.mxu0 0.0
      %5529 = vmatpush2.msra.mxu0 0.0
      %5530 = vmatprep.subr.mxu0 0.0
      %5531 = vmatpush2.msra.mxu0 0.0
      %5532 = vmatprep.subr.mxu0 0.0
      %5533 = vmatpush2.msra.mxu0 0.0
      %5534 = vmatprep.subr.mxu0 0.0
      %5535 = vmatpush2.msra.mxu0 0.0
      %5536 = vmatprep.subr.mxu0 0.0
      %5537 = vmatpush2.msra.mxu0 0.0
      %5538 = vmatprep.subr.mxu0 0.0
      %5539 = vmatpush2.msra.mxu0 0.0
      %5540 = vmatprep.subr.mxu0 0.0
      %5541 = vmatpush2.msra.mxu0 0.0
      %5542 = vmatprep.subr.mxu0 0.0
      %5543 = vmatpush2.msra.mxu0 0.0
      %5544 = vmatprep.subr.mxu0 0.0
      %5545 = vmatpush2.msra.mxu0 0.0
      %5546 = vmatprep.subr.mxu0 0.0
      %5547 = vmatpush2.msra.mxu0 0.0
      %5548 = vmatprep.subr.mxu0 0.0
      %5549 = vmatpush2.msra.mxu0 0.0
      %5550 = vmatprep.subr.mxu0 0.0
      %5551 = vmatpush2.msra.mxu0 0.0
      %5552 = vmatprep.subr.mxu0 0.0
      %5553 = vmatpush2.msra.mxu0 0.0
      %5554 = vmatprep.subr.mxu0 0.0
      %5555 = vmatpush2.msra.mxu0 0.0
      %5556 = vmatprep.subr.mxu0 0.0
      %5557 = vmatpush2.msra.mxu0 0.0
      %5558 = vmatprep.mubr.f32.mxu0 0.0
      %5559 = vmatmul.mubr.f32.gmra.mxu0 %v5492
      %v5560 = vpop.f32.mrf.mxu0
      %v5561 = vadd.f32 %v5490, %v5560
      %v5562 = vpop.f32.mrf.mxu0
      %5563 = vdwg.mxu0
      %vm5564 = vcmask 0
      %5565 = vst.msk [vmem:[%s1063] sm:$0x1] %vm5564, %v5561
      %5566 = vst.msk [vmem:[%s1067] sm:$0xff] %vm1428, %v5021
      %p5567 = scmp.lt.s32.totalorder %s75, 1
      %s5568 = scalar_select %p5567, %s75, 1
      %s5569 = scalar_lea.vmem %s59, %s5568
      %p5570 = scmp.lt.s32.totalorder %s75, 1
      %s5571 = scalar_select %p5570, %s75, 1
      %s5572 = smul.addr %s5571, 8
      %s5573 = scalar_lea.vmem %s61, %s5572
      // Predicated region
      $region137: #{tpu_custom_call.1} parent=135 // pred_check
        %p5574 = pneg %p742
      $region138: #{tpu_custom_call.1} parent=135 // pred_check_branch
        %5576 = sbr.rel (%p5574) target = $region140
      $region139: #{tpu_custom_call.1} parent=135 // pred_region
        _
      $region140: #{tpu_custom_call.1} parent=135 // pred_fallthru
        _
      // Predicated region
      $region141: #{tpu_custom_call.1} parent=135 // pred_check
        %p5577 = pneg %p768
      $region142: #{tpu_custom_call.1} parent=135 // pred_check_branch
        %5579 = sbr.rel (%p5577) target = $region144
      $region143: #{tpu_custom_call.1} parent=135 // pred_region
        _
      $region144: #{tpu_custom_call.1} parent=135 // pred_fallthru
        _
    $region136: #{tpu_custom_call.1} parent=5 // pred_fallthru
      _
    %p5580 = scmp.le.s32.totalorder 2, %s70
    // Predicated region
    $region145: #{tpu_custom_call.1} parent=5 // pred_check
      %p5581 = pneg %p5580
    $region146: #{tpu_custom_call.1} parent=5 // pred_check_branch
      %5583 = sbr.rel (%p5581) target = $region148
    $region147: #{tpu_custom_call.1} parent=5 // pred_region
      %s5584 = ssub.s32 %s70, 2
      // Predicated region
      $region149: #{tpu_custom_call.1} parent=147 // pred_check
        %p5585 = pneg %p748
      $region150: #{tpu_custom_call.1} parent=147 // pred_check_branch
        %5587 = sbr.rel (%p5585) target = $region152
      $region151: #{tpu_custom_call.1} parent=147 // pred_region
        %p5588 = scmp.lt.s32.totalorder %s76, 1
        %s5589 = scalar_select %p5588, %s76, 1
        %s5590 = scalar_lea.vmem %s59, %s5589
      $region152: #{tpu_custom_call.1} parent=147 // pred_fallthru
        _
      // Predicated region
      $region153: #{tpu_custom_call.1} parent=147 // pred_check
        %p5591 = pneg %p774
      $region154: #{tpu_custom_call.1} parent=147 // pred_check_branch
        %5593 = sbr.rel (%p5591) target = $region156
      $region155: #{tpu_custom_call.1} parent=147 // pred_region
        %p5594 = scmp.lt.s32.totalorder %s76, 1
        %s5595 = scalar_select %p5594, %s76, 1
        %s5596 = smul.addr %s5595, 8
        %s5597 = scalar_lea.vmem %s61, %s5596
      $region156: #{tpu_custom_call.1} parent=147 // pred_fallthru
        _
    $region148: #{tpu_custom_call.1} parent=5 // pred_fallthru
      _
  $region6: #{tpu_custom_call.1} parent=0 // loop_footer
    %s74 = sadd.s32 1, %s70
  $region7: #{tpu_custom_call.1} parent=0 // loop_footer_branch
    %69 = sbr.rel target = $region3
  $region8: #{tpu_custom_call.1} parent=0 // loop_exit
    _

</llo_original>
